<compile_context>
chip_gen: v6e
topology: v6e:2x2x1
jax: 0.10.0
libtpu: 0.0.40
codegen_flags: <defaults>
</compile_context>

<pallas_src>
import functools
import math

import jax
import jax.numpy as jnp
from jax.experimental import pallas as pl
from jax.experimental.pallas import tpu as pltpu


def _round_up(n, m):
    return ((n + m - 1) // m) * m


def _lightning_attention_kernel(xt_ref, w_ref, gfin_ref, o_ref,
                                *, num_heads, head_dim, eps):
    H, hd = num_heads, head_dim
    D = H * hd

    # (feature, token) layout: tokens sit on the 128-lane axis.
    xt = xt_ref[...].astype(jnp.float32)                                  # (D, T)
    T = xt.shape[1]

    # Input RMSNorm over features (leading-axis reduce: cheap vreg adds).
    # g_in is already folded into the projection weight by the wrapper.
    rms = jax.lax.rsqrt(jnp.mean(xt * xt, axis=0, keepdims=True) + eps)   # (1, T)
    xn = (xt * rms).astype(jnp.bfloat16)

    # Fused QKVG projection: one wide MXU matmul, bf16 operands, f32 accumulate.
    proj = jnp.dot(w_ref[...], xn, preferred_element_type=jnp.float32)    # (4D, T)

    def silu(z):                                   # f32 elementwise (EUP/VPU)
        return z * jax.nn.sigmoid(z)
    # NOTE: on v6e/v7x this SiLU/sigmoid pass could run in bf16 if a bundle
    # dump shows the EUP/VALU binding; kept f32 so the same kernel is correct
    # and fast on v5e (no bf16 VPU/EUP).

    # Leading-axis split (D, T) -> (H, hd, T) is a free re-indexing when
    # hd % 8 == 0 (f32 sublanes); other head dims work but force relayouts.
    q = silu(proj[0 * D:1 * D, :]).reshape(H, hd, T)
    k = silu(proj[1 * D:2 * D, :]).reshape(H, hd, T)
    v = silu(proj[2 * D:3 * D, :]).reshape(H, hd, T)
    g = proj[3 * D:4 * D, :]                                   # gate (no SiLU)

    scale = 1.0 / math.sqrt(hd)

    # ---- per-token attention over heads; tokens stay on the lane axis ----
    # Fully-unrolled loop over the key-head axis (H is a small static
    # compile-time constant; this is the unrolled equivalent of
    # lax.fori_loop(0, H, ..., unroll=True) with static slice indices).
    # Live temporary per step is (H, hd, T) = D*T f32; the (H, H, hd, T)
    # broadcast product is never materialized.
    s_rows = []
    for j in range(H):               # s[:, j, t] = sum_d q[:, d, t] * k[j, d, t]
        s_rows.append(jnp.sum(q * k[j][None, :, :], axis=1) * scale)      # (H, T)
    s = jnp.stack(s_rows, axis=1)                                         # (H, H, T)

    m = jnp.max(s, axis=1, keepdims=True)        # softmax over the key-head axis
    e = jnp.exp(s - m)
    denom = jnp.sum(e, axis=1, keepdims=True)
    p = e * pl.reciprocal(denom, approx=True)    # EUP reciprocal, off the VALU

    o = jnp.zeros((H, hd, T), jnp.float32)
    for j in range(H):               # o[h, d, t] += p[h, j, t] * v[j, d, t]
        o = o + p[:, j, :][:, None, :] * v[j][None, :, :]
    o = o.reshape(D, T)

    # Gate + final RMSNorm (feature-axis stats are leading-axis reduces).
    o = o * jax.nn.sigmoid(g)
    rms2 = jax.lax.rsqrt(jnp.mean(o * o, axis=0, keepdims=True) + eps)
    o = o * rms2

    # Single in-kernel transpose back to (T, D); the final-norm weight is a
    # lane-dense (1, D) row applied after the transpose.  For D % 128 == 0
    # (realistic configs) this store is lane-dense (unmasked vst); only the
    # toy D = 64 config lane-masks it.
    o_ref[...] = (o.T * gfin_ref[...]).astype(o_ref.dtype)


def lightning_attention(x, wq, wk, wv, wg, g_in, g_fin, *,
                        num_heads, token_tile=None, eps=1e-6):
    B, L, D = x.shape
    assert D % num_heads == 0, "dim must be divisible by num_heads"
    head_dim = D // num_heads
    N = B * L

    # Fuse the four projection weights ONCE and fold the input RMSNorm weight
    # into them:  W @ (x * rms * g_in) == (W * g_in[None, :]) @ (x * rms).
    # (PyTorch Linear stores (out_features, in_features); the kernel computes
    # W @ x^T, so no per-call weight transposes are needed.)  bf16 halves
    # weight VMEM / DMA bytes; accumulation is f32 on the MXU.
    w_fused = (jnp.concatenate([wq, wk, wv, wg], axis=0).astype(jnp.float32)
               * g_in[None, :].astype(jnp.float32)).astype(jnp.bfloat16)   # (4D, D)
    gfin_row = g_fin.reshape(1, D).astype(jnp.float32)          # lane-dense row

    # ---- per-generation tiling / VMEM budget ----
    try:
        vmem_cap = pltpu.get_tpu_info().vmem_capacity_bytes
    except Exception:
        vmem_cap = 64 * 1024 * 1024          # conservative (v7x-sized) default
    if token_tile is None:
        # v5e/v6e (128 MiB VMEM): bigger tiles amortize ~0.35 us/step overhead;
        # v7x (64 MiB): keep resident bf16 weight + tiles under budget.
        token_tile = 512 if vmem_cap >= 96 * 1024 * 1024 else 256
    vmem_limit = int(min(vmem_cap * 4 // 5, 100 * 1024 * 1024))
    # TODO(synk): for D >~ 2900 on v7x the (4D, D) bf16 weight alone exceeds
    # ~32 MiB; add an "arbitrary" grid axis over the contraction dim with an
    # f32 projection accumulator in scratch instead of a fully resident weight.

    tile = max(128, (min(token_tile, _round_up(N, 128)) // 128) * 128)
    n_pad = _round_up(N, tile)

    # Explicit zero padding (no OOB block DMAs); padded token columns flow
    # through RMSNorm / softmax as finite zeros and are sliced off at the end.
    xf = x.reshape(N, D)
    if n_pad != N:
        xf = jnp.pad(xf, ((0, n_pad - N), (0, 0)))
    # One wrapper-side transpose so the kernel never transposes its input tile
    # (in-kernel vxpose shares issue slots with MXU vmatmul pushes).
    xt = xf.T                                                   # (D, n_pad)

    kernel = functools.partial(_lightning_attention_kernel,
                               num_heads=num_heads, head_dim=head_dim, eps=eps)

    # Advisory cost estimate so XLA can schedule surrounding ops/collectives.
    cost = pl.CostEstimate(
        flops=int(2 * 4 * D * D * n_pad + 4 * num_heads * D * n_pad),
        transcendentals=int(4 * D * n_pad + num_heads * num_heads * n_pad),
        bytes_accessed=int(2 * n_pad * D * x.dtype.itemsize
                           + w_fused.size * 2 + gfin_row.size * 4),
    )

    def _call(single_buffer_consts):
        # Grid-constant operands (constant index maps) are fetched once; with
        # pipeline_mode=pl.Buffered(1) they are also single-buffered, halving
        # their VMEM footprint (critical for the (4D, D) weight on v7x).
        const_kw = (dict(pipeline_mode=pl.Buffered(1))
                    if single_buffer_consts else {})
        return pl.pallas_call(
            kernel,
            out_shape=jax.ShapeDtypeStruct((n_pad, D), x.dtype),
            grid_spec=pltpu.PrefetchScalarGridSpec(
                num_scalar_prefetch=0,
                grid=(n_pad // tile,),
                in_specs=[
                    pl.BlockSpec((D, tile), lambda i: (0, i)),      # x (streamed)
                    pl.BlockSpec((4 * D, D), lambda i: (0, 0), **const_kw),
                    pl.BlockSpec((1, D), lambda i: (0, 0), **const_kw),
                ],
                out_specs=pl.BlockSpec((tile, D), lambda i: (i, 0)),
            ),
            compiler_params=pltpu.CompilerParams(
                dimension_semantics=("parallel",),
                vmem_limit_bytes=vmem_limit,
            ),
            cost_estimate=cost,
        )(xt, w_fused, gfin_row)

    try:
        out = _call(True)
    except Exception:
        # pipeline_mode / pl.Buffered(1) not supported by this JAX version:
        # fall back to default double-buffering (blocks are still only
        # DMA'd once because their index map is constant).
        out = _call(False)

    return out[:N].reshape(B, L, D)


def lightning_attention_ref(x, wq, wk, wv, wg, g_in, g_fin, *, num_heads, eps=1e-6):
    """Pure-JAX (f32) mirror of the PyTorch forward, for correctness checking."""
    B, L, D = x.shape
    hd = D // num_heads
    rms = jax.lax.rsqrt(jnp.mean(x * x, axis=-1, keepdims=True) + eps)
    xn = x * rms * g_in
    silu = lambda z: z * jax.nn.sigmoid(z)
    q = silu(xn @ wq.T).reshape(B, L, num_heads, hd)
    k = silu(xn @ wk.T).reshape(B, L, num_heads, hd)
    v = silu(xn @ wv.T).reshape(B, L, num_heads, hd)
    g = xn @ wg.T
    scale = 1.0 / math.sqrt(hd)
    attn = jnp.einsum('blhd,blsd->blhs', q, k) * scale
    attn = jax.nn.softmax(attn, axis=-1)
    out = jnp.einsum('blhs,blsd->blhd', attn, v).reshape(B, L, D)
    out = out * jax.nn.sigmoid(g)
    rms2 = jax.lax.rsqrt(jnp.mean(out * out, axis=-1, keepdims=True) + eps)
    return out * rms2 * g_fin


if __name__ == "__main__":
    B, L, D, H = 2, 8, 64, 8       # dim divisible by num_heads; head_dim = 8

    key = jax.random.PRNGKey(0)
    kx, kq, kk, kv, kg, kgi, kgf = jax.random.split(key, 7)
    bound = 1.0 / math.sqrt(D)     # deterministic, Linear-like uniform init
    x = jax.random.normal(kx, (B, L, D), jnp.float32)
    wq = jax.random.uniform(kq, (D, D), jnp.float32, -bound, bound)
    wk = jax.random.uniform(kk, (D, D), jnp.float32, -bound, bound)
    wv = jax.random.uniform(kv, (D, D), jnp.float32, -bound, bound)
    wg = jax.random.uniform(kg, (D, D), jnp.float32, -bound, bound)
    # RMSNorm weights initialize to ones in the module; perturb them slightly
    # so the g_in-folding and lane-dense g_fin paths are genuinely exercised.
    g_in = 1.0 + 0.1 * jax.random.normal(kgi, (D,), jnp.float32)
    g_fin = 1.0 + 0.1 * jax.random.normal(kgf, (D,), jnp.float32)

    out = lightning_attention(x, wq, wk, wv, wg, g_in, g_fin, num_heads=H)
    out = jax.block_until_ready(out)

    ref = lightning_attention_ref(x, wq, wk, wv, wg, g_in, g_fin, num_heads=H)
    ref = jax.block_until_ready(ref)

    assert out.shape == (B, L, D)
    # bf16 MXU operands (f32 accumulate) + approx reciprocal -> loose tolerance
    assert jnp.allclose(out, ref, rtol=2e-2, atol=2e-2), "mismatch vs JAX reference"

    print("KERNEL_OK")
</pallas_src>

<mosaic_0001>
module attributes {stable_mosaic.version = 11 : i64} {
  func.func @_lightning_attention_kernel(%arg0: i32, %arg1: memref<64x128xf32, #tpu.memory_space<vmem>>, %arg2: memref<256x64xbf16, #tpu.memory_space<vmem>>, %arg3: memref<1x64xf32, #tpu.memory_space<vmem>>, %arg4: memref<128x64xf32, #tpu.memory_space<vmem>>) attributes {dimension_semantics = [#tpu.dimension_semantics<parallel>], iteration_bounds = array<i64: 1>, scalar_prefetch = 0 : i64, scratch_operands = 0 : i64, tpu.core_type = #tpu.core_type<tc>, window_params = [{transform_indices = @transform_0, window_bounds = array<i64: 64, 128>}, {pipeline_mode = #tpu.pipeline_mode<synchronous>, transform_indices = @transform_1, window_bounds = array<i64: 256, 64>}, {pipeline_mode = #tpu.pipeline_mode<synchronous>, transform_indices = @transform_2, window_bounds = array<i64: 1, 64>}, {transform_indices = @transform_3, window_bounds = array<i64: 128, 64>}]} {
    %c0 = arith.constant 0 : index
    %c0_0 = arith.constant 0 : index
    %0 = vector.load %arg1[%c0, %c0_0] : memref<64x128xf32, #tpu.memory_space<vmem>>, vector<64x128xf32>
    %1 = arith.mulf %0, %0 : vector<64x128xf32>
    %cst = arith.constant dense<0.000000e+00> : vector<128xf32>
    %2 = vector.multi_reduction <add>, %1, %cst [0] : vector<64x128xf32> to vector<128xf32>
    %3 = vector.shape_cast %2 : vector<128xf32> to vector<1x128xf32>
    %cst_1 = arith.constant 6.400000e+01 : f32
    %4 = vector.broadcast %cst_1 : f32 to vector<1x128xf32>
    %5 = arith.divf %3, %4 : vector<1x128xf32>
    %cst_2 = arith.constant 9.99999997E-7 : f32
    %6 = vector.broadcast %cst_2 : f32 to vector<1x128xf32>
    %7 = arith.addf %5, %6 : vector<1x128xf32>
    %8 = math.rsqrt %7 : vector<1x128xf32>
    %9 = vector.broadcast %8 : vector<1x128xf32> to vector<64x128xf32>
    %10 = arith.mulf %0, %9 : vector<64x128xf32>
    %11 = arith.truncf %10 : vector<64x128xf32> to vector<64x128xbf16>
    %c0_3 = arith.constant 0 : index
    %c0_4 = arith.constant 0 : index
    %12 = vector.load %arg2[%c0_3, %c0_4] : memref<256x64xbf16, #tpu.memory_space<vmem>>, vector<256x64xbf16>
    %cst_5 = arith.constant dense<0.000000e+00> : vector<256x128xf32>
    %13 = tpu.matmul %12, %11, %cst_5 {dimension_numbers = #tpu.dot_dimension_numbers<[1], [0], [0], [1], [0, 0, 1, 1], [], []>} : vector<256x64xbf16>, vector<64x128xbf16>, vector<256x128xf32> -> vector<256x128xf32>
    %14 = vector.extract_strided_slice %13 {offsets = [0, 0], sizes = [64, 128], strides = [1, 1]} : vector<256x128xf32> to vector<64x128xf32>
    %15 = arith.negf %14 : vector<64x128xf32>
    %16 = math.exp %15 : vector<64x128xf32>
    %cst_6 = arith.constant 1.000000e+00 : f32
    %17 = vector.broadcast %cst_6 : f32 to vector<64x128xf32>
    %18 = arith.addf %17, %16 : vector<64x128xf32>
    %19 = arith.divf %17, %18 : vector<64x128xf32>
    %20 = arith.mulf %14, %19 : vector<64x128xf32>
    %21 = vector.shape_cast %20 : vector<64x128xf32> to vector<8x8x128xf32>
    %22 = vector.extract_strided_slice %13 {offsets = [64, 0], sizes = [64, 128], strides = [1, 1]} : vector<256x128xf32> to vector<64x128xf32>
    %23 = arith.negf %22 : vector<64x128xf32>
    %24 = math.exp %23 : vector<64x128xf32>
    %cst_7 = arith.constant 1.000000e+00 : f32
    %25 = vector.broadcast %cst_7 : f32 to vector<64x128xf32>
    %26 = arith.addf %25, %24 : vector<64x128xf32>
    %27 = arith.divf %25, %26 : vector<64x128xf32>
    %28 = arith.mulf %22, %27 : vector<64x128xf32>
    %29 = vector.shape_cast %28 : vector<64x128xf32> to vector<8x8x128xf32>
    %30 = vector.extract_strided_slice %13 {offsets = [128, 0], sizes = [64, 128], strides = [1, 1]} : vector<256x128xf32> to vector<64x128xf32>
    %31 = arith.negf %30 : vector<64x128xf32>
    %32 = math.exp %31 : vector<64x128xf32>
    %cst_8 = arith.constant 1.000000e+00 : f32
    %33 = vector.broadcast %cst_8 : f32 to vector<64x128xf32>
    %34 = arith.addf %33, %32 : vector<64x128xf32>
    %35 = arith.divf %33, %34 : vector<64x128xf32>
    %36 = arith.mulf %30, %35 : vector<64x128xf32>
    %37 = vector.shape_cast %36 : vector<64x128xf32> to vector<8x8x128xf32>
    %38 = vector.extract_strided_slice %13 {offsets = [192, 0], sizes = [64, 128], strides = [1, 1]} : vector<256x128xf32> to vector<64x128xf32>
    %39 = vector.extract_strided_slice %29 {offsets = [0, 0, 0], sizes = [1, 8, 128], strides = [1, 1, 1]} : vector<8x8x128xf32> to vector<1x8x128xf32>
    %40 = vector.shape_cast %39 : vector<1x8x128xf32> to vector<8x128xf32>
    %41 = vector.shape_cast %40 : vector<8x128xf32> to vector<1x8x128xf32>
    %42 = vector.broadcast %41 : vector<1x8x128xf32> to vector<8x8x128xf32>
    %43 = arith.mulf %21, %42 : vector<8x8x128xf32>
    %cst_9 = arith.constant dense<0.000000e+00> : vector<8x128xf32>
    %44 = vector.multi_reduction <add>, %43, %cst_9 [1] : vector<8x8x128xf32> to vector<8x128xf32>
    %cst_10 = arith.constant 0.353553385 : f32
    %45 = vector.broadcast %cst_10 : f32 to vector<8x128xf32>
    %46 = arith.mulf %44, %45 : vector<8x128xf32>
    %47 = vector.extract_strided_slice %29 {offsets = [1, 0, 0], sizes = [1, 8, 128], strides = [1, 1, 1]} : vector<8x8x128xf32> to vector<1x8x128xf32>
    %48 = vector.shape_cast %47 : vector<1x8x128xf32> to vector<8x128xf32>
    %49 = vector.shape_cast %48 : vector<8x128xf32> to vector<1x8x128xf32>
    %50 = vector.broadcast %49 : vector<1x8x128xf32> to vector<8x8x128xf32>
    %51 = arith.mulf %21, %50 : vector<8x8x128xf32>
    %cst_11 = arith.constant dense<0.000000e+00> : vector<8x128xf32>
    %52 = vector.multi_reduction <add>, %51, %cst_11 [1] : vector<8x8x128xf32> to vector<8x128xf32>
    %cst_12 = arith.constant 0.353553385 : f32
    %53 = vector.broadcast %cst_12 : f32 to vector<8x128xf32>
    %54 = arith.mulf %52, %53 : vector<8x128xf32>
    %55 = vector.extract_strided_slice %29 {offsets = [2, 0, 0], sizes = [1, 8, 128], strides = [1, 1, 1]} : vector<8x8x128xf32> to vector<1x8x128xf32>
    %56 = vector.shape_cast %55 : vector<1x8x128xf32> to vector<8x128xf32>
    %57 = vector.shape_cast %56 : vector<8x128xf32> to vector<1x8x128xf32>
    %58 = vector.broadcast %57 : vector<1x8x128xf32> to vector<8x8x128xf32>
    %59 = arith.mulf %21, %58 : vector<8x8x128xf32>
    %cst_13 = arith.constant dense<0.000000e+00> : vector<8x128xf32>
    %60 = vector.multi_reduction <add>, %59, %cst_13 [1] : vector<8x8x128xf32> to vector<8x128xf32>
    %cst_14 = arith.constant 0.353553385 : f32
    %61 = vector.broadcast %cst_14 : f32 to vector<8x128xf32>
    %62 = arith.mulf %60, %61 : vector<8x128xf32>
    %63 = vector.extract_strided_slice %29 {offsets = [3, 0, 0], sizes = [1, 8, 128], strides = [1, 1, 1]} : vector<8x8x128xf32> to vector<1x8x128xf32>
    %64 = vector.shape_cast %63 : vector<1x8x128xf32> to vector<8x128xf32>
    %65 = vector.shape_cast %64 : vector<8x128xf32> to vector<1x8x128xf32>
    %66 = vector.broadcast %65 : vector<1x8x128xf32> to vector<8x8x128xf32>
    %67 = arith.mulf %21, %66 : vector<8x8x128xf32>
    %cst_15 = arith.constant dense<0.000000e+00> : vector<8x128xf32>
    %68 = vector.multi_reduction <add>, %67, %cst_15 [1] : vector<8x8x128xf32> to vector<8x128xf32>
    %cst_16 = arith.constant 0.353553385 : f32
    %69 = vector.broadcast %cst_16 : f32 to vector<8x128xf32>
    %70 = arith.mulf %68, %69 : vector<8x128xf32>
    %71 = vector.extract_strided_slice %29 {offsets = [4, 0, 0], sizes = [1, 8, 128], strides = [1, 1, 1]} : vector<8x8x128xf32> to vector<1x8x128xf32>
    %72 = vector.shape_cast %71 : vector<1x8x128xf32> to vector<8x128xf32>
    %73 = vector.shape_cast %72 : vector<8x128xf32> to vector<1x8x128xf32>
    %74 = vector.broadcast %73 : vector<1x8x128xf32> to vector<8x8x128xf32>
    %75 = arith.mulf %21, %74 : vector<8x8x128xf32>
    %cst_17 = arith.constant dense<0.000000e+00> : vector<8x128xf32>
    %76 = vector.multi_reduction <add>, %75, %cst_17 [1] : vector<8x8x128xf32> to vector<8x128xf32>
    %cst_18 = arith.constant 0.353553385 : f32
    %77 = vector.broadcast %cst_18 : f32 to vector<8x128xf32>
    %78 = arith.mulf %76, %77 : vector<8x128xf32>
    %79 = vector.extract_strided_slice %29 {offsets = [5, 0, 0], sizes = [1, 8, 128], strides = [1, 1, 1]} : vector<8x8x128xf32> to vector<1x8x128xf32>
    %80 = vector.shape_cast %79 : vector<1x8x128xf32> to vector<8x128xf32>
    %81 = vector.shape_cast %80 : vector<8x128xf32> to vector<1x8x128xf32>
    %82 = vector.broadcast %81 : vector<1x8x128xf32> to vector<8x8x128xf32>
    %83 = arith.mulf %21, %82 : vector<8x8x128xf32>
    %cst_19 = arith.constant dense<0.000000e+00> : vector<8x128xf32>
    %84 = vector.multi_reduction <add>, %83, %cst_19 [1] : vector<8x8x128xf32> to vector<8x128xf32>
    %cst_20 = arith.constant 0.353553385 : f32
    %85 = vector.broadcast %cst_20 : f32 to vector<8x128xf32>
    %86 = arith.mulf %84, %85 : vector<8x128xf32>
    %87 = vector.extract_strided_slice %29 {offsets = [6, 0, 0], sizes = [1, 8, 128], strides = [1, 1, 1]} : vector<8x8x128xf32> to vector<1x8x128xf32>
    %88 = vector.shape_cast %87 : vector<1x8x128xf32> to vector<8x128xf32>
    %89 = vector.shape_cast %88 : vector<8x128xf32> to vector<1x8x128xf32>
    %90 = vector.broadcast %89 : vector<1x8x128xf32> to vector<8x8x128xf32>
    %91 = arith.mulf %21, %90 : vector<8x8x128xf32>
    %cst_21 = arith.constant dense<0.000000e+00> : vector<8x128xf32>
    %92 = vector.multi_reduction <add>, %91, %cst_21 [1] : vector<8x8x128xf32> to vector<8x128xf32>
    %cst_22 = arith.constant 0.353553385 : f32
    %93 = vector.broadcast %cst_22 : f32 to vector<8x128xf32>
    %94 = arith.mulf %92, %93 : vector<8x128xf32>
    %95 = vector.extract_strided_slice %29 {offsets = [7, 0, 0], sizes = [1, 8, 128], strides = [1, 1, 1]} : vector<8x8x128xf32> to vector<1x8x128xf32>
    %96 = vector.shape_cast %95 : vector<1x8x128xf32> to vector<8x128xf32>
    %97 = vector.shape_cast %96 : vector<8x128xf32> to vector<1x8x128xf32>
    %98 = vector.broadcast %97 : vector<1x8x128xf32> to vector<8x8x128xf32>
    %99 = arith.mulf %21, %98 : vector<8x8x128xf32>
    %cst_23 = arith.constant dense<0.000000e+00> : vector<8x128xf32>
    %100 = vector.multi_reduction <add>, %99, %cst_23 [1] : vector<8x8x128xf32> to vector<8x128xf32>
    %cst_24 = arith.constant 0.353553385 : f32
    %101 = vector.broadcast %cst_24 : f32 to vector<8x128xf32>
    %102 = arith.mulf %100, %101 : vector<8x128xf32>
    %103 = vector.shape_cast %46 : vector<8x128xf32> to vector<8x1x128xf32>
    %104 = vector.shape_cast %54 : vector<8x128xf32> to vector<8x1x128xf32>
    %105 = vector.shape_cast %62 : vector<8x128xf32> to vector<8x1x128xf32>
    %106 = vector.shape_cast %70 : vector<8x128xf32> to vector<8x1x128xf32>
    %107 = vector.shape_cast %78 : vector<8x128xf32> to vector<8x1x128xf32>
    %108 = vector.shape_cast %86 : vector<8x128xf32> to vector<8x1x128xf32>
    %109 = vector.shape_cast %94 : vector<8x128xf32> to vector<8x1x128xf32>
    %110 = vector.shape_cast %102 : vector<8x128xf32> to vector<8x1x128xf32>
    %111 = tpu.concatenate %103, %104, %105, %106, %107, %108, %109, %110 in 1 : vector<8x1x128xf32>, vector<8x1x128xf32>, vector<8x1x128xf32>, vector<8x1x128xf32>, vector<8x1x128xf32>, vector<8x1x128xf32>, vector<8x1x128xf32>, vector<8x1x128xf32> -> vector<8x8x128xf32>
    %cst_25 = arith.constant dense<0xFF800000> : vector<8x128xf32>
    %112 = vector.multi_reduction <maximumf>, %111, %cst_25 [1] : vector<8x8x128xf32> to vector<8x128xf32>
    %113 = vector.shape_cast %112 : vector<8x128xf32> to vector<8x1x128xf32>
    %114 = vector.broadcast %113 : vector<8x1x128xf32> to vector<8x8x128xf32>
    %115 = arith.subf %111, %114 : vector<8x8x128xf32>
    %116 = math.exp %115 : vector<8x8x128xf32>
    %cst_26 = arith.constant dense<0.000000e+00> : vector<8x128xf32>
    %117 = vector.multi_reduction <add>, %116, %cst_26 [1] : vector<8x8x128xf32> to vector<8x128xf32>
    %118 = vector.shape_cast %117 : vector<8x128xf32> to vector<8x1x128xf32>
    %119 = tpu.reciprocal %118 {approx = true} : vector<8x1x128xf32> -> vector<8x1x128xf32>
    %120 = vector.broadcast %119 : vector<8x1x128xf32> to vector<8x8x128xf32>
    %121 = arith.mulf %116, %120 : vector<8x8x128xf32>
    %cst_27 = arith.constant 0.000000e+00 : f32
    %122 = vector.broadcast %cst_27 : f32 to vector<8x8x128xf32>
    %123 = vector.extract_strided_slice %121 {offsets = [0, 0, 0], sizes = [8, 1, 128], strides = [1, 1, 1]} : vector<8x8x128xf32> to vector<8x1x128xf32>
    %124 = vector.shape_cast %123 : vector<8x1x128xf32> to vector<8x128xf32>
    %125 = vector.shape_cast %124 : vector<8x128xf32> to vector<8x1x128xf32>
    %126 = vector.extract_strided_slice %37 {offsets = [0, 0, 0], sizes = [1, 8, 128], strides = [1, 1, 1]} : vector<8x8x128xf32> to vector<1x8x128xf32>
    %127 = vector.shape_cast %126 : vector<1x8x128xf32> to vector<8x128xf32>
    %128 = vector.shape_cast %127 : vector<8x128xf32> to vector<1x8x128xf32>
    %129 = vector.broadcast %125 : vector<8x1x128xf32> to vector<8x8x128xf32>
    %130 = vector.broadcast %128 : vector<1x8x128xf32> to vector<8x8x128xf32>
    %131 = arith.mulf %129, %130 : vector<8x8x128xf32>
    %132 = arith.addf %122, %131 : vector<8x8x128xf32>
    %133 = vector.extract_strided_slice %121 {offsets = [0, 1, 0], sizes = [8, 1, 128], strides = [1, 1, 1]} : vector<8x8x128xf32> to vector<8x1x128xf32>
    %134 = vector.shape_cast %133 : vector<8x1x128xf32> to vector<8x128xf32>
    %135 = vector.shape_cast %134 : vector<8x128xf32> to vector<8x1x128xf32>
    %136 = vector.extract_strided_slice %37 {offsets = [1, 0, 0], sizes = [1, 8, 128], strides = [1, 1, 1]} : vector<8x8x128xf32> to vector<1x8x128xf32>
    %137 = vector.shape_cast %136 : vector<1x8x128xf32> to vector<8x128xf32>
    %138 = vector.shape_cast %137 : vector<8x128xf32> to vector<1x8x128xf32>
    %139 = vector.broadcast %135 : vector<8x1x128xf32> to vector<8x8x128xf32>
    %140 = vector.broadcast %138 : vector<1x8x128xf32> to vector<8x8x128xf32>
    %141 = arith.mulf %139, %140 : vector<8x8x128xf32>
    %142 = arith.addf %132, %141 : vector<8x8x128xf32>
    %143 = vector.extract_strided_slice %121 {offsets = [0, 2, 0], sizes = [8, 1, 128], strides = [1, 1, 1]} : vector<8x8x128xf32> to vector<8x1x128xf32>
    %144 = vector.shape_cast %143 : vector<8x1x128xf32> to vector<8x128xf32>
    %145 = vector.shape_cast %144 : vector<8x128xf32> to vector<8x1x128xf32>
    %146 = vector.extract_strided_slice %37 {offsets = [2, 0, 0], sizes = [1, 8, 128], strides = [1, 1, 1]} : vector<8x8x128xf32> to vector<1x8x128xf32>
    %147 = vector.shape_cast %146 : vector<1x8x128xf32> to vector<8x128xf32>
    %148 = vector.shape_cast %147 : vector<8x128xf32> to vector<1x8x128xf32>
    %149 = vector.broadcast %145 : vector<8x1x128xf32> to vector<8x8x128xf32>
    %150 = vector.broadcast %148 : vector<1x8x128xf32> to vector<8x8x128xf32>
    %151 = arith.mulf %149, %150 : vector<8x8x128xf32>
    %152 = arith.addf %142, %151 : vector<8x8x128xf32>
    %153 = vector.extract_strided_slice %121 {offsets = [0, 3, 0], sizes = [8, 1, 128], strides = [1, 1, 1]} : vector<8x8x128xf32> to vector<8x1x128xf32>
    %154 = vector.shape_cast %153 : vector<8x1x128xf32> to vector<8x128xf32>
    %155 = vector.shape_cast %154 : vector<8x128xf32> to vector<8x1x128xf32>
    %156 = vector.extract_strided_slice %37 {offsets = [3, 0, 0], sizes = [1, 8, 128], strides = [1, 1, 1]} : vector<8x8x128xf32> to vector<1x8x128xf32>
    %157 = vector.shape_cast %156 : vector<1x8x128xf32> to vector<8x128xf32>
    %158 = vector.shape_cast %157 : vector<8x128xf32> to vector<1x8x128xf32>
    %159 = vector.broadcast %155 : vector<8x1x128xf32> to vector<8x8x128xf32>
    %160 = vector.broadcast %158 : vector<1x8x128xf32> to vector<8x8x128xf32>
    %161 = arith.mulf %159, %160 : vector<8x8x128xf32>
    %162 = arith.addf %152, %161 : vector<8x8x128xf32>
    %163 = vector.extract_strided_slice %121 {offsets = [0, 4, 0], sizes = [8, 1, 128], strides = [1, 1, 1]} : vector<8x8x128xf32> to vector<8x1x128xf32>
    %164 = vector.shape_cast %163 : vector<8x1x128xf32> to vector<8x128xf32>
    %165 = vector.shape_cast %164 : vector<8x128xf32> to vector<8x1x128xf32>
    %166 = vector.extract_strided_slice %37 {offsets = [4, 0, 0], sizes = [1, 8, 128], strides = [1, 1, 1]} : vector<8x8x128xf32> to vector<1x8x128xf32>
    %167 = vector.shape_cast %166 : vector<1x8x128xf32> to vector<8x128xf32>
    %168 = vector.shape_cast %167 : vector<8x128xf32> to vector<1x8x128xf32>
    %169 = vector.broadcast %165 : vector<8x1x128xf32> to vector<8x8x128xf32>
    %170 = vector.broadcast %168 : vector<1x8x128xf32> to vector<8x8x128xf32>
    %171 = arith.mulf %169, %170 : vector<8x8x128xf32>
    %172 = arith.addf %162, %171 : vector<8x8x128xf32>
    %173 = vector.extract_strided_slice %121 {offsets = [0, 5, 0], sizes = [8, 1, 128], strides = [1, 1, 1]} : vector<8x8x128xf32> to vector<8x1x128xf32>
    %174 = vector.shape_cast %173 : vector<8x1x128xf32> to vector<8x128xf32>
    %175 = vector.shape_cast %174 : vector<8x128xf32> to vector<8x1x128xf32>
    %176 = vector.extract_strided_slice %37 {offsets = [5, 0, 0], sizes = [1, 8, 128], strides = [1, 1, 1]} : vector<8x8x128xf32> to vector<1x8x128xf32>
    %177 = vector.shape_cast %176 : vector<1x8x128xf32> to vector<8x128xf32>
    %178 = vector.shape_cast %177 : vector<8x128xf32> to vector<1x8x128xf32>
    %179 = vector.broadcast %175 : vector<8x1x128xf32> to vector<8x8x128xf32>
    %180 = vector.broadcast %178 : vector<1x8x128xf32> to vector<8x8x128xf32>
    %181 = arith.mulf %179, %180 : vector<8x8x128xf32>
    %182 = arith.addf %172, %181 : vector<8x8x128xf32>
    %183 = vector.extract_strided_slice %121 {offsets = [0, 6, 0], sizes = [8, 1, 128], strides = [1, 1, 1]} : vector<8x8x128xf32> to vector<8x1x128xf32>
    %184 = vector.shape_cast %183 : vector<8x1x128xf32> to vector<8x128xf32>
    %185 = vector.shape_cast %184 : vector<8x128xf32> to vector<8x1x128xf32>
    %186 = vector.extract_strided_slice %37 {offsets = [6, 0, 0], sizes = [1, 8, 128], strides = [1, 1, 1]} : vector<8x8x128xf32> to vector<1x8x128xf32>
    %187 = vector.shape_cast %186 : vector<1x8x128xf32> to vector<8x128xf32>
    %188 = vector.shape_cast %187 : vector<8x128xf32> to vector<1x8x128xf32>
    %189 = vector.broadcast %185 : vector<8x1x128xf32> to vector<8x8x128xf32>
    %190 = vector.broadcast %188 : vector<1x8x128xf32> to vector<8x8x128xf32>
    %191 = arith.mulf %189, %190 : vector<8x8x128xf32>
    %192 = arith.addf %182, %191 : vector<8x8x128xf32>
    %193 = vector.extract_strided_slice %121 {offsets = [0, 7, 0], sizes = [8, 1, 128], strides = [1, 1, 1]} : vector<8x8x128xf32> to vector<8x1x128xf32>
    %194 = vector.shape_cast %193 : vector<8x1x128xf32> to vector<8x128xf32>
    %195 = vector.shape_cast %194 : vector<8x128xf32> to vector<8x1x128xf32>
    %196 = vector.extract_strided_slice %37 {offsets = [7, 0, 0], sizes = [1, 8, 128], strides = [1, 1, 1]} : vector<8x8x128xf32> to vector<1x8x128xf32>
    %197 = vector.shape_cast %196 : vector<1x8x128xf32> to vector<8x128xf32>
    %198 = vector.shape_cast %197 : vector<8x128xf32> to vector<1x8x128xf32>
    %199 = vector.broadcast %195 : vector<8x1x128xf32> to vector<8x8x128xf32>
    %200 = vector.broadcast %198 : vector<1x8x128xf32> to vector<8x8x128xf32>
    %201 = arith.mulf %199, %200 : vector<8x8x128xf32>
    %202 = arith.addf %192, %201 : vector<8x8x128xf32>
    %203 = vector.shape_cast %202 : vector<8x8x128xf32> to vector<64x128xf32>
    %204 = arith.negf %38 : vector<64x128xf32>
    %205 = math.exp %204 : vector<64x128xf32>
    %cst_28 = arith.constant 1.000000e+00 : f32
    %206 = vector.broadcast %cst_28 : f32 to vector<64x128xf32>
    %207 = arith.addf %206, %205 : vector<64x128xf32>
    %208 = arith.divf %206, %207 : vector<64x128xf32>
    %209 = arith.mulf %203, %208 : vector<64x128xf32>
    %210 = arith.mulf %209, %209 : vector<64x128xf32>
    %cst_29 = arith.constant dense<0.000000e+00> : vector<128xf32>
    %211 = vector.multi_reduction <add>, %210, %cst_29 [0] : vector<64x128xf32> to vector<128xf32>
    %212 = vector.shape_cast %211 : vector<128xf32> to vector<1x128xf32>
    %cst_30 = arith.constant 6.400000e+01 : f32
    %213 = vector.broadcast %cst_30 : f32 to vector<1x128xf32>
    %214 = arith.divf %212, %213 : vector<1x128xf32>
    %cst_31 = arith.constant 9.99999997E-7 : f32
    %215 = vector.broadcast %cst_31 : f32 to vector<1x128xf32>
    %216 = arith.addf %214, %215 : vector<1x128xf32>
    %217 = math.rsqrt %216 : vector<1x128xf32>
    %218 = vector.broadcast %217 : vector<1x128xf32> to vector<64x128xf32>
    %219 = arith.mulf %209, %218 : vector<64x128xf32>
    %220 = tpu.transpose %219, [1, 0] : vector<64x128xf32> -> vector<128x64xf32>
    %c0_32 = arith.constant 0 : index
    %c0_33 = arith.constant 0 : index
    %221 = vector.load %arg3[%c0_32, %c0_33] : memref<1x64xf32, #tpu.memory_space<vmem>>, vector<1x64xf32>
    %222 = vector.broadcast %221 : vector<1x64xf32> to vector<128x64xf32>
    %223 = arith.mulf %220, %222 : vector<128x64xf32>
    %c0_34 = arith.constant 0 : index
    %c0_35 = arith.constant 0 : index
    %224 = vector.load %arg4[%c0_34, %c0_35] : memref<128x64xf32, #tpu.memory_space<vmem>>, vector<128x64xf32>
    tpu.vector_store %arg4[%c0_34, %c0_35], %223 {strides = array<i32>} : memref<128x64xf32, #tpu.memory_space<vmem>>, vector<128x64xf32>,
    return
  }
  func.func @transform_0(%arg0: i32) -> (i32, i32) {
    %c0_i32 = arith.constant 0 : i32
    %c0_i32_0 = arith.constant 0 : i32
    return %c0_i32, %arg0 : i32, i32
  }
  func.func @transform_1(%arg0: i32) -> (i32, i32) {
    %c0_i32 = arith.constant 0 : i32
    %c0_i32_0 = arith.constant 0 : i32
    %c0_i32_1 = arith.constant 0 : i32
    return %c0_i32, %c0_i32_0 : i32, i32
  }
  func.func @transform_2(%arg0: i32) -> (i32, i32) {
    %c0_i32 = arith.constant 0 : i32
    %c0_i32_0 = arith.constant 0 : i32
    %c0_i32_1 = arith.constant 0 : i32
    return %c0_i32, %c0_i32_0 : i32, i32
  }
  func.func @transform_3(%arg0: i32) -> (i32, i32) {
    %c0_i32 = arith.constant 0 : i32
    %c0_i32_0 = arith.constant 0 : i32
    return %arg0, %c0_i32 : i32, i32
  }
}

module attributes {stable_mosaic.version = 11 : i64} {
  func.func @_lightning_attention_kernel(%arg0: i32, %arg1: memref<64x128xf32, #tpu.memory_space<vmem>>, %arg2: memref<256x64xbf16, #tpu.memory_space<vmem>>, %arg3: memref<1x64xf32, #tpu.memory_space<vmem>>, %arg4: memref<128x64xf32, #tpu.memory_space<vmem>>) attributes {dimension_semantics = [#tpu.dimension_semantics<parallel>], iteration_bounds = array<i64: 1>, scalar_prefetch = 0 : i64, scratch_operands = 0 : i64, tpu.core_type = #tpu.core_type<tc>, window_params = [{transform_indices = @transform_0, window_bounds = array<i64: 64, 128>}, {pipeline_mode = #tpu.pipeline_mode<synchronous>, transform_indices = @transform_1, window_bounds = array<i64: 256, 64>}, {pipeline_mode = #tpu.pipeline_mode<synchronous>, transform_indices = @transform_2, window_bounds = array<i64: 1, 64>}, {transform_indices = @transform_3, window_bounds = array<i64: 128, 64>}]} {
    %c0 = arith.constant 0 : index
    %c0_0 = arith.constant 0 : index
    %0 = vector.load %arg1[%c0, %c0_0] : memref<64x128xf32, #tpu.memory_space<vmem>>, vector<64x128xf32>
    %1 = arith.mulf %0, %0 : vector<64x128xf32>
    %cst = arith.constant dense<0.000000e+00> : vector<128xf32>
    %2 = vector.multi_reduction <add>, %1, %cst [0] : vector<64x128xf32> to vector<128xf32>
    %3 = vector.shape_cast %2 : vector<128xf32> to vector<1x128xf32>
    %cst_1 = arith.constant 6.400000e+01 : f32
    %4 = vector.broadcast %cst_1 : f32 to vector<1x128xf32>
    %5 = arith.divf %3, %4 : vector<1x128xf32>
    %cst_2 = arith.constant 9.99999997E-7 : f32
    %6 = vector.broadcast %cst_2 : f32 to vector<1x128xf32>
    %7 = arith.addf %5, %6 : vector<1x128xf32>
    %8 = math.rsqrt %7 : vector<1x128xf32>
    %9 = vector.broadcast %8 : vector<1x128xf32> to vector<64x128xf32>
    %10 = arith.mulf %0, %9 : vector<64x128xf32>
    %11 = arith.truncf %10 : vector<64x128xf32> to vector<64x128xbf16>
    %c0_3 = arith.constant 0 : index
    %c0_4 = arith.constant 0 : index
    %12 = vector.load %arg2[%c0_3, %c0_4] : memref<256x64xbf16, #tpu.memory_space<vmem>>, vector<256x64xbf16>
    %cst_5 = arith.constant dense<0.000000e+00> : vector<256x128xf32>
    %13 = tpu.matmul %12, %11, %cst_5 {dimension_numbers = #tpu.dot_dimension_numbers<[1], [0], [0], [1], [0, 0, 1, 1], [], []>} : vector<256x64xbf16>, vector<64x128xbf16>, vector<256x128xf32> -> vector<256x128xf32>
    %14 = vector.extract_strided_slice %13 {offsets = [0, 0], sizes = [64, 128], strides = [1, 1]} : vector<256x128xf32> to vector<64x128xf32>
    %15 = arith.negf %14 : vector<64x128xf32>
    %16 = math.exp %15 : vector<64x128xf32>
    %cst_6 = arith.constant 1.000000e+00 : f32
    %17 = vector.broadcast %cst_6 : f32 to vector<64x128xf32>
    %18 = arith.addf %17, %16 : vector<64x128xf32>
    %19 = arith.divf %17, %18 : vector<64x128xf32>
    %20 = arith.mulf %14, %19 : vector<64x128xf32>
    %21 = vector.shape_cast %20 : vector<64x128xf32> to vector<8x8x128xf32>
    %22 = vector.extract_strided_slice %13 {offsets = [64, 0], sizes = [64, 128], strides = [1, 1]} : vector<256x128xf32> to vector<64x128xf32>
    %23 = arith.negf %22 : vector<64x128xf32>
    %24 = math.exp %23 : vector<64x128xf32>
    %cst_7 = arith.constant 1.000000e+00 : f32
    %25 = vector.broadcast %cst_7 : f32 to vector<64x128xf32>
    %26 = arith.addf %25, %24 : vector<64x128xf32>
    %27 = arith.divf %25, %26 : vector<64x128xf32>
    %28 = arith.mulf %22, %27 : vector<64x128xf32>
    %29 = vector.shape_cast %28 : vector<64x128xf32> to vector<8x8x128xf32>
    %30 = vector.extract_strided_slice %13 {offsets = [128, 0], sizes = [64, 128], strides = [1, 1]} : vector<256x128xf32> to vector<64x128xf32>
    %31 = arith.negf %30 : vector<64x128xf32>
    %32 = math.exp %31 : vector<64x128xf32>
    %cst_8 = arith.constant 1.000000e+00 : f32
    %33 = vector.broadcast %cst_8 : f32 to vector<64x128xf32>
    %34 = arith.addf %33, %32 : vector<64x128xf32>
    %35 = arith.divf %33, %34 : vector<64x128xf32>
    %36 = arith.mulf %30, %35 : vector<64x128xf32>
    %37 = vector.shape_cast %36 : vector<64x128xf32> to vector<8x8x128xf32>
    %38 = vector.extract_strided_slice %13 {offsets = [192, 0], sizes = [64, 128], strides = [1, 1]} : vector<256x128xf32> to vector<64x128xf32>
    %39 = vector.extract_strided_slice %29 {offsets = [0, 0, 0], sizes = [1, 8, 128], strides = [1, 1, 1]} : vector<8x8x128xf32> to vector<1x8x128xf32>
    %40 = vector.shape_cast %39 : vector<1x8x128xf32> to vector<8x128xf32>
    %41 = vector.shape_cast %40 : vector<8x128xf32> to vector<1x8x128xf32>
    %42 = vector.broadcast %41 : vector<1x8x128xf32> to vector<8x8x128xf32>
    %43 = arith.mulf %21, %42 : vector<8x8x128xf32>
    %cst_9 = arith.constant dense<0.000000e+00> : vector<8x128xf32>
    %44 = vector.multi_reduction <add>, %43, %cst_9 [1] : vector<8x8x128xf32> to vector<8x128xf32>
    %cst_10 = arith.constant 0.353553385 : f32
    %45 = vector.broadcast %cst_10 : f32 to vector<8x128xf32>
    %46 = arith.mulf %44, %45 : vector<8x128xf32>
    %47 = vector.extract_strided_slice %29 {offsets = [1, 0, 0], sizes = [1, 8, 128], strides = [1, 1, 1]} : vector<8x8x128xf32> to vector<1x8x128xf32>
    %48 = vector.shape_cast %47 : vector<1x8x128xf32> to vector<8x128xf32>
    %49 = vector.shape_cast %48 : vector<8x128xf32> to vector<1x8x128xf32>
    %50 = vector.broadcast %49 : vector<1x8x128xf32> to vector<8x8x128xf32>
    %51 = arith.mulf %21, %50 : vector<8x8x128xf32>
    %cst_11 = arith.constant dense<0.000000e+00> : vector<8x128xf32>
    %52 = vector.multi_reduction <add>, %51, %cst_11 [1] : vector<8x8x128xf32> to vector<8x128xf32>
    %cst_12 = arith.constant 0.353553385 : f32
    %53 = vector.broadcast %cst_12 : f32 to vector<8x128xf32>
    %54 = arith.mulf %52, %53 : vector<8x128xf32>
    %55 = vector.extract_strided_slice %29 {offsets = [2, 0, 0], sizes = [1, 8, 128], strides = [1, 1, 1]} : vector<8x8x128xf32> to vector<1x8x128xf32>
    %56 = vector.shape_cast %55 : vector<1x8x128xf32> to vector<8x128xf32>
    %57 = vector.shape_cast %56 : vector<8x128xf32> to vector<1x8x128xf32>
    %58 = vector.broadcast %57 : vector<1x8x128xf32> to vector<8x8x128xf32>
    %59 = arith.mulf %21, %58 : vector<8x8x128xf32>
    %cst_13 = arith.constant dense<0.000000e+00> : vector<8x128xf32>
    %60 = vector.multi_reduction <add>, %59, %cst_13 [1] : vector<8x8x128xf32> to vector<8x128xf32>
    %cst_14 = arith.constant 0.353553385 : f32
    %61 = vector.broadcast %cst_14 : f32 to vector<8x128xf32>
    %62 = arith.mulf %60, %61 : vector<8x128xf32>
    %63 = vector.extract_strided_slice %29 {offsets = [3, 0, 0], sizes = [1, 8, 128], strides = [1, 1, 1]} : vector<8x8x128xf32> to vector<1x8x128xf32>
    %64 = vector.shape_cast %63 : vector<1x8x128xf32> to vector<8x128xf32>
    %65 = vector.shape_cast %64 : vector<8x128xf32> to vector<1x8x128xf32>
    %66 = vector.broadcast %65 : vector<1x8x128xf32> to vector<8x8x128xf32>
    %67 = arith.mulf %21, %66 : vector<8x8x128xf32>
    %cst_15 = arith.constant dense<0.000000e+00> : vector<8x128xf32>
    %68 = vector.multi_reduction <add>, %67, %cst_15 [1] : vector<8x8x128xf32> to vector<8x128xf32>
    %cst_16 = arith.constant 0.353553385 : f32
    %69 = vector.broadcast %cst_16 : f32 to vector<8x128xf32>
    %70 = arith.mulf %68, %69 : vector<8x128xf32>
    %71 = vector.extract_strided_slice %29 {offsets = [4, 0, 0], sizes = [1, 8, 128], strides = [1, 1, 1]} : vector<8x8x128xf32> to vector<1x8x128xf32>
    %72 = vector.shape_cast %71 : vector<1x8x128xf32> to vector<8x128xf32>
    %73 = vector.shape_cast %72 : vector<8x128xf32> to vector<1x8x128xf32>
    %74 = vector.broadcast %73 : vector<1x8x128xf32> to vector<8x8x128xf32>
    %75 = arith.mulf %21, %74 : vector<8x8x128xf32>
    %cst_17 = arith.constant dense<0.000000e+00> : vector<8x128xf32>
    %76 = vector.multi_reduction <add>, %75, %cst_17 [1] : vector<8x8x128xf32> to vector<8x128xf32>
    %cst_18 = arith.constant 0.353553385 : f32
    %77 = vector.broadcast %cst_18 : f32 to vector<8x128xf32>
    %78 = arith.mulf %76, %77 : vector<8x128xf32>
    %79 = vector.extract_strided_slice %29 {offsets = [5, 0, 0], sizes = [1, 8, 128], strides = [1, 1, 1]} : vector<8x8x128xf32> to vector<1x8x128xf32>
    %80 = vector.shape_cast %79 : vector<1x8x128xf32> to vector<8x128xf32>
    %81 = vector.shape_cast %80 : vector<8x128xf32> to vector<1x8x128xf32>
    %82 = vector.broadcast %81 : vector<1x8x128xf32> to vector<8x8x128xf32>
    %83 = arith.mulf %21, %82 : vector<8x8x128xf32>
    %cst_19 = arith.constant dense<0.000000e+00> : vector<8x128xf32>
    %84 = vector.multi_reduction <add>, %83, %cst_19 [1] : vector<8x8x128xf32> to vector<8x128xf32>
    %cst_20 = arith.constant 0.353553385 : f32
    %85 = vector.broadcast %cst_20 : f32 to vector<8x128xf32>
    %86 = arith.mulf %84, %85 : vector<8x128xf32>
    %87 = vector.extract_strided_slice %29 {offsets = [6, 0, 0], sizes = [1, 8, 128], strides = [1, 1, 1]} : vector<8x8x128xf32> to vector<1x8x128xf32>
    %88 = vector.shape_cast %87 : vector<1x8x128xf32> to vector<8x128xf32>
    %89 = vector.shape_cast %88 : vector<8x128xf32> to vector<1x8x128xf32>
    %90 = vector.broadcast %89 : vector<1x8x128xf32> to vector<8x8x128xf32>
    %91 = arith.mulf %21, %90 : vector<8x8x128xf32>
    %cst_21 = arith.constant dense<0.000000e+00> : vector<8x128xf32>
    %92 = vector.multi_reduction <add>, %91, %cst_21 [1] : vector<8x8x128xf32> to vector<8x128xf32>
    %cst_22 = arith.constant 0.353553385 : f32
    %93 = vector.broadcast %cst_22 : f32 to vector<8x128xf32>
    %94 = arith.mulf %92, %93 : vector<8x128xf32>
    %95 = vector.extract_strided_slice %29 {offsets = [7, 0, 0], sizes = [1, 8, 128], strides = [1, 1, 1]} : vector<8x8x128xf32> to vector<1x8x128xf32>
    %96 = vector.shape_cast %95 : vector<1x8x128xf32> to vector<8x128xf32>
    %97 = vector.shape_cast %96 : vector<8x128xf32> to vector<1x8x128xf32>
    %98 = vector.broadcast %97 : vector<1x8x128xf32> to vector<8x8x128xf32>
    %99 = arith.mulf %21, %98 : vector<8x8x128xf32>
    %cst_23 = arith.constant dense<0.000000e+00> : vector<8x128xf32>
    %100 = vector.multi_reduction <add>, %99, %cst_23 [1] : vector<8x8x128xf32> to vector<8x128xf32>
    %cst_24 = arith.constant 0.353553385 : f32
    %101 = vector.broadcast %cst_24 : f32 to vector<8x128xf32>
    %102 = arith.mulf %100, %101 : vector<8x128xf32>
    %103 = vector.shape_cast %46 : vector<8x128xf32> to vector<8x1x128xf32>
    %104 = vector.shape_cast %54 : vector<8x128xf32> to vector<8x1x128xf32>
    %105 = vector.shape_cast %62 : vector<8x128xf32> to vector<8x1x128xf32>
    %106 = vector.shape_cast %70 : vector<8x128xf32> to vector<8x1x128xf32>
    %107 = vector.shape_cast %78 : vector<8x128xf32> to vector<8x1x128xf32>
    %108 = vector.shape_cast %86 : vector<8x128xf32> to vector<8x1x128xf32>
    %109 = vector.shape_cast %94 : vector<8x128xf32> to vector<8x1x128xf32>
    %110 = vector.shape_cast %102 : vector<8x128xf32> to vector<8x1x128xf32>
    %111 = tpu.concatenate %103, %104, %105, %106, %107, %108, %109, %110 in 1 : vector<8x1x128xf32>, vector<8x1x128xf32>, vector<8x1x128xf32>, vector<8x1x128xf32>, vector<8x1x128xf32>, vector<8x1x128xf32>, vector<8x1x128xf32>, vector<8x1x128xf32> -> vector<8x8x128xf32>
    %cst_25 = arith.constant dense<0xFF800000> : vector<8x128xf32>
    %112 = vector.multi_reduction <maximumf>, %111, %cst_25 [1] : vector<8x8x128xf32> to vector<8x128xf32>
    %113 = vector.shape_cast %112 : vector<8x128xf32> to vector<8x1x128xf32>
    %114 = vector.broadcast %113 : vector<8x1x128xf32> to vector<8x8x128xf32>
    %115 = arith.subf %111, %114 : vector<8x8x128xf32>
    %116 = math.exp %115 : vector<8x8x128xf32>
    %cst_26 = arith.constant dense<0.000000e+00> : vector<8x128xf32>
    %117 = vector.multi_reduction <add>, %116, %cst_26 [1] : vector<8x8x128xf32> to vector<8x128xf32>
    %118 = vector.shape_cast %117 : vector<8x128xf32> to vector<8x1x128xf32>
    %119 = tpu.reciprocal %118 {approx = true} : vector<8x1x128xf32> -> vector<8x1x128xf32>
    %120 = vector.broadcast %119 : vector<8x1x128xf32> to vector<8x8x128xf32>
    %121 = arith.mulf %116, %120 : vector<8x8x128xf32>
    %cst_27 = arith.constant 0.000000e+00 : f32
    %122 = vector.broadcast %cst_27 : f32 to vector<8x8x128xf32>
    %123 = vector.extract_strided_slice %121 {offsets = [0, 0, 0], sizes = [8, 1, 128], strides = [1, 1, 1]} : vector<8x8x128xf32> to vector<8x1x128xf32>
    %124 = vector.shape_cast %123 : vector<8x1x128xf32> to vector<8x128xf32>
    %125 = vector.shape_cast %124 : vector<8x128xf32> to vector<8x1x128xf32>
    %126 = vector.extract_strided_slice %37 {offsets = [0, 0, 0], sizes = [1, 8, 128], strides = [1, 1, 1]} : vector<8x8x128xf32> to vector<1x8x128xf32>
    %127 = vector.shape_cast %126 : vector<1x8x128xf32> to vector<8x128xf32>
    %128 = vector.shape_cast %127 : vector<8x128xf32> to vector<1x8x128xf32>
    %129 = vector.broadcast %125 : vector<8x1x128xf32> to vector<8x8x128xf32>
    %130 = vector.broadcast %128 : vector<1x8x128xf32> to vector<8x8x128xf32>
    %131 = arith.mulf %129, %130 : vector<8x8x128xf32>
    %132 = arith.addf %122, %131 : vector<8x8x128xf32>
    %133 = vector.extract_strided_slice %121 {offsets = [0, 1, 0], sizes = [8, 1, 128], strides = [1, 1, 1]} : vector<8x8x128xf32> to vector<8x1x128xf32>
    %134 = vector.shape_cast %133 : vector<8x1x128xf32> to vector<8x128xf32>
    %135 = vector.shape_cast %134 : vector<8x128xf32> to vector<8x1x128xf32>
    %136 = vector.extract_strided_slice %37 {offsets = [1, 0, 0], sizes = [1, 8, 128], strides = [1, 1, 1]} : vector<8x8x128xf32> to vector<1x8x128xf32>
    %137 = vector.shape_cast %136 : vector<1x8x128xf32> to vector<8x128xf32>
    %138 = vector.shape_cast %137 : vector<8x128xf32> to vector<1x8x128xf32>
    %139 = vector.broadcast %135 : vector<8x1x128xf32> to vector<8x8x128xf32>
    %140 = vector.broadcast %138 : vector<1x8x128xf32> to vector<8x8x128xf32>
    %141 = arith.mulf %139, %140 : vector<8x8x128xf32>
    %142 = arith.addf %132, %141 : vector<8x8x128xf32>
    %143 = vector.extract_strided_slice %121 {offsets = [0, 2, 0], sizes = [8, 1, 128], strides = [1, 1, 1]} : vector<8x8x128xf32> to vector<8x1x128xf32>
    %144 = vector.shape_cast %143 : vector<8x1x128xf32> to vector<8x128xf32>
    %145 = vector.shape_cast %144 : vector<8x128xf32> to vector<8x1x128xf32>
    %146 = vector.extract_strided_slice %37 {offsets = [2, 0, 0], sizes = [1, 8, 128], strides = [1, 1, 1]} : vector<8x8x128xf32> to vector<1x8x128xf32>
    %147 = vector.shape_cast %146 : vector<1x8x128xf32> to vector<8x128xf32>
    %148 = vector.shape_cast %147 : vector<8x128xf32> to vector<1x8x128xf32>
    %149 = vector.broadcast %145 : vector<8x1x128xf32> to vector<8x8x128xf32>
    %150 = vector.broadcast %148 : vector<1x8x128xf32> to vector<8x8x128xf32>
    %151 = arith.mulf %149, %150 : vector<8x8x128xf32>
    %152 = arith.addf %142, %151 : vector<8x8x128xf32>
    %153 = vector.extract_strided_slice %121 {offsets = [0, 3, 0], sizes = [8, 1, 128], strides = [1, 1, 1]} : vector<8x8x128xf32> to vector<8x1x128xf32>
    %154 = vector.shape_cast %153 : vector<8x1x128xf32> to vector<8x128xf32>
    %155 = vector.shape_cast %154 : vector<8x128xf32> to vector<8x1x128xf32>
    %156 = vector.extract_strided_slice %37 {offsets = [3, 0, 0], sizes = [1, 8, 128], strides = [1, 1, 1]} : vector<8x8x128xf32> to vector<1x8x128xf32>
    %157 = vector.shape_cast %156 : vector<1x8x128xf32> to vector<8x128xf32>
    %158 = vector.shape_cast %157 : vector<8x128xf32> to vector<1x8x128xf32>
    %159 = vector.broadcast %155 : vector<8x1x128xf32> to vector<8x8x128xf32>
    %160 = vector.broadcast %158 : vector<1x8x128xf32> to vector<8x8x128xf32>
    %161 = arith.mulf %159, %160 : vector<8x8x128xf32>
    %162 = arith.addf %152, %161 : vector<8x8x128xf32>
    %163 = vector.extract_strided_slice %121 {offsets = [0, 4, 0], sizes = [8, 1, 128], strides = [1, 1, 1]} : vector<8x8x128xf32> to vector<8x1x128xf32>
    %164 = vector.shape_cast %163 : vector<8x1x128xf32> to vector<8x128xf32>
    %165 = vector.shape_cast %164 : vector<8x128xf32> to vector<8x1x128xf32>
    %166 = vector.extract_strided_slice %37 {offsets = [4, 0, 0], sizes = [1, 8, 128], strides = [1, 1, 1]} : vector<8x8x128xf32> to vector<1x8x128xf32>
    %167 = vector.shape_cast %166 : vector<1x8x128xf32> to vector<8x128xf32>
    %168 = vector.shape_cast %167 : vector<8x128xf32> to vector<1x8x128xf32>
    %169 = vector.broadcast %165 : vector<8x1x128xf32> to vector<8x8x128xf32>
    %170 = vector.broadcast %168 : vector<1x8x128xf32> to vector<8x8x128xf32>
    %171 = arith.mulf %169, %170 : vector<8x8x128xf32>
    %172 = arith.addf %162, %171 : vector<8x8x128xf32>
    %173 = vector.extract_strided_slice %121 {offsets = [0, 5, 0], sizes = [8, 1, 128], strides = [1, 1, 1]} : vector<8x8x128xf32> to vector<8x1x128xf32>
    %174 = vector.shape_cast %173 : vector<8x1x128xf32> to vector<8x128xf32>
    %175 = vector.shape_cast %174 : vector<8x128xf32> to vector<8x1x128xf32>
    %176 = vector.extract_strided_slice %37 {offsets = [5, 0, 0], sizes = [1, 8, 128], strides = [1, 1, 1]} : vector<8x8x128xf32> to vector<1x8x128xf32>
    %177 = vector.shape_cast %176 : vector<1x8x128xf32> to vector<8x128xf32>
    %178 = vector.shape_cast %177 : vector<8x128xf32> to vector<1x8x128xf32>
    %179 = vector.broadcast %175 : vector<8x1x128xf32> to vector<8x8x128xf32>
    %180 = vector.broadcast %178 : vector<1x8x128xf32> to vector<8x8x128xf32>
    %181 = arith.mulf %179, %180 : vector<8x8x128xf32>
    %182 = arith.addf %172, %181 : vector<8x8x128xf32>
    %183 = vector.extract_strided_slice %121 {offsets = [0, 6, 0], sizes = [8, 1, 128], strides = [1, 1, 1]} : vector<8x8x128xf32> to vector<8x1x128xf32>
    %184 = vector.shape_cast %183 : vector<8x1x128xf32> to vector<8x128xf32>
    %185 = vector.shape_cast %184 : vector<8x128xf32> to vector<8x1x128xf32>
    %186 = vector.extract_strided_slice %37 {offsets = [6, 0, 0], sizes = [1, 8, 128], strides = [1, 1, 1]} : vector<8x8x128xf32> to vector<1x8x128xf32>
    %187 = vector.shape_cast %186 : vector<1x8x128xf32> to vector<8x128xf32>
    %188 = vector.shape_cast %187 : vector<8x128xf32> to vector<1x8x128xf32>
    %189 = vector.broadcast %185 : vector<8x1x128xf32> to vector<8x8x128xf32>
    %190 = vector.broadcast %188 : vector<1x8x128xf32> to vector<8x8x128xf32>
    %191 = arith.mulf %189, %190 : vector<8x8x128xf32>
    %192 = arith.addf %182, %191 : vector<8x8x128xf32>
    %193 = vector.extract_strided_slice %121 {offsets = [0, 7, 0], sizes = [8, 1, 128], strides = [1, 1, 1]} : vector<8x8x128xf32> to vector<8x1x128xf32>
    %194 = vector.shape_cast %193 : vector<8x1x128xf32> to vector<8x128xf32>
    %195 = vector.shape_cast %194 : vector<8x128xf32> to vector<8x1x128xf32>
    %196 = vector.extract_strided_slice %37 {offsets = [7, 0, 0], sizes = [1, 8, 128], strides = [1, 1, 1]} : vector<8x8x128xf32> to vector<1x8x128xf32>
    %197 = vector.shape_cast %196 : vector<1x8x128xf32> to vector<8x128xf32>
    %198 = vector.shape_cast %197 : vector<8x128xf32> to vector<1x8x128xf32>
    %199 = vector.broadcast %195 : vector<8x1x128xf32> to vector<8x8x128xf32>
    %200 = vector.broadcast %198 : vector<1x8x128xf32> to vector<8x8x128xf32>
    %201 = arith.mulf %199, %200 : vector<8x8x128xf32>
    %202 = arith.addf %192, %201 : vector<8x8x128xf32>
    %203 = vector.shape_cast %202 : vector<8x8x128xf32> to vector<64x128xf32>
    %204 = arith.negf %38 : vector<64x128xf32>
    %205 = math.exp %204 : vector<64x128xf32>
    %cst_28 = arith.constant 1.000000e+00 : f32
    %206 = vector.broadcast %cst_28 : f32 to vector<64x128xf32>
    %207 = arith.addf %206, %205 : vector<64x128xf32>
    %208 = arith.divf %206, %207 : vector<64x128xf32>
    %209 = arith.mulf %203, %208 : vector<64x128xf32>
    %210 = arith.mulf %209, %209 : vector<64x128xf32>
    %cst_29 = arith.constant dense<0.000000e+00> : vector<128xf32>
    %211 = vector.multi_reduction <add>, %210, %cst_29 [0] : vector<64x128xf32> to vector<128xf32>
    %212 = vector.shape_cast %211 : vector<128xf32> to vector<1x128xf32>
    %cst_30 = arith.constant 6.400000e+01 : f32
    %213 = vector.broadcast %cst_30 : f32 to vector<1x128xf32>
    %214 = arith.divf %212, %213 : vector<1x128xf32>
    %cst_31 = arith.constant 9.99999997E-7 : f32
    %215 = vector.broadcast %cst_31 : f32 to vector<1x128xf32>
    %216 = arith.addf %214, %215 : vector<1x128xf32>
    %217 = math.rsqrt %216 : vector<1x128xf32>
    %218 = vector.broadcast %217 : vector<1x128xf32> to vector<64x128xf32>
    %219 = arith.mulf %209, %218 : vector<64x128xf32>
    %220 = tpu.transpose %219, [1, 0] : vector<64x128xf32> -> vector<128x64xf32>
    %c0_32 = arith.constant 0 : index
    %c0_33 = arith.constant 0 : index
    %221 = vector.load %arg3[%c0_32, %c0_33] : memref<1x64xf32, #tpu.memory_space<vmem>>, vector<1x64xf32>
    %222 = vector.broadcast %221 : vector<1x64xf32> to vector<128x64xf32>
    %223 = arith.mulf %220, %222 : vector<128x64xf32>
    %c0_34 = arith.constant 0 : index
    %c0_35 = arith.constant 0 : index
    %224 = vector.load %arg4[%c0_34, %c0_35] : memref<128x64xf32, #tpu.memory_space<vmem>>, vector<128x64xf32>
    tpu.vector_store %arg4[%c0_34, %c0_35], %223 {strides = array<i32>} : memref<128x64xf32, #tpu.memory_space<vmem>>, vector<128x64xf32>,
    return
  }
  func.func @transform_0(%arg0: i32) -> (i32, i32) {
    %c0_i32 = arith.constant 0 : i32
    %c0_i32_0 = arith.constant 0 : i32
    return %c0_i32, %arg0 : i32, i32
  }
  func.func @transform_1(%arg0: i32) -> (i32, i32) {
    %c0_i32 = arith.constant 0 : i32
    %c0_i32_0 = arith.constant 0 : i32
    %c0_i32_1 = arith.constant 0 : i32
    return %c0_i32, %c0_i32_0 : i32, i32
  }
  func.func @transform_2(%arg0: i32) -> (i32, i32) {
    %c0_i32 = arith.constant 0 : i32
    %c0_i32_0 = arith.constant 0 : i32
    %c0_i32_1 = arith.constant 0 : i32
    return %c0_i32, %c0_i32_0 : i32, i32
  }
  func.func @transform_3(%arg0: i32) -> (i32, i32) {
    %c0_i32 = arith.constant 0 : i32
    %c0_i32_0 = arith.constant 0 : i32
    return %arg0, %c0_i32 : i32, i32
  }
}

</mosaic_0001>

<llo_original>
// kernel: tpu_custom_call.1
$region0: #{tpu_custom_call.1}
  #allocation0 [shape = 'u32[]', space=smem, size = 0x4, offset = 0x4, fixed_abs, tag = 'smem constant byte address 0x4 - core index']
  #allocation1 [shape = 'u32[144,128]{1,0:T(1,128)}', space=vmem, size = 0x12000, scoped, tag = 'internal scratch']
  %s0 = inlined_call_operand.vmem [shape: f32[64,128], index: 0, kind: input, shape index: {}]
  %s1 = inlined_call_operand.vmem [shape: bf16[256,64], index: 1, kind: input, shape index: {}]
  %s2 = inlined_call_operand.vmem [shape: f32[1,64], index: 2, kind: input, shape index: {}]
  %s3 = inlined_call_operand.vmem [shape: f32[128,64], index: 3, kind: output, shape index: {}]
  %s4 = sld [smem:[#allocation0]]
  $region22: #{tpu_custom_call.1} parent=0
    _
  %s6 = ssub.s32 1, %s4
  %s7 = scalar_select 0, %s6, %s4
  // Predicated region
  $region2: #{tpu_custom_call.1} parent=0 // pred_check
    _
  $region3: #{tpu_custom_call.1} parent=0 // pred_check_branch
    %9 = sbr.rel (0) target = $region5
  $region4: #{tpu_custom_call.1} parent=0 // pred_region
    _
  $region5: #{tpu_custom_call.1} parent=0 // pred_fallthru
    _
  // Predicated region
  $region6: #{tpu_custom_call.1} parent=0 // pred_check
    _
  $region7: #{tpu_custom_call.1} parent=0 // pred_check_branch
    %11 = sbr.rel (0) target = $region9
  $region8: #{tpu_custom_call.1} parent=0 // pred_region
    _
  $region9: #{tpu_custom_call.1} parent=0 // pred_fallthru
    _
  // Predicated region
  $region10: #{tpu_custom_call.1} parent=0 // pred_check
    _
  $region11: #{tpu_custom_call.1} parent=0 // pred_check_branch
    %13 = sbr.rel (0) target = $region13
  $region12: #{tpu_custom_call.1} parent=0 // pred_region
    _
  $region13: #{tpu_custom_call.1} parent=0 // pred_fallthru
    _
  %v15 = vld [vmem:[%s0] sm:$0xff]
  %v16 = vld [vmem:[%s0 + $0x8] sm:$0xff]
  %v17 = vld [vmem:[%s0 + $0x10] sm:$0xff]
  %v18 = vld [vmem:[%s0 + $0x18] sm:$0xff]
  %v19 = vld [vmem:[%s0 + $0x20] sm:$0xff]
  %v20 = vld [vmem:[%s0 + $0x28] sm:$0xff]
  %v21 = vld [vmem:[%s0 + $0x30] sm:$0xff]
  %v22 = vld [vmem:[%s0 + $0x38] sm:$0xff]
  %v23 = vmul.f32 %v15, %v15
  %v24 = vmul.f32 %v16, %v16
  %v25 = vmul.f32 %v17, %v17
  %v26 = vmul.f32 %v18, %v18
  %v27 = vmul.f32 %v19, %v19
  %v28 = vmul.f32 %v20, %v20
  %v29 = vmul.f32 %v21, %v21
  %v30 = vmul.f32 %v22, %v22
  %v31 = vadd.f32 %v23, %v24
  %v32 = vadd.f32 %v31, %v25
  %v33 = vadd.f32 %v32, %v26
  %v34 = vadd.f32 %v33, %v27
  %v35 = vadd.f32 %v34, %v28
  %v36 = vadd.f32 %v35, %v29
  %v37 = vadd.f32 %v36, %v30
  %v38 = vrot.slane %v37, 4
  %v39 = vadd.f32 %v37, %v38
  %v40 = vrot.slane %v39, 2
  %v41 = vadd.f32 %v39, %v40
  %v42 = vrot.slane %v41, 1
  %v43 = vadd.f32 %v41, %v42
  %v44 = vrcp.pop 64.0
  %v45 = vmul.f32 %v43, %v44
  %v46 = vadd.f32 %v45, 1e-06
  %v47 = vrsqrt.pop %v46
  %v48 = vmul.f32 %v15, %v47
  %v49 = vmul.f32 %v16, %v47
  %v50 = vmul.f32 %v17, %v47
  %v51 = vmul.f32 %v18, %v47
  %v52 = vmul.f32 %v19, %v47
  %v53 = vmul.f32 %v20, %v47
  %v54 = vmul.f32 %v21, %v47
  %v55 = vmul.f32 %v22, %v47
  %v56 = vpack.c.bf16 %v49, %v48
  %v57 = vpack.c.bf16 %v51, %v50
  %v58 = vpack.c.bf16 %v53, %v52
  %v59 = vpack.c.bf16 %v55, %v54
  %v60 = vld [vmem:[%s1] sm:$0xf]
  %v61 = vld [vmem:[%s1 + $0x4] sm:$0xf]
  %v62 = vld [vmem:[%s1 + $0x8] sm:$0xf]
  %v63 = vld [vmem:[%s1 + $0xc] sm:$0xf]
  %v64 = vld [vmem:[%s1 + $0x10] sm:$0xf]
  %v65 = vld [vmem:[%s1 + $0x14] sm:$0xf]
  %v66 = vld [vmem:[%s1 + $0x18] sm:$0xf]
  %v67 = vld [vmem:[%s1 + $0x1c] sm:$0xf]
  %v68 = vld [vmem:[%s1 + $0x20] sm:$0xf]
  %v69 = vld [vmem:[%s1 + $0x24] sm:$0xf]
  %v70 = vld [vmem:[%s1 + $0x28] sm:$0xf]
  %v71 = vld [vmem:[%s1 + $0x2c] sm:$0xf]
  %v72 = vld [vmem:[%s1 + $0x30] sm:$0xf]
  %v73 = vld [vmem:[%s1 + $0x34] sm:$0xf]
  %v74 = vld [vmem:[%s1 + $0x38] sm:$0xf]
  %v75 = vld [vmem:[%s1 + $0x3c] sm:$0xf]
  %v76 = vld [vmem:[%s1 + $0x40] sm:$0xf]
  %v77 = vld [vmem:[%s1 + $0x44] sm:$0xf]
  %v78 = vld [vmem:[%s1 + $0x48] sm:$0xf]
  %v79 = vld [vmem:[%s1 + $0x4c] sm:$0xf]
  %v80 = vld [vmem:[%s1 + $0x50] sm:$0xf]
  %v81 = vld [vmem:[%s1 + $0x54] sm:$0xf]
  %v82 = vld [vmem:[%s1 + $0x58] sm:$0xf]
  %v83 = vld [vmem:[%s1 + $0x5c] sm:$0xf]
  %v84 = vld [vmem:[%s1 + $0x60] sm:$0xf]
  %v85 = vld [vmem:[%s1 + $0x64] sm:$0xf]
  %v86 = vld [vmem:[%s1 + $0x68] sm:$0xf]
  %v87 = vld [vmem:[%s1 + $0x6c] sm:$0xf]
  %v88 = vld [vmem:[%s1 + $0x70] sm:$0xf]
  %v89 = vld [vmem:[%s1 + $0x74] sm:$0xf]
  %v90 = vld [vmem:[%s1 + $0x78] sm:$0xf]
  %v91 = vld [vmem:[%s1 + $0x7c] sm:$0xf]
  %v124 = vunpack.c.l.b16 %v60
  %v125 = vunpack.c.l.b16 %v61
  %v126 = vunpack.c.l.b16 %v62
  %v127 = vunpack.c.l.b16 %v63
  %v128 = vunpack.c.l.b16 %v64
  %v129 = vunpack.c.l.b16 %v65
  %v130 = vunpack.c.l.b16 %v66
  %v131 = vunpack.c.l.b16 %v67
  %v132 = vunpack.c.l.b16 %v68
  %v133 = vunpack.c.l.b16 %v69
  %v134 = vunpack.c.l.b16 %v70
  %v135 = vunpack.c.l.b16 %v71
  %v136 = vunpack.c.l.b16 %v72
  %v137 = vunpack.c.l.b16 %v73
  %v138 = vunpack.c.l.b16 %v74
  %v139 = vunpack.c.l.b16 %v75
  %v140 = vunpack.c.l.b16 %v76
  %v141 = vunpack.c.l.b16 %v77
  %v142 = vunpack.c.l.b16 %v78
  %v143 = vunpack.c.l.b16 %v79
  %v144 = vunpack.c.l.b16 %v80
  %v145 = vunpack.c.l.b16 %v81
  %v146 = vunpack.c.l.b16 %v82
  %v147 = vunpack.c.l.b16 %v83
  %v148 = vunpack.c.l.b16 %v84
  %v149 = vunpack.c.l.b16 %v85
  %v150 = vunpack.c.l.b16 %v86
  %v151 = vunpack.c.l.b16 %v87
  %v152 = vunpack.c.l.b16 %v88
  %v153 = vunpack.c.l.b16 %v89
  %v154 = vunpack.c.l.b16 %v90
  %v155 = vunpack.c.l.b16 %v91
  %v156 = vpack.c.b16 %v125, %v124
  %v157 = vpack.c.b16 %v127, %v126
  %v158 = vpack.c.b16 %v129, %v128
  %v159 = vpack.c.b16 %v131, %v130
  %v160 = vpack.c.b16 %v133, %v132
  %v161 = vpack.c.b16 %v135, %v134
  %v162 = vpack.c.b16 %v137, %v136
  %v163 = vpack.c.b16 %v139, %v138
  %v164 = vpack.c.b16 %v141, %v140
  %v165 = vpack.c.b16 %v143, %v142
  %v166 = vpack.c.b16 %v145, %v144
  %v167 = vpack.c.b16 %v147, %v146
  %v168 = vpack.c.b16 %v149, %v148
  %v169 = vpack.c.b16 %v151, %v150
  %v170 = vpack.c.b16 %v153, %v152
  %v171 = vpack.c.b16 %v155, %v154
  %vm172 = vcmask 523264
  %v174 = vsel %vm172, %v156, 0
  %v177 = vsel %vm172, %v157, 0
  %v180 = vsel %vm172, %v158, 0
  %v183 = vsel %vm172, %v159, 0
  %v186 = vsel %vm172, %v160, 0
  %v189 = vsel %vm172, %v161, 0
  %v192 = vsel %vm172, %v162, 0
  %v195 = vsel %vm172, %v163, 0
  %v198 = vsel %vm172, %v164, 0
  %v201 = vsel %vm172, %v165, 0
  %v204 = vsel %vm172, %v166, 0
  %v207 = vsel %vm172, %v167, 0
  %v210 = vsel %vm172, %v168, 0
  %v213 = vsel %vm172, %v169, 0
  %v216 = vsel %vm172, %v170, 0
  %v219 = vsel %vm172, %v171, 0
  %221 = vmatprep.subr.bf16.mxu0 0
  %222 = vmatpush1.bf16.msra.mxu0 0
  %223 = vmatprep.subr.bf16.mxu0 0
  %224 = vmatpush1.bf16.msra.mxu0 0
  %225 = vmatprep.subr.bf16.mxu0 0
  %226 = vmatpush1.bf16.msra.mxu0 0
  %227 = vmatprep.subr.bf16.mxu0 0
  %228 = vmatpush1.bf16.msra.mxu0 0
  %229 = vmatprep.subr.bf16.mxu0 0
  %230 = vmatpush1.bf16.msra.mxu0 %v59
  %231 = vmatprep.subr.bf16.mxu0 0
  %232 = vmatpush1.bf16.msra.mxu0 %v58
  %233 = vmatprep.subr.bf16.mxu0 0
  %234 = vmatpush1.bf16.msra.mxu0 %v57
  %235 = vmatprep.subr.bf16.mxu0 0
  %236 = vmatpush1.bf16.msra.mxu0 %v56
  %237 = vmatprep.subr.bf16.mxu0 0
  %238 = vmatpush2.bf16.msra.mxu0 0
  %239 = vmatprep.subr.bf16.mxu0 0
  %240 = vmatpush2.bf16.msra.mxu0 0
  %241 = vmatprep.subr.bf16.mxu0 0
  %242 = vmatpush2.bf16.msra.mxu0 0
  %243 = vmatprep.subr.bf16.mxu0 0
  %244 = vmatpush2.bf16.msra.mxu0 0
  %245 = vmatprep.subr.bf16.mxu0 0
  %246 = vmatpush2.bf16.msra.mxu0 0
  %247 = vmatprep.subr.bf16.mxu0 0
  %248 = vmatpush2.bf16.msra.mxu0 0
  %249 = vmatprep.subr.bf16.mxu0 0
  %250 = vmatpush2.bf16.msra.mxu0 0
  %251 = vmatprep.subr.bf16.mxu0 0
  %252 = vmatpush2.bf16.msra.mxu0 0
  %253 = vmatprep.mubr.bf16.mxu0 0
  %254 = vmatmul.mubr.bf16.gmra.mxu0 %v174
  %v255 = vpop.f32.mrf.mxu0
  %v256 = vadd.f32 0.0, %v255
  %v257 = vpop.f32.mrf.mxu0
  %v258 = vpop.f32.mrf.mxu0
  %v259 = vadd.f32 0.0, %v258
  %v260 = vpop.f32.mrf.mxu0
  %261 = vmatprep.mubr.bf16.mxu0 0
  %262 = vmatmul.mubr.bf16.gmra.mxu0 %v177
  %v263 = vpop.f32.mrf.mxu0
  %v264 = vadd.f32 0.0, %v263
  %v265 = vpop.f32.mrf.mxu0
  %v266 = vpop.f32.mrf.mxu0
  %v267 = vadd.f32 0.0, %v266
  %v268 = vpop.f32.mrf.mxu0
  %269 = vmatprep.mubr.bf16.mxu0 0
  %270 = vmatmul.mubr.bf16.gmra.mxu0 %v180
  %v271 = vpop.f32.mrf.mxu0
  %v272 = vadd.f32 0.0, %v271
  %v273 = vpop.f32.mrf.mxu0
  %v274 = vpop.f32.mrf.mxu0
  %v275 = vadd.f32 0.0, %v274
  %v276 = vpop.f32.mrf.mxu0
  %277 = vmatprep.mubr.bf16.mxu0 0
  %278 = vmatmul.mubr.bf16.gmra.mxu0 %v183
  %v279 = vpop.f32.mrf.mxu0
  %v280 = vadd.f32 0.0, %v279
  %v281 = vpop.f32.mrf.mxu0
  %v282 = vpop.f32.mrf.mxu0
  %v283 = vadd.f32 0.0, %v282
  %v284 = vpop.f32.mrf.mxu0
  %285 = vmatprep.mubr.bf16.mxu0 0
  %286 = vmatmul.mubr.bf16.gmra.mxu0 %v186
  %v287 = vpop.f32.mrf.mxu0
  %v288 = vadd.f32 0.0, %v287
  %v289 = vpop.f32.mrf.mxu0
  %v290 = vpop.f32.mrf.mxu0
  %v291 = vadd.f32 0.0, %v290
  %v292 = vpop.f32.mrf.mxu0
  %293 = vmatprep.mubr.bf16.mxu0 0
  %294 = vmatmul.mubr.bf16.gmra.mxu0 %v189
  %v295 = vpop.f32.mrf.mxu0
  %v296 = vadd.f32 0.0, %v295
  %v297 = vpop.f32.mrf.mxu0
  %v298 = vpop.f32.mrf.mxu0
  %v299 = vadd.f32 0.0, %v298
  %v300 = vpop.f32.mrf.mxu0
  %301 = vmatprep.mubr.bf16.mxu0 0
  %302 = vmatmul.mubr.bf16.gmra.mxu0 %v192
  %v303 = vpop.f32.mrf.mxu0
  %v304 = vadd.f32 0.0, %v303
  %v305 = vpop.f32.mrf.mxu0
  %v306 = vpop.f32.mrf.mxu0
  %v307 = vadd.f32 0.0, %v306
  %v308 = vpop.f32.mrf.mxu0
  %309 = vmatprep.mubr.bf16.mxu0 0
  %310 = vmatmul.mubr.bf16.gmra.mxu0 %v195
  %v311 = vpop.f32.mrf.mxu0
  %v312 = vadd.f32 0.0, %v311
  %v313 = vpop.f32.mrf.mxu0
  %v314 = vpop.f32.mrf.mxu0
  %v315 = vadd.f32 0.0, %v314
  %v316 = vpop.f32.mrf.mxu0
  %317 = vmatprep.mubr.bf16.mxu0 0
  %318 = vmatmul.mubr.bf16.gmra.mxu0 %v198
  %v319 = vpop.f32.mrf.mxu0
  %v320 = vadd.f32 0.0, %v319
  %v321 = vpop.f32.mrf.mxu0
  %v322 = vpop.f32.mrf.mxu0
  %v323 = vadd.f32 0.0, %v322
  %v324 = vpop.f32.mrf.mxu0
  %325 = vmatprep.mubr.bf16.mxu0 0
  %326 = vmatmul.mubr.bf16.gmra.mxu0 %v201
  %v327 = vpop.f32.mrf.mxu0
  %v328 = vadd.f32 0.0, %v327
  %v329 = vpop.f32.mrf.mxu0
  %v330 = vpop.f32.mrf.mxu0
  %v331 = vadd.f32 0.0, %v330
  %v332 = vpop.f32.mrf.mxu0
  %333 = vmatprep.mubr.bf16.mxu0 0
  %334 = vmatmul.mubr.bf16.gmra.mxu0 %v204
  %v335 = vpop.f32.mrf.mxu0
  %v336 = vadd.f32 0.0, %v335
  %v337 = vpop.f32.mrf.mxu0
  %v338 = vpop.f32.mrf.mxu0
  %v339 = vadd.f32 0.0, %v338
  %v340 = vpop.f32.mrf.mxu0
  %341 = vmatprep.mubr.bf16.mxu0 0
  %342 = vmatmul.mubr.bf16.gmra.mxu0 %v207
  %v343 = vpop.f32.mrf.mxu0
  %v344 = vadd.f32 0.0, %v343
  %v345 = vpop.f32.mrf.mxu0
  %v346 = vpop.f32.mrf.mxu0
  %v347 = vadd.f32 0.0, %v346
  %v348 = vpop.f32.mrf.mxu0
  %349 = vmatprep.mubr.bf16.mxu0 0
  %350 = vmatmul.mubr.bf16.gmra.mxu0 %v210
  %v351 = vpop.f32.mrf.mxu0
  %v352 = vadd.f32 0.0, %v351
  %v353 = vpop.f32.mrf.mxu0
  %v354 = vpop.f32.mrf.mxu0
  %v355 = vadd.f32 0.0, %v354
  %v356 = vpop.f32.mrf.mxu0
  %357 = vmatprep.mubr.bf16.mxu0 0
  %358 = vmatmul.mubr.bf16.gmra.mxu0 %v213
  %v359 = vpop.f32.mrf.mxu0
  %v360 = vadd.f32 0.0, %v359
  %v361 = vpop.f32.mrf.mxu0
  %v362 = vpop.f32.mrf.mxu0
  %v363 = vadd.f32 0.0, %v362
  %v364 = vpop.f32.mrf.mxu0
  %365 = vmatprep.mubr.bf16.mxu0 0
  %366 = vmatmul.mubr.bf16.gmra.mxu0 %v216
  %v367 = vpop.f32.mrf.mxu0
  %v368 = vadd.f32 0.0, %v367
  %v369 = vpop.f32.mrf.mxu0
  %v370 = vpop.f32.mrf.mxu0
  %v371 = vadd.f32 0.0, %v370
  %v372 = vpop.f32.mrf.mxu0
  %373 = vmatprep.mubr.bf16.mxu0 0
  %374 = vmatmul.mubr.bf16.gmra.mxu0 %v219
  %v375 = vpop.f32.mrf.mxu0
  %v376 = vadd.f32 0.0, %v375
  %v377 = vpop.f32.mrf.mxu0
  %v378 = vpop.f32.mrf.mxu0
  %v379 = vadd.f32 0.0, %v378
  %v380 = vpop.f32.mrf.mxu0
  %381 = vdwg.mxu0
  %v382 = vxor.u32 %v256, 2147483648
  %v383 = vxor.u32 %v259, 2147483648
  %v384 = vxor.u32 %v264, 2147483648
  %v385 = vxor.u32 %v267, 2147483648
  %v386 = vxor.u32 %v272, 2147483648
  %v387 = vxor.u32 %v275, 2147483648
  %v388 = vxor.u32 %v280, 2147483648
  %v389 = vxor.u32 %v283, 2147483648
  %v390 = vmul.f32 %v382, 1.442695
  %v391 = vpow.pop %v390
  %v392 = vmul.f32 %v383, 1.442695
  %v393 = vpow.pop %v392
  %v394 = vmul.f32 %v384, 1.442695
  %v395 = vpow.pop %v394
  %v396 = vmul.f32 %v385, 1.442695
  %v397 = vpow.pop %v396
  %v398 = vmul.f32 %v386, 1.442695
  %v399 = vpow.pop %v398
  %v400 = vmul.f32 %v387, 1.442695
  %v401 = vpow.pop %v400
  %v402 = vmul.f32 %v388, 1.442695
  %v403 = vpow.pop %v402
  %v404 = vmul.f32 %v389, 1.442695
  %v405 = vpow.pop %v404
  %v406 = vadd.f32 %v391, 1.0
  %v407 = vadd.f32 %v393, 1.0
  %v408 = vadd.f32 %v395, 1.0
  %v409 = vadd.f32 %v397, 1.0
  %v410 = vadd.f32 %v399, 1.0
  %v411 = vadd.f32 %v401, 1.0
  %v412 = vadd.f32 %v403, 1.0
  %v413 = vadd.f32 %v405, 1.0
  %v414 = vrcp.pop %v406
  %v415 = vmul.f32 1.0, %v414
  %v416 = vrcp.pop %v407
  %v417 = vmul.f32 1.0, %v416
  %v418 = vrcp.pop %v408
  %v419 = vmul.f32 1.0, %v418
  %v420 = vrcp.pop %v409
  %v421 = vmul.f32 1.0, %v420
  %v422 = vrcp.pop %v410
  %v423 = vmul.f32 1.0, %v422
  %v424 = vrcp.pop %v411
  %v425 = vmul.f32 1.0, %v424
  %v426 = vrcp.pop %v412
  %v427 = vmul.f32 1.0, %v426
  %v428 = vrcp.pop %v413
  %v429 = vmul.f32 1.0, %v428
  %v430 = vmul.f32 %v256, %v415
  %v431 = vmul.f32 %v259, %v417
  %v432 = vmul.f32 %v264, %v419
  %v433 = vmul.f32 %v267, %v421
  %v434 = vmul.f32 %v272, %v423
  %v435 = vmul.f32 %v275, %v425
  %v436 = vmul.f32 %v280, %v427
  %v437 = vmul.f32 %v283, %v429
  %v438 = vxor.u32 %v288, 2147483648
  %v439 = vxor.u32 %v291, 2147483648
  %v440 = vxor.u32 %v296, 2147483648
  %v441 = vxor.u32 %v299, 2147483648
  %v442 = vxor.u32 %v304, 2147483648
  %v443 = vxor.u32 %v307, 2147483648
  %v444 = vxor.u32 %v312, 2147483648
  %v445 = vxor.u32 %v315, 2147483648
  %v446 = vmul.f32 %v438, 1.442695
  %v447 = vpow.pop %v446
  %v448 = vmul.f32 %v439, 1.442695
  %v449 = vpow.pop %v448
  %v450 = vmul.f32 %v440, 1.442695
  %v451 = vpow.pop %v450
  %v452 = vmul.f32 %v441, 1.442695
  %v453 = vpow.pop %v452
  %v454 = vmul.f32 %v442, 1.442695
  %v455 = vpow.pop %v454
  %v456 = vmul.f32 %v443, 1.442695
  %v457 = vpow.pop %v456
  %v458 = vmul.f32 %v444, 1.442695
  %v459 = vpow.pop %v458
  %v460 = vmul.f32 %v445, 1.442695
  %v461 = vpow.pop %v460
  %v462 = vadd.f32 %v447, 1.0
  %v463 = vadd.f32 %v449, 1.0
  %v464 = vadd.f32 %v451, 1.0
  %v465 = vadd.f32 %v453, 1.0
  %v466 = vadd.f32 %v455, 1.0
  %v467 = vadd.f32 %v457, 1.0
  %v468 = vadd.f32 %v459, 1.0
  %v469 = vadd.f32 %v461, 1.0
  %v470 = vrcp.pop %v462
  %v471 = vmul.f32 1.0, %v470
  %v472 = vrcp.pop %v463
  %v473 = vmul.f32 1.0, %v472
  %v474 = vrcp.pop %v464
  %v475 = vmul.f32 1.0, %v474
  %v476 = vrcp.pop %v465
  %v477 = vmul.f32 1.0, %v476
  %v478 = vrcp.pop %v466
  %v479 = vmul.f32 1.0, %v478
  %v480 = vrcp.pop %v467
  %v481 = vmul.f32 1.0, %v480
  %v482 = vrcp.pop %v468
  %v483 = vmul.f32 1.0, %v482
  %v484 = vrcp.pop %v469
  %v485 = vmul.f32 1.0, %v484
  %v486 = vmul.f32 %v288, %v471
  %v487 = vmul.f32 %v291, %v473
  %v488 = vmul.f32 %v296, %v475
  %v489 = vmul.f32 %v299, %v477
  %v490 = vmul.f32 %v304, %v479
  %v491 = vmul.f32 %v307, %v481
  %v492 = vmul.f32 %v312, %v483
  %v493 = vmul.f32 %v315, %v485
  %v494 = vxor.u32 %v320, 2147483648
  %v495 = vxor.u32 %v323, 2147483648
  %v496 = vxor.u32 %v328, 2147483648
  %v497 = vxor.u32 %v331, 2147483648
  %v498 = vxor.u32 %v336, 2147483648
  %v499 = vxor.u32 %v339, 2147483648
  %v500 = vxor.u32 %v344, 2147483648
  %v501 = vxor.u32 %v347, 2147483648
  %v502 = vmul.f32 %v494, 1.442695
  %v503 = vpow.pop %v502
  %v504 = vmul.f32 %v495, 1.442695
  %v505 = vpow.pop %v504
  %v506 = vmul.f32 %v496, 1.442695
  %v507 = vpow.pop %v506
  %v508 = vmul.f32 %v497, 1.442695
  %v509 = vpow.pop %v508
  %v510 = vmul.f32 %v498, 1.442695
  %v511 = vpow.pop %v510
  %v512 = vmul.f32 %v499, 1.442695
  %v513 = vpow.pop %v512
  %v514 = vmul.f32 %v500, 1.442695
  %v515 = vpow.pop %v514
  %v516 = vmul.f32 %v501, 1.442695
  %v517 = vpow.pop %v516
  %v518 = vadd.f32 %v503, 1.0
  %v519 = vadd.f32 %v505, 1.0
  %v520 = vadd.f32 %v507, 1.0
  %v521 = vadd.f32 %v509, 1.0
  %v522 = vadd.f32 %v511, 1.0
  %v523 = vadd.f32 %v513, 1.0
  %v524 = vadd.f32 %v515, 1.0
  %v525 = vadd.f32 %v517, 1.0
  %v526 = vrcp.pop %v518
  %v527 = vmul.f32 1.0, %v526
  %v528 = vrcp.pop %v519
  %v529 = vmul.f32 1.0, %v528
  %v530 = vrcp.pop %v520
  %v531 = vmul.f32 1.0, %v530
  %v532 = vrcp.pop %v521
  %v533 = vmul.f32 1.0, %v532
  %v534 = vrcp.pop %v522
  %v535 = vmul.f32 1.0, %v534
  %v536 = vrcp.pop %v523
  %v537 = vmul.f32 1.0, %v536
  %v538 = vrcp.pop %v524
  %v539 = vmul.f32 1.0, %v538
  %v540 = vrcp.pop %v525
  %v541 = vmul.f32 1.0, %v540
  %v542 = vmul.f32 %v320, %v527
  %v543 = vmul.f32 %v323, %v529
  %v544 = vmul.f32 %v328, %v531
  %v545 = vmul.f32 %v331, %v533
  %v546 = vmul.f32 %v336, %v535
  %v547 = vmul.f32 %v339, %v537
  %v548 = vmul.f32 %v344, %v539
  %v549 = vmul.f32 %v347, %v541
  %v550 = vmul.f32 %v430, %v486
  %v551 = vmul.f32 %v431, %v486
  %v552 = vmul.f32 %v432, %v486
  %v553 = vmul.f32 %v433, %v486
  %v554 = vmul.f32 %v434, %v486
  %v555 = vmul.f32 %v435, %v486
  %v556 = vmul.f32 %v436, %v486
  %v557 = vmul.f32 %v437, %v486
  %v558 = vrot.slane %v550, 4
  %v559 = vadd.f32 %v550, %v558
  %v560 = vrot.slane %v559, 2
  %v561 = vadd.f32 %v559, %v560
  %v562 = vrot.slane %v561, 1
  %v563 = vadd.f32 %v561, %v562
  %v564 = vrot.slane %v551, 4
  %v565 = vadd.f32 %v551, %v564
  %v566 = vrot.slane %v565, 2
  %v567 = vadd.f32 %v565, %v566
  %v568 = vrot.slane %v567, 1
  %v569 = vadd.f32 %v567, %v568
  %v570 = vrot.slane %v552, 4
  %v571 = vadd.f32 %v552, %v570
  %v572 = vrot.slane %v571, 2
  %v573 = vadd.f32 %v571, %v572
  %v574 = vrot.slane %v573, 1
  %v575 = vadd.f32 %v573, %v574
  %v576 = vrot.slane %v553, 4
  %v577 = vadd.f32 %v553, %v576
  %v578 = vrot.slane %v577, 2
  %v579 = vadd.f32 %v577, %v578
  %v580 = vrot.slane %v579, 1
  %v581 = vadd.f32 %v579, %v580
  %v582 = vrot.slane %v554, 4
  %v583 = vadd.f32 %v554, %v582
  %v584 = vrot.slane %v583, 2
  %v585 = vadd.f32 %v583, %v584
  %v586 = vrot.slane %v585, 1
  %v587 = vadd.f32 %v585, %v586
  %v588 = vrot.slane %v555, 4
  %v589 = vadd.f32 %v555, %v588
  %v590 = vrot.slane %v589, 2
  %v591 = vadd.f32 %v589, %v590
  %v592 = vrot.slane %v591, 1
  %v593 = vadd.f32 %v591, %v592
  %v594 = vrot.slane %v556, 4
  %v595 = vadd.f32 %v556, %v594
  %v596 = vrot.slane %v595, 2
  %v597 = vadd.f32 %v595, %v596
  %v598 = vrot.slane %v597, 1
  %v599 = vadd.f32 %v597, %v598
  %v600 = vrot.slane %v557, 4
  %v601 = vadd.f32 %v557, %v600
  %v602 = vrot.slane %v601, 2
  %v603 = vadd.f32 %v601, %v602
  %v604 = vrot.slane %v603, 1
  %v605 = vadd.f32 %v603, %v604
  %v606 = vmul.f32 %v563, 0.35355338
  %v607 = vmul.f32 %v569, 0.35355338
  %v608 = vmul.f32 %v575, 0.35355338
  %v609 = vmul.f32 %v581, 0.35355338
  %v610 = vmul.f32 %v587, 0.35355338
  %v611 = vmul.f32 %v593, 0.35355338
  %v612 = vmul.f32 %v599, 0.35355338
  %v613 = vmul.f32 %v605, 0.35355338
  %v614 = vmul.f32 %v430, %v487
  %v615 = vmul.f32 %v431, %v487
  %v616 = vmul.f32 %v432, %v487
  %v617 = vmul.f32 %v433, %v487
  %v618 = vmul.f32 %v434, %v487
  %v619 = vmul.f32 %v435, %v487
  %v620 = vmul.f32 %v436, %v487
  %v621 = vmul.f32 %v437, %v487
  %v622 = vrot.slane %v614, 4
  %v623 = vadd.f32 %v614, %v622
  %v624 = vrot.slane %v623, 2
  %v625 = vadd.f32 %v623, %v624
  %v626 = vrot.slane %v625, 1
  %v627 = vadd.f32 %v625, %v626
  %v628 = vrot.slane %v615, 4
  %v629 = vadd.f32 %v615, %v628
  %v630 = vrot.slane %v629, 2
  %v631 = vadd.f32 %v629, %v630
  %v632 = vrot.slane %v631, 1
  %v633 = vadd.f32 %v631, %v632
  %v634 = vrot.slane %v616, 4
  %v635 = vadd.f32 %v616, %v634
  %v636 = vrot.slane %v635, 2
  %v637 = vadd.f32 %v635, %v636
  %v638 = vrot.slane %v637, 1
  %v639 = vadd.f32 %v637, %v638
  %v640 = vrot.slane %v617, 4
  %v641 = vadd.f32 %v617, %v640
  %v642 = vrot.slane %v641, 2
  %v643 = vadd.f32 %v641, %v642
  %v644 = vrot.slane %v643, 1
  %v645 = vadd.f32 %v643, %v644
  %v646 = vrot.slane %v618, 4
  %v647 = vadd.f32 %v618, %v646
  %v648 = vrot.slane %v647, 2
  %v649 = vadd.f32 %v647, %v648
  %v650 = vrot.slane %v649, 1
  %v651 = vadd.f32 %v649, %v650
  %v652 = vrot.slane %v619, 4
  %v653 = vadd.f32 %v619, %v652
  %v654 = vrot.slane %v653, 2
  %v655 = vadd.f32 %v653, %v654
  %v656 = vrot.slane %v655, 1
  %v657 = vadd.f32 %v655, %v656
  %v658 = vrot.slane %v620, 4
  %v659 = vadd.f32 %v620, %v658
  %v660 = vrot.slane %v659, 2
  %v661 = vadd.f32 %v659, %v660
  %v662 = vrot.slane %v661, 1
  %v663 = vadd.f32 %v661, %v662
  %v664 = vrot.slane %v621, 4
  %v665 = vadd.f32 %v621, %v664
  %v666 = vrot.slane %v665, 2
  %v667 = vadd.f32 %v665, %v666
  %v668 = vrot.slane %v667, 1
  %v669 = vadd.f32 %v667, %v668
  %v670 = vmul.f32 %v627, 0.35355338
  %v671 = vmul.f32 %v633, 0.35355338
  %v672 = vmul.f32 %v639, 0.35355338
  %v673 = vmul.f32 %v645, 0.35355338
  %v674 = vmul.f32 %v651, 0.35355338
  %v675 = vmul.f32 %v657, 0.35355338
  %v676 = vmul.f32 %v663, 0.35355338
  %v677 = vmul.f32 %v669, 0.35355338
  %v678 = vmul.f32 %v430, %v488
  %v679 = vmul.f32 %v431, %v488
  %v680 = vmul.f32 %v432, %v488
  %v681 = vmul.f32 %v433, %v488
  %v682 = vmul.f32 %v434, %v488
  %v683 = vmul.f32 %v435, %v488
  %v684 = vmul.f32 %v436, %v488
  %v685 = vmul.f32 %v437, %v488
  %v686 = vrot.slane %v678, 4
  %v687 = vadd.f32 %v678, %v686
  %v688 = vrot.slane %v687, 2
  %v689 = vadd.f32 %v687, %v688
  %v690 = vrot.slane %v689, 1
  %v691 = vadd.f32 %v689, %v690
  %v692 = vrot.slane %v679, 4
  %v693 = vadd.f32 %v679, %v692
  %v694 = vrot.slane %v693, 2
  %v695 = vadd.f32 %v693, %v694
  %v696 = vrot.slane %v695, 1
  %v697 = vadd.f32 %v695, %v696
  %v698 = vrot.slane %v680, 4
  %v699 = vadd.f32 %v680, %v698
  %v700 = vrot.slane %v699, 2
  %v701 = vadd.f32 %v699, %v700
  %v702 = vrot.slane %v701, 1
  %v703 = vadd.f32 %v701, %v702
  %v704 = vrot.slane %v681, 4
  %v705 = vadd.f32 %v681, %v704
  %v706 = vrot.slane %v705, 2
  %v707 = vadd.f32 %v705, %v706
  %v708 = vrot.slane %v707, 1
  %v709 = vadd.f32 %v707, %v708
  %v710 = vrot.slane %v682, 4
  %v711 = vadd.f32 %v682, %v710
  %v712 = vrot.slane %v711, 2
  %v713 = vadd.f32 %v711, %v712
  %v714 = vrot.slane %v713, 1
  %v715 = vadd.f32 %v713, %v714
  %v716 = vrot.slane %v683, 4
  %v717 = vadd.f32 %v683, %v716
  %v718 = vrot.slane %v717, 2
  %v719 = vadd.f32 %v717, %v718
  %v720 = vrot.slane %v719, 1
  %v721 = vadd.f32 %v719, %v720
  %v722 = vrot.slane %v684, 4
  %v723 = vadd.f32 %v684, %v722
  %v724 = vrot.slane %v723, 2
  %v725 = vadd.f32 %v723, %v724
  %v726 = vrot.slane %v725, 1
  %v727 = vadd.f32 %v725, %v726
  %v728 = vrot.slane %v685, 4
  %v729 = vadd.f32 %v685, %v728
  %v730 = vrot.slane %v729, 2
  %v731 = vadd.f32 %v729, %v730
  %v732 = vrot.slane %v731, 1
  %v733 = vadd.f32 %v731, %v732
  %v734 = vmul.f32 %v691, 0.35355338
  %v735 = vmul.f32 %v697, 0.35355338
  %v736 = vmul.f32 %v703, 0.35355338
  %v737 = vmul.f32 %v709, 0.35355338
  %v738 = vmul.f32 %v715, 0.35355338
  %v739 = vmul.f32 %v721, 0.35355338
  %v740 = vmul.f32 %v727, 0.35355338
  %v741 = vmul.f32 %v733, 0.35355338
  %v742 = vmul.f32 %v430, %v489
  %v743 = vmul.f32 %v431, %v489
  %v744 = vmul.f32 %v432, %v489
  %v745 = vmul.f32 %v433, %v489
  %v746 = vmul.f32 %v434, %v489
  %v747 = vmul.f32 %v435, %v489
  %v748 = vmul.f32 %v436, %v489
  %v749 = vmul.f32 %v437, %v489
  %v750 = vrot.slane %v742, 4
  %v751 = vadd.f32 %v742, %v750
  %v752 = vrot.slane %v751, 2
  %v753 = vadd.f32 %v751, %v752
  %v754 = vrot.slane %v753, 1
  %v755 = vadd.f32 %v753, %v754
  %v756 = vrot.slane %v743, 4
  %v757 = vadd.f32 %v743, %v756
  %v758 = vrot.slane %v757, 2
  %v759 = vadd.f32 %v757, %v758
  %v760 = vrot.slane %v759, 1
  %v761 = vadd.f32 %v759, %v760
  %v762 = vrot.slane %v744, 4
  %v763 = vadd.f32 %v744, %v762
  %v764 = vrot.slane %v763, 2
  %v765 = vadd.f32 %v763, %v764
  %v766 = vrot.slane %v765, 1
  %v767 = vadd.f32 %v765, %v766
  %v768 = vrot.slane %v745, 4
  %v769 = vadd.f32 %v745, %v768
  %v770 = vrot.slane %v769, 2
  %v771 = vadd.f32 %v769, %v770
  %v772 = vrot.slane %v771, 1
  %v773 = vadd.f32 %v771, %v772
  %v774 = vrot.slane %v746, 4
  %v775 = vadd.f32 %v746, %v774
  %v776 = vrot.slane %v775, 2
  %v777 = vadd.f32 %v775, %v776
  %v778 = vrot.slane %v777, 1
  %v779 = vadd.f32 %v777, %v778
  %v780 = vrot.slane %v747, 4
  %v781 = vadd.f32 %v747, %v780
  %v782 = vrot.slane %v781, 2
  %v783 = vadd.f32 %v781, %v782
  %v784 = vrot.slane %v783, 1
  %v785 = vadd.f32 %v783, %v784
  %v786 = vrot.slane %v748, 4
  %v787 = vadd.f32 %v748, %v786
  %v788 = vrot.slane %v787, 2
  %v789 = vadd.f32 %v787, %v788
  %v790 = vrot.slane %v789, 1
  %v791 = vadd.f32 %v789, %v790
  %v792 = vrot.slane %v749, 4
  %v793 = vadd.f32 %v749, %v792
  %v794 = vrot.slane %v793, 2
  %v795 = vadd.f32 %v793, %v794
  %v796 = vrot.slane %v795, 1
  %v797 = vadd.f32 %v795, %v796
  %v798 = vmul.f32 %v755, 0.35355338
  %v799 = vmul.f32 %v761, 0.35355338
  %v800 = vmul.f32 %v767, 0.35355338
  %v801 = vmul.f32 %v773, 0.35355338
  %v802 = vmul.f32 %v779, 0.35355338
  %v803 = vmul.f32 %v785, 0.35355338
  %v804 = vmul.f32 %v791, 0.35355338
  %v805 = vmul.f32 %v797, 0.35355338
  %v806 = vmul.f32 %v430, %v490
  %v807 = vmul.f32 %v431, %v490
  %v808 = vmul.f32 %v432, %v490
  %v809 = vmul.f32 %v433, %v490
  %v810 = vmul.f32 %v434, %v490
  %v811 = vmul.f32 %v435, %v490
  %v812 = vmul.f32 %v436, %v490
  %v813 = vmul.f32 %v437, %v490
  %v814 = vrot.slane %v806, 4
  %v815 = vadd.f32 %v806, %v814
  %v816 = vrot.slane %v815, 2
  %v817 = vadd.f32 %v815, %v816
  %v818 = vrot.slane %v817, 1
  %v819 = vadd.f32 %v817, %v818
  %v820 = vrot.slane %v807, 4
  %v821 = vadd.f32 %v807, %v820
  %v822 = vrot.slane %v821, 2
  %v823 = vadd.f32 %v821, %v822
  %v824 = vrot.slane %v823, 1
  %v825 = vadd.f32 %v823, %v824
  %v826 = vrot.slane %v808, 4
  %v827 = vadd.f32 %v808, %v826
  %v828 = vrot.slane %v827, 2
  %v829 = vadd.f32 %v827, %v828
  %v830 = vrot.slane %v829, 1
  %v831 = vadd.f32 %v829, %v830
  %v832 = vrot.slane %v809, 4
  %v833 = vadd.f32 %v809, %v832
  %v834 = vrot.slane %v833, 2
  %v835 = vadd.f32 %v833, %v834
  %v836 = vrot.slane %v835, 1
  %v837 = vadd.f32 %v835, %v836
  %v838 = vrot.slane %v810, 4
  %v839 = vadd.f32 %v810, %v838
  %v840 = vrot.slane %v839, 2
  %v841 = vadd.f32 %v839, %v840
  %v842 = vrot.slane %v841, 1
  %v843 = vadd.f32 %v841, %v842
  %v844 = vrot.slane %v811, 4
  %v845 = vadd.f32 %v811, %v844
  %v846 = vrot.slane %v845, 2
  %v847 = vadd.f32 %v845, %v846
  %v848 = vrot.slane %v847, 1
  %v849 = vadd.f32 %v847, %v848
  %v850 = vrot.slane %v812, 4
  %v851 = vadd.f32 %v812, %v850
  %v852 = vrot.slane %v851, 2
  %v853 = vadd.f32 %v851, %v852
  %v854 = vrot.slane %v853, 1
  %v855 = vadd.f32 %v853, %v854
  %v856 = vrot.slane %v813, 4
  %v857 = vadd.f32 %v813, %v856
  %v858 = vrot.slane %v857, 2
  %v859 = vadd.f32 %v857, %v858
  %v860 = vrot.slane %v859, 1
  %v861 = vadd.f32 %v859, %v860
  %v862 = vmul.f32 %v819, 0.35355338
  %v863 = vmul.f32 %v825, 0.35355338
  %v864 = vmul.f32 %v831, 0.35355338
  %v865 = vmul.f32 %v837, 0.35355338
  %v866 = vmul.f32 %v843, 0.35355338
  %v867 = vmul.f32 %v849, 0.35355338
  %v868 = vmul.f32 %v855, 0.35355338
  %v869 = vmul.f32 %v861, 0.35355338
  %v870 = vmul.f32 %v430, %v491
  %v871 = vmul.f32 %v431, %v491
  %v872 = vmul.f32 %v432, %v491
  %v873 = vmul.f32 %v433, %v491
  %v874 = vmul.f32 %v434, %v491
  %v875 = vmul.f32 %v435, %v491
  %v876 = vmul.f32 %v436, %v491
  %v877 = vmul.f32 %v437, %v491
  %v878 = vrot.slane %v870, 4
  %v879 = vadd.f32 %v870, %v878
  %v880 = vrot.slane %v879, 2
  %v881 = vadd.f32 %v879, %v880
  %v882 = vrot.slane %v881, 1
  %v883 = vadd.f32 %v881, %v882
  %v884 = vrot.slane %v871, 4
  %v885 = vadd.f32 %v871, %v884
  %v886 = vrot.slane %v885, 2
  %v887 = vadd.f32 %v885, %v886
  %v888 = vrot.slane %v887, 1
  %v889 = vadd.f32 %v887, %v888
  %v890 = vrot.slane %v872, 4
  %v891 = vadd.f32 %v872, %v890
  %v892 = vrot.slane %v891, 2
  %v893 = vadd.f32 %v891, %v892
  %v894 = vrot.slane %v893, 1
  %v895 = vadd.f32 %v893, %v894
  %v896 = vrot.slane %v873, 4
  %v897 = vadd.f32 %v873, %v896
  %v898 = vrot.slane %v897, 2
  %v899 = vadd.f32 %v897, %v898
  %v900 = vrot.slane %v899, 1
  %v901 = vadd.f32 %v899, %v900
  %v902 = vrot.slane %v874, 4
  %v903 = vadd.f32 %v874, %v902
  %v904 = vrot.slane %v903, 2
  %v905 = vadd.f32 %v903, %v904
  %v906 = vrot.slane %v905, 1
  %v907 = vadd.f32 %v905, %v906
  %v908 = vrot.slane %v875, 4
  %v909 = vadd.f32 %v875, %v908
  %v910 = vrot.slane %v909, 2
  %v911 = vadd.f32 %v909, %v910
  %v912 = vrot.slane %v911, 1
  %v913 = vadd.f32 %v911, %v912
  %v914 = vrot.slane %v876, 4
  %v915 = vadd.f32 %v876, %v914
  %v916 = vrot.slane %v915, 2
  %v917 = vadd.f32 %v915, %v916
  %v918 = vrot.slane %v917, 1
  %v919 = vadd.f32 %v917, %v918
  %v920 = vrot.slane %v877, 4
  %v921 = vadd.f32 %v877, %v920
  %v922 = vrot.slane %v921, 2
  %v923 = vadd.f32 %v921, %v922
  %v924 = vrot.slane %v923, 1
  %v925 = vadd.f32 %v923, %v924
  %v926 = vmul.f32 %v883, 0.35355338
  %v927 = vmul.f32 %v889, 0.35355338
  %v928 = vmul.f32 %v895, 0.35355338
  %v929 = vmul.f32 %v901, 0.35355338
  %v930 = vmul.f32 %v907, 0.35355338
  %v931 = vmul.f32 %v913, 0.35355338
  %v932 = vmul.f32 %v919, 0.35355338
  %v933 = vmul.f32 %v925, 0.35355338
  %v934 = vmul.f32 %v430, %v492
  %v935 = vmul.f32 %v431, %v492
  %v936 = vmul.f32 %v432, %v492
  %v937 = vmul.f32 %v433, %v492
  %v938 = vmul.f32 %v434, %v492
  %v939 = vmul.f32 %v435, %v492
  %v940 = vmul.f32 %v436, %v492
  %v941 = vmul.f32 %v437, %v492
  %v942 = vrot.slane %v934, 4
  %v943 = vadd.f32 %v934, %v942
  %v944 = vrot.slane %v943, 2
  %v945 = vadd.f32 %v943, %v944
  %v946 = vrot.slane %v945, 1
  %v947 = vadd.f32 %v945, %v946
  %v948 = vrot.slane %v935, 4
  %v949 = vadd.f32 %v935, %v948
  %v950 = vrot.slane %v949, 2
  %v951 = vadd.f32 %v949, %v950
  %v952 = vrot.slane %v951, 1
  %v953 = vadd.f32 %v951, %v952
  %v954 = vrot.slane %v936, 4
  %v955 = vadd.f32 %v936, %v954
  %v956 = vrot.slane %v955, 2
  %v957 = vadd.f32 %v955, %v956
  %v958 = vrot.slane %v957, 1
  %v959 = vadd.f32 %v957, %v958
  %v960 = vrot.slane %v937, 4
  %v961 = vadd.f32 %v937, %v960
  %v962 = vrot.slane %v961, 2
  %v963 = vadd.f32 %v961, %v962
  %v964 = vrot.slane %v963, 1
  %v965 = vadd.f32 %v963, %v964
  %v966 = vrot.slane %v938, 4
  %v967 = vadd.f32 %v938, %v966
  %v968 = vrot.slane %v967, 2
  %v969 = vadd.f32 %v967, %v968
  %v970 = vrot.slane %v969, 1
  %v971 = vadd.f32 %v969, %v970
  %v972 = vrot.slane %v939, 4
  %v973 = vadd.f32 %v939, %v972
  %v974 = vrot.slane %v973, 2
  %v975 = vadd.f32 %v973, %v974
  %v976 = vrot.slane %v975, 1
  %v977 = vadd.f32 %v975, %v976
  %v978 = vrot.slane %v940, 4
  %v979 = vadd.f32 %v940, %v978
  %v980 = vrot.slane %v979, 2
  %v981 = vadd.f32 %v979, %v980
  %v982 = vrot.slane %v981, 1
  %v983 = vadd.f32 %v981, %v982
  %v984 = vrot.slane %v941, 4
  %v985 = vadd.f32 %v941, %v984
  %v986 = vrot.slane %v985, 2
  %v987 = vadd.f32 %v985, %v986
  %v988 = vrot.slane %v987, 1
  %v989 = vadd.f32 %v987, %v988
  %v990 = vmul.f32 %v947, 0.35355338
  %v991 = vmul.f32 %v953, 0.35355338
  %v992 = vmul.f32 %v959, 0.35355338
  %v993 = vmul.f32 %v965, 0.35355338
  %v994 = vmul.f32 %v971, 0.35355338
  %v995 = vmul.f32 %v977, 0.35355338
  %v996 = vmul.f32 %v983, 0.35355338
  %v997 = vmul.f32 %v989, 0.35355338
  %v998 = vmul.f32 %v430, %v493
  %v999 = vmul.f32 %v431, %v493
  %v1000 = vmul.f32 %v432, %v493
  %v1001 = vmul.f32 %v433, %v493
  %v1002 = vmul.f32 %v434, %v493
  %v1003 = vmul.f32 %v435, %v493
  %v1004 = vmul.f32 %v436, %v493
  %v1005 = vmul.f32 %v437, %v493
  %v1006 = vrot.slane %v998, 4
  %v1007 = vadd.f32 %v998, %v1006
  %v1008 = vrot.slane %v1007, 2
  %v1009 = vadd.f32 %v1007, %v1008
  %v1010 = vrot.slane %v1009, 1
  %v1011 = vadd.f32 %v1009, %v1010
  %v1012 = vrot.slane %v999, 4
  %v1013 = vadd.f32 %v999, %v1012
  %v1014 = vrot.slane %v1013, 2
  %v1015 = vadd.f32 %v1013, %v1014
  %v1016 = vrot.slane %v1015, 1
  %v1017 = vadd.f32 %v1015, %v1016
  %v1018 = vrot.slane %v1000, 4
  %v1019 = vadd.f32 %v1000, %v1018
  %v1020 = vrot.slane %v1019, 2
  %v1021 = vadd.f32 %v1019, %v1020
  %v1022 = vrot.slane %v1021, 1
  %v1023 = vadd.f32 %v1021, %v1022
  %v1024 = vrot.slane %v1001, 4
  %v1025 = vadd.f32 %v1001, %v1024
  %v1026 = vrot.slane %v1025, 2
  %v1027 = vadd.f32 %v1025, %v1026
  %v1028 = vrot.slane %v1027, 1
  %v1029 = vadd.f32 %v1027, %v1028
  %v1030 = vrot.slane %v1002, 4
  %v1031 = vadd.f32 %v1002, %v1030
  %v1032 = vrot.slane %v1031, 2
  %v1033 = vadd.f32 %v1031, %v1032
  %v1034 = vrot.slane %v1033, 1
  %v1035 = vadd.f32 %v1033, %v1034
  %v1036 = vrot.slane %v1003, 4
  %v1037 = vadd.f32 %v1003, %v1036
  %v1038 = vrot.slane %v1037, 2
  %v1039 = vadd.f32 %v1037, %v1038
  %v1040 = vrot.slane %v1039, 1
  %v1041 = vadd.f32 %v1039, %v1040
  %v1042 = vrot.slane %v1004, 4
  %v1043 = vadd.f32 %v1004, %v1042
  %v1044 = vrot.slane %v1043, 2
  %v1045 = vadd.f32 %v1043, %v1044
  %v1046 = vrot.slane %v1045, 1
  %v1047 = vadd.f32 %v1045, %v1046
  %v1048 = vrot.slane %v1005, 4
  %v1049 = vadd.f32 %v1005, %v1048
  %v1050 = vrot.slane %v1049, 2
  %v1051 = vadd.f32 %v1049, %v1050
  %v1052 = vrot.slane %v1051, 1
  %v1053 = vadd.f32 %v1051, %v1052
  %v1054 = vmul.f32 %v1011, 0.35355338
  %v1055 = vmul.f32 %v1017, 0.35355338
  %v1056 = vmul.f32 %v1023, 0.35355338
  %v1057 = vmul.f32 %v1029, 0.35355338
  %v1058 = vmul.f32 %v1035, 0.35355338
  %v1059 = vmul.f32 %v1041, 0.35355338
  %v1060 = vmul.f32 %v1047, 0.35355338
  %v1061 = vmul.f32 %v1053, 0.35355338
  %vm1062 = vcmask 1040384
  %v1063 = vsel %vm1062, %v606, %v670
  %v1064 = vsel %vm1062, %v607, %v671
  %v1065 = vsel %vm1062, %v608, %v672
  %v1066 = vsel %vm1062, %v609, %v673
  %v1067 = vsel %vm1062, %v610, %v674
  %v1068 = vsel %vm1062, %v611, %v675
  %v1069 = vsel %vm1062, %v612, %v676
  %v1070 = vsel %vm1062, %v613, %v677
  %vm1071 = vcmask 1041408
  %v1072 = vsel %vm1071, %v1063, %v734
  %v1073 = vsel %vm1071, %v1064, %v735
  %v1074 = vsel %vm1071, %v1065, %v736
  %v1075 = vsel %vm1071, %v1066, %v737
  %v1076 = vsel %vm1071, %v1067, %v738
  %v1077 = vsel %vm1071, %v1068, %v739
  %v1078 = vsel %vm1071, %v1069, %v740
  %v1079 = vsel %vm1071, %v1070, %v741
  %vm1080 = vcmask 1042432
  %v1081 = vsel %vm1080, %v1072, %v798
  %v1082 = vsel %vm1080, %v1073, %v799
  %v1083 = vsel %vm1080, %v1074, %v800
  %v1084 = vsel %vm1080, %v1075, %v801
  %v1085 = vsel %vm1080, %v1076, %v802
  %v1086 = vsel %vm1080, %v1077, %v803
  %v1087 = vsel %vm1080, %v1078, %v804
  %v1088 = vsel %vm1080, %v1079, %v805
  %vm1089 = vcmask 1043456
  %v1090 = vsel %vm1089, %v1081, %v862
  %v1091 = vsel %vm1089, %v1082, %v863
  %v1092 = vsel %vm1089, %v1083, %v864
  %v1093 = vsel %vm1089, %v1084, %v865
  %v1094 = vsel %vm1089, %v1085, %v866
  %v1095 = vsel %vm1089, %v1086, %v867
  %v1096 = vsel %vm1089, %v1087, %v868
  %v1097 = vsel %vm1089, %v1088, %v869
  %vm1098 = vcmask 1044480
  %v1099 = vsel %vm1098, %v1090, %v926
  %v1100 = vsel %vm1098, %v1091, %v927
  %v1101 = vsel %vm1098, %v1092, %v928
  %v1102 = vsel %vm1098, %v1093, %v929
  %v1103 = vsel %vm1098, %v1094, %v930
  %v1104 = vsel %vm1098, %v1095, %v931
  %v1105 = vsel %vm1098, %v1096, %v932
  %v1106 = vsel %vm1098, %v1097, %v933
  %vm1107 = vcmask 1045504
  %v1108 = vsel %vm1107, %v1099, %v990
  %v1109 = vsel %vm1107, %v1100, %v991
  %v1110 = vsel %vm1107, %v1101, %v992
  %v1111 = vsel %vm1107, %v1102, %v993
  %v1112 = vsel %vm1107, %v1103, %v994
  %v1113 = vsel %vm1107, %v1104, %v995
  %v1114 = vsel %vm1107, %v1105, %v996
  %v1115 = vsel %vm1107, %v1106, %v997
  %vm1116 = vcmask 1046528
  %v1117 = vsel %vm1116, %v1108, %v1054
  %v1118 = vsel %vm1116, %v1109, %v1055
  %v1119 = vsel %vm1116, %v1110, %v1056
  %v1120 = vsel %vm1116, %v1111, %v1057
  %v1121 = vsel %vm1116, %v1112, %v1058
  %v1122 = vsel %vm1116, %v1113, %v1059
  %v1123 = vsel %vm1116, %v1114, %v1060
  %v1124 = vsel %vm1116, %v1115, %v1061
  %v1125 = vrot.slane %v1117, 4
  %v1126 = vmax.f32 %v1117, %v1125
  %v1127 = vrot.slane %v1126, 2
  %v1128 = vmax.f32 %v1126, %v1127
  %v1129 = vrot.slane %v1128, 1
  %v1130 = vmax.f32 %v1128, %v1129
  %v1131 = vrot.slane %v1118, 4
  %v1132 = vmax.f32 %v1118, %v1131
  %v1133 = vrot.slane %v1132, 2
  %v1134 = vmax.f32 %v1132, %v1133
  %v1135 = vrot.slane %v1134, 1
  %v1136 = vmax.f32 %v1134, %v1135
  %v1137 = vrot.slane %v1119, 4
  %v1138 = vmax.f32 %v1119, %v1137
  %v1139 = vrot.slane %v1138, 2
  %v1140 = vmax.f32 %v1138, %v1139
  %v1141 = vrot.slane %v1140, 1
  %v1142 = vmax.f32 %v1140, %v1141
  %v1143 = vrot.slane %v1120, 4
  %v1144 = vmax.f32 %v1120, %v1143
  %v1145 = vrot.slane %v1144, 2
  %v1146 = vmax.f32 %v1144, %v1145
  %v1147 = vrot.slane %v1146, 1
  %v1148 = vmax.f32 %v1146, %v1147
  %v1149 = vrot.slane %v1121, 4
  %v1150 = vmax.f32 %v1121, %v1149
  %v1151 = vrot.slane %v1150, 2
  %v1152 = vmax.f32 %v1150, %v1151
  %v1153 = vrot.slane %v1152, 1
  %v1154 = vmax.f32 %v1152, %v1153
  %v1155 = vrot.slane %v1122, 4
  %v1156 = vmax.f32 %v1122, %v1155
  %v1157 = vrot.slane %v1156, 2
  %v1158 = vmax.f32 %v1156, %v1157
  %v1159 = vrot.slane %v1158, 1
  %v1160 = vmax.f32 %v1158, %v1159
  %v1161 = vrot.slane %v1123, 4
  %v1162 = vmax.f32 %v1123, %v1161
  %v1163 = vrot.slane %v1162, 2
  %v1164 = vmax.f32 %v1162, %v1163
  %v1165 = vrot.slane %v1164, 1
  %v1166 = vmax.f32 %v1164, %v1165
  %v1167 = vrot.slane %v1124, 4
  %v1168 = vmax.f32 %v1124, %v1167
  %v1169 = vrot.slane %v1168, 2
  %v1170 = vmax.f32 %v1168, %v1169
  %v1171 = vrot.slane %v1170, 1
  %v1172 = vmax.f32 %v1170, %v1171
  %v1173 = vsub.f32 %v1117, %v1130
  %v1174 = vsub.f32 %v1118, %v1136
  %v1175 = vsub.f32 %v1119, %v1142
  %v1176 = vsub.f32 %v1120, %v1148
  %v1177 = vsub.f32 %v1121, %v1154
  %v1178 = vsub.f32 %v1122, %v1160
  %v1179 = vsub.f32 %v1123, %v1166
  %v1180 = vsub.f32 %v1124, %v1172
  %v1181 = vmul.f32 %v1173, 1.442695
  %v1182 = vpow.pop %v1181
  %v1183 = vmul.f32 %v1174, 1.442695
  %v1184 = vpow.pop %v1183
  %v1185 = vmul.f32 %v1175, 1.442695
  %v1186 = vpow.pop %v1185
  %v1187 = vmul.f32 %v1176, 1.442695
  %v1188 = vpow.pop %v1187
  %v1189 = vmul.f32 %v1177, 1.442695
  %v1190 = vpow.pop %v1189
  %v1191 = vmul.f32 %v1178, 1.442695
  %v1192 = vpow.pop %v1191
  %v1193 = vmul.f32 %v1179, 1.442695
  %v1194 = vpow.pop %v1193
  %v1195 = vmul.f32 %v1180, 1.442695
  %v1196 = vpow.pop %v1195
  %v1197 = vrot.slane %v1182, 4
  %v1198 = vadd.f32 %v1182, %v1197
  %v1199 = vrot.slane %v1198, 2
  %v1200 = vadd.f32 %v1198, %v1199
  %v1201 = vrot.slane %v1200, 1
  %v1202 = vadd.f32 %v1200, %v1201
  %v1203 = vrot.slane %v1184, 4
  %v1204 = vadd.f32 %v1184, %v1203
  %v1205 = vrot.slane %v1204, 2
  %v1206 = vadd.f32 %v1204, %v1205
  %v1207 = vrot.slane %v1206, 1
  %v1208 = vadd.f32 %v1206, %v1207
  %v1209 = vrot.slane %v1186, 4
  %v1210 = vadd.f32 %v1186, %v1209
  %v1211 = vrot.slane %v1210, 2
  %v1212 = vadd.f32 %v1210, %v1211
  %v1213 = vrot.slane %v1212, 1
  %v1214 = vadd.f32 %v1212, %v1213
  %v1215 = vrot.slane %v1188, 4
  %v1216 = vadd.f32 %v1188, %v1215
  %v1217 = vrot.slane %v1216, 2
  %v1218 = vadd.f32 %v1216, %v1217
  %v1219 = vrot.slane %v1218, 1
  %v1220 = vadd.f32 %v1218, %v1219
  %v1221 = vrot.slane %v1190, 4
  %v1222 = vadd.f32 %v1190, %v1221
  %v1223 = vrot.slane %v1222, 2
  %v1224 = vadd.f32 %v1222, %v1223
  %v1225 = vrot.slane %v1224, 1
  %v1226 = vadd.f32 %v1224, %v1225
  %v1227 = vrot.slane %v1192, 4
  %v1228 = vadd.f32 %v1192, %v1227
  %v1229 = vrot.slane %v1228, 2
  %v1230 = vadd.f32 %v1228, %v1229
  %v1231 = vrot.slane %v1230, 1
  %v1232 = vadd.f32 %v1230, %v1231
  %v1233 = vrot.slane %v1194, 4
  %v1234 = vadd.f32 %v1194, %v1233
  %v1235 = vrot.slane %v1234, 2
  %v1236 = vadd.f32 %v1234, %v1235
  %v1237 = vrot.slane %v1236, 1
  %v1238 = vadd.f32 %v1236, %v1237
  %v1239 = vrot.slane %v1196, 4
  %v1240 = vadd.f32 %v1196, %v1239
  %v1241 = vrot.slane %v1240, 2
  %v1242 = vadd.f32 %v1240, %v1241
  %v1243 = vrot.slane %v1242, 1
  %v1244 = vadd.f32 %v1242, %v1243
  %v1245 = vrcp.pop %v1202
  %v1246 = vrcp.pop %v1208
  %v1247 = vrcp.pop %v1214
  %v1248 = vrcp.pop %v1220
  %v1249 = vrcp.pop %v1226
  %v1250 = vrcp.pop %v1232
  %v1251 = vrcp.pop %v1238
  %v1252 = vrcp.pop %v1244
  %v1253 = vmul.f32 %v1182, %v1245
  %v1254 = vmul.f32 %v1184, %v1246
  %v1255 = vmul.f32 %v1186, %v1247
  %v1256 = vmul.f32 %v1188, %v1248
  %v1257 = vmul.f32 %v1190, %v1249
  %v1258 = vmul.f32 %v1192, %v1250
  %v1259 = vmul.f32 %v1194, %v1251
  %v1260 = vmul.f32 %v1196, %v1252
  %v1261 = vlaneseq
  %v1262 = vshrl.u32 %v1261, 7
  %v1263 = vsub.s32 0, %v1262
  %v1264 = vrot.slane %v1253, %v1263
  %v1265 = vlaneseq
  %v1266 = vshrl.u32 %v1265, 7
  %v1267 = vsub.s32 0, %v1266
  %v1268 = vrot.slane %v1254, %v1267
  %v1269 = vlaneseq
  %v1270 = vshrl.u32 %v1269, 7
  %v1271 = vsub.s32 0, %v1270
  %v1272 = vrot.slane %v1255, %v1271
  %v1273 = vlaneseq
  %v1274 = vshrl.u32 %v1273, 7
  %v1275 = vsub.s32 0, %v1274
  %v1276 = vrot.slane %v1256, %v1275
  %v1277 = vlaneseq
  %v1278 = vshrl.u32 %v1277, 7
  %v1279 = vsub.s32 0, %v1278
  %v1280 = vrot.slane %v1257, %v1279
  %v1281 = vlaneseq
  %v1282 = vshrl.u32 %v1281, 7
  %v1283 = vsub.s32 0, %v1282
  %v1284 = vrot.slane %v1258, %v1283
  %v1285 = vlaneseq
  %v1286 = vshrl.u32 %v1285, 7
  %v1287 = vsub.s32 0, %v1286
  %v1288 = vrot.slane %v1259, %v1287
  %v1289 = vlaneseq
  %v1290 = vshrl.u32 %v1289, 7
  %v1291 = vsub.s32 0, %v1290
  %v1292 = vrot.slane %v1260, %v1291
  %v1293 = vmul.f32 %v1264, %v542
  %v1294 = vmul.f32 %v1268, %v542
  %v1295 = vmul.f32 %v1272, %v542
  %v1296 = vmul.f32 %v1276, %v542
  %v1297 = vmul.f32 %v1280, %v542
  %v1298 = vmul.f32 %v1284, %v542
  %v1299 = vmul.f32 %v1288, %v542
  %v1300 = vmul.f32 %v1292, %v542
  %v1301 = vadd.f32 %v1293, 0.0
  %v1302 = vadd.f32 %v1294, 0.0
  %v1303 = vadd.f32 %v1295, 0.0
  %v1304 = vadd.f32 %v1296, 0.0
  %v1305 = vadd.f32 %v1297, 0.0
  %v1306 = vadd.f32 %v1298, 0.0
  %v1307 = vadd.f32 %v1299, 0.0
  %v1308 = vadd.f32 %v1300, 0.0
  %v1309 = vlaneseq
  %v1310 = vshrl.u32 %v1309, 7
  %v1311 = vsub.s32 1, %v1310
  %v1312 = vrot.slane %v1253, %v1311
  %v1313 = vlaneseq
  %v1314 = vshrl.u32 %v1313, 7
  %v1315 = vsub.s32 1, %v1314
  %v1316 = vrot.slane %v1254, %v1315
  %v1317 = vlaneseq
  %v1318 = vshrl.u32 %v1317, 7
  %v1319 = vsub.s32 1, %v1318
  %v1320 = vrot.slane %v1255, %v1319
  %v1321 = vlaneseq
  %v1322 = vshrl.u32 %v1321, 7
  %v1323 = vsub.s32 1, %v1322
  %v1324 = vrot.slane %v1256, %v1323
  %v1325 = vlaneseq
  %v1326 = vshrl.u32 %v1325, 7
  %v1327 = vsub.s32 1, %v1326
  %v1328 = vrot.slane %v1257, %v1327
  %v1329 = vlaneseq
  %v1330 = vshrl.u32 %v1329, 7
  %v1331 = vsub.s32 1, %v1330
  %v1332 = vrot.slane %v1258, %v1331
  %v1333 = vlaneseq
  %v1334 = vshrl.u32 %v1333, 7
  %v1335 = vsub.s32 1, %v1334
  %v1336 = vrot.slane %v1259, %v1335
  %v1337 = vlaneseq
  %v1338 = vshrl.u32 %v1337, 7
  %v1339 = vsub.s32 1, %v1338
  %v1340 = vrot.slane %v1260, %v1339
  %v1341 = vmul.f32 %v1312, %v543
  %v1342 = vmul.f32 %v1316, %v543
  %v1343 = vmul.f32 %v1320, %v543
  %v1344 = vmul.f32 %v1324, %v543
  %v1345 = vmul.f32 %v1328, %v543
  %v1346 = vmul.f32 %v1332, %v543
  %v1347 = vmul.f32 %v1336, %v543
  %v1348 = vmul.f32 %v1340, %v543
  %v1349 = vadd.f32 %v1301, %v1341
  %v1350 = vadd.f32 %v1302, %v1342
  %v1351 = vadd.f32 %v1303, %v1343
  %v1352 = vadd.f32 %v1304, %v1344
  %v1353 = vadd.f32 %v1305, %v1345
  %v1354 = vadd.f32 %v1306, %v1346
  %v1355 = vadd.f32 %v1307, %v1347
  %v1356 = vadd.f32 %v1308, %v1348
  %v1357 = vlaneseq
  %v1358 = vshrl.u32 %v1357, 7
  %v1359 = vsub.s32 2, %v1358
  %v1360 = vrot.slane %v1253, %v1359
  %v1361 = vlaneseq
  %v1362 = vshrl.u32 %v1361, 7
  %v1363 = vsub.s32 2, %v1362
  %v1364 = vrot.slane %v1254, %v1363
  %v1365 = vlaneseq
  %v1366 = vshrl.u32 %v1365, 7
  %v1367 = vsub.s32 2, %v1366
  %v1368 = vrot.slane %v1255, %v1367
  %v1369 = vlaneseq
  %v1370 = vshrl.u32 %v1369, 7
  %v1371 = vsub.s32 2, %v1370
  %v1372 = vrot.slane %v1256, %v1371
  %v1373 = vlaneseq
  %v1374 = vshrl.u32 %v1373, 7
  %v1375 = vsub.s32 2, %v1374
  %v1376 = vrot.slane %v1257, %v1375
  %v1377 = vlaneseq
  %v1378 = vshrl.u32 %v1377, 7
  %v1379 = vsub.s32 2, %v1378
  %v1380 = vrot.slane %v1258, %v1379
  %v1381 = vlaneseq
  %v1382 = vshrl.u32 %v1381, 7
  %v1383 = vsub.s32 2, %v1382
  %v1384 = vrot.slane %v1259, %v1383
  %v1385 = vlaneseq
  %v1386 = vshrl.u32 %v1385, 7
  %v1387 = vsub.s32 2, %v1386
  %v1388 = vrot.slane %v1260, %v1387
  %v1389 = vmul.f32 %v1360, %v544
  %v1390 = vmul.f32 %v1364, %v544
  %v1391 = vmul.f32 %v1368, %v544
  %v1392 = vmul.f32 %v1372, %v544
  %v1393 = vmul.f32 %v1376, %v544
  %v1394 = vmul.f32 %v1380, %v544
  %v1395 = vmul.f32 %v1384, %v544
  %v1396 = vmul.f32 %v1388, %v544
  %v1397 = vadd.f32 %v1349, %v1389
  %v1398 = vadd.f32 %v1350, %v1390
  %v1399 = vadd.f32 %v1351, %v1391
  %v1400 = vadd.f32 %v1352, %v1392
  %v1401 = vadd.f32 %v1353, %v1393
  %v1402 = vadd.f32 %v1354, %v1394
  %v1403 = vadd.f32 %v1355, %v1395
  %v1404 = vadd.f32 %v1356, %v1396
  %v1405 = vlaneseq
  %v1406 = vshrl.u32 %v1405, 7
  %v1407 = vsub.s32 3, %v1406
  %v1408 = vrot.slane %v1253, %v1407
  %v1409 = vlaneseq
  %v1410 = vshrl.u32 %v1409, 7
  %v1411 = vsub.s32 3, %v1410
  %v1412 = vrot.slane %v1254, %v1411
  %v1413 = vlaneseq
  %v1414 = vshrl.u32 %v1413, 7
  %v1415 = vsub.s32 3, %v1414
  %v1416 = vrot.slane %v1255, %v1415
  %v1417 = vlaneseq
  %v1418 = vshrl.u32 %v1417, 7
  %v1419 = vsub.s32 3, %v1418
  %v1420 = vrot.slane %v1256, %v1419
  %v1421 = vlaneseq
  %v1422 = vshrl.u32 %v1421, 7
  %v1423 = vsub.s32 3, %v1422
  %v1424 = vrot.slane %v1257, %v1423
  %v1425 = vlaneseq
  %v1426 = vshrl.u32 %v1425, 7
  %v1427 = vsub.s32 3, %v1426
  %v1428 = vrot.slane %v1258, %v1427
  %v1429 = vlaneseq
  %v1430 = vshrl.u32 %v1429, 7
  %v1431 = vsub.s32 3, %v1430
  %v1432 = vrot.slane %v1259, %v1431
  %v1433 = vlaneseq
  %v1434 = vshrl.u32 %v1433, 7
  %v1435 = vsub.s32 3, %v1434
  %v1436 = vrot.slane %v1260, %v1435
  %v1437 = vmul.f32 %v1408, %v545
  %v1438 = vmul.f32 %v1412, %v545
  %v1439 = vmul.f32 %v1416, %v545
  %v1440 = vmul.f32 %v1420, %v545
  %v1441 = vmul.f32 %v1424, %v545
  %v1442 = vmul.f32 %v1428, %v545
  %v1443 = vmul.f32 %v1432, %v545
  %v1444 = vmul.f32 %v1436, %v545
  %v1445 = vadd.f32 %v1397, %v1437
  %v1446 = vadd.f32 %v1398, %v1438
  %v1447 = vadd.f32 %v1399, %v1439
  %v1448 = vadd.f32 %v1400, %v1440
  %v1449 = vadd.f32 %v1401, %v1441
  %v1450 = vadd.f32 %v1402, %v1442
  %v1451 = vadd.f32 %v1403, %v1443
  %v1452 = vadd.f32 %v1404, %v1444
  %v1453 = vlaneseq
  %v1454 = vshrl.u32 %v1453, 7
  %v1455 = vsub.s32 4, %v1454
  %v1456 = vrot.slane %v1253, %v1455
  %v1457 = vlaneseq
  %v1458 = vshrl.u32 %v1457, 7
  %v1459 = vsub.s32 4, %v1458
  %v1460 = vrot.slane %v1254, %v1459
  %v1461 = vlaneseq
  %v1462 = vshrl.u32 %v1461, 7
  %v1463 = vsub.s32 4, %v1462
  %v1464 = vrot.slane %v1255, %v1463
  %v1465 = vlaneseq
  %v1466 = vshrl.u32 %v1465, 7
  %v1467 = vsub.s32 4, %v1466
  %v1468 = vrot.slane %v1256, %v1467
  %v1469 = vlaneseq
  %v1470 = vshrl.u32 %v1469, 7
  %v1471 = vsub.s32 4, %v1470
  %v1472 = vrot.slane %v1257, %v1471
  %v1473 = vlaneseq
  %v1474 = vshrl.u32 %v1473, 7
  %v1475 = vsub.s32 4, %v1474
  %v1476 = vrot.slane %v1258, %v1475
  %v1477 = vlaneseq
  %v1478 = vshrl.u32 %v1477, 7
  %v1479 = vsub.s32 4, %v1478
  %v1480 = vrot.slane %v1259, %v1479
  %v1481 = vlaneseq
  %v1482 = vshrl.u32 %v1481, 7
  %v1483 = vsub.s32 4, %v1482
  %v1484 = vrot.slane %v1260, %v1483
  %v1485 = vmul.f32 %v1456, %v546
  %v1486 = vmul.f32 %v1460, %v546
  %v1487 = vmul.f32 %v1464, %v546
  %v1488 = vmul.f32 %v1468, %v546
  %v1489 = vmul.f32 %v1472, %v546
  %v1490 = vmul.f32 %v1476, %v546
  %v1491 = vmul.f32 %v1480, %v546
  %v1492 = vmul.f32 %v1484, %v546
  %v1493 = vadd.f32 %v1445, %v1485
  %v1494 = vadd.f32 %v1446, %v1486
  %v1495 = vadd.f32 %v1447, %v1487
  %v1496 = vadd.f32 %v1448, %v1488
  %v1497 = vadd.f32 %v1449, %v1489
  %v1498 = vadd.f32 %v1450, %v1490
  %v1499 = vadd.f32 %v1451, %v1491
  %v1500 = vadd.f32 %v1452, %v1492
  %v1501 = vlaneseq
  %v1502 = vshrl.u32 %v1501, 7
  %v1503 = vsub.s32 5, %v1502
  %v1504 = vrot.slane %v1253, %v1503
  %v1505 = vlaneseq
  %v1506 = vshrl.u32 %v1505, 7
  %v1507 = vsub.s32 5, %v1506
  %v1508 = vrot.slane %v1254, %v1507
  %v1509 = vlaneseq
  %v1510 = vshrl.u32 %v1509, 7
  %v1511 = vsub.s32 5, %v1510
  %v1512 = vrot.slane %v1255, %v1511
  %v1513 = vlaneseq
  %v1514 = vshrl.u32 %v1513, 7
  %v1515 = vsub.s32 5, %v1514
  %v1516 = vrot.slane %v1256, %v1515
  %v1517 = vlaneseq
  %v1518 = vshrl.u32 %v1517, 7
  %v1519 = vsub.s32 5, %v1518
  %v1520 = vrot.slane %v1257, %v1519
  %v1521 = vlaneseq
  %v1522 = vshrl.u32 %v1521, 7
  %v1523 = vsub.s32 5, %v1522
  %v1524 = vrot.slane %v1258, %v1523
  %v1525 = vlaneseq
  %v1526 = vshrl.u32 %v1525, 7
  %v1527 = vsub.s32 5, %v1526
  %v1528 = vrot.slane %v1259, %v1527
  %v1529 = vlaneseq
  %v1530 = vshrl.u32 %v1529, 7
  %v1531 = vsub.s32 5, %v1530
  %v1532 = vrot.slane %v1260, %v1531
  %v1533 = vmul.f32 %v1504, %v547
  %v1534 = vmul.f32 %v1508, %v547
  %v1535 = vmul.f32 %v1512, %v547
  %v1536 = vmul.f32 %v1516, %v547
  %v1537 = vmul.f32 %v1520, %v547
  %v1538 = vmul.f32 %v1524, %v547
  %v1539 = vmul.f32 %v1528, %v547
  %v1540 = vmul.f32 %v1532, %v547
  %v1541 = vadd.f32 %v1493, %v1533
  %v1542 = vadd.f32 %v1494, %v1534
  %v1543 = vadd.f32 %v1495, %v1535
  %v1544 = vadd.f32 %v1496, %v1536
  %v1545 = vadd.f32 %v1497, %v1537
  %v1546 = vadd.f32 %v1498, %v1538
  %v1547 = vadd.f32 %v1499, %v1539
  %v1548 = vadd.f32 %v1500, %v1540
  %v1549 = vlaneseq
  %v1550 = vshrl.u32 %v1549, 7
  %v1551 = vsub.s32 6, %v1550
  %v1552 = vrot.slane %v1253, %v1551
  %v1553 = vlaneseq
  %v1554 = vshrl.u32 %v1553, 7
  %v1555 = vsub.s32 6, %v1554
  %v1556 = vrot.slane %v1254, %v1555
  %v1557 = vlaneseq
  %v1558 = vshrl.u32 %v1557, 7
  %v1559 = vsub.s32 6, %v1558
  %v1560 = vrot.slane %v1255, %v1559
  %v1561 = vlaneseq
  %v1562 = vshrl.u32 %v1561, 7
  %v1563 = vsub.s32 6, %v1562
  %v1564 = vrot.slane %v1256, %v1563
  %v1565 = vlaneseq
  %v1566 = vshrl.u32 %v1565, 7
  %v1567 = vsub.s32 6, %v1566
  %v1568 = vrot.slane %v1257, %v1567
  %v1569 = vlaneseq
  %v1570 = vshrl.u32 %v1569, 7
  %v1571 = vsub.s32 6, %v1570
  %v1572 = vrot.slane %v1258, %v1571
  %v1573 = vlaneseq
  %v1574 = vshrl.u32 %v1573, 7
  %v1575 = vsub.s32 6, %v1574
  %v1576 = vrot.slane %v1259, %v1575
  %v1577 = vlaneseq
  %v1578 = vshrl.u32 %v1577, 7
  %v1579 = vsub.s32 6, %v1578
  %v1580 = vrot.slane %v1260, %v1579
  %v1581 = vmul.f32 %v1552, %v548
  %v1582 = vmul.f32 %v1556, %v548
  %v1583 = vmul.f32 %v1560, %v548
  %v1584 = vmul.f32 %v1564, %v548
  %v1585 = vmul.f32 %v1568, %v548
  %v1586 = vmul.f32 %v1572, %v548
  %v1587 = vmul.f32 %v1576, %v548
  %v1588 = vmul.f32 %v1580, %v548
  %v1589 = vadd.f32 %v1541, %v1581
  %v1590 = vadd.f32 %v1542, %v1582
  %v1591 = vadd.f32 %v1543, %v1583
  %v1592 = vadd.f32 %v1544, %v1584
  %v1593 = vadd.f32 %v1545, %v1585
  %v1594 = vadd.f32 %v1546, %v1586
  %v1595 = vadd.f32 %v1547, %v1587
  %v1596 = vadd.f32 %v1548, %v1588
  %v1597 = vlaneseq
  %v1598 = vshrl.u32 %v1597, 7
  %v1599 = vsub.s32 7, %v1598
  %v1600 = vrot.slane %v1253, %v1599
  %v1601 = vlaneseq
  %v1602 = vshrl.u32 %v1601, 7
  %v1603 = vsub.s32 7, %v1602
  %v1604 = vrot.slane %v1254, %v1603
  %v1605 = vlaneseq
  %v1606 = vshrl.u32 %v1605, 7
  %v1607 = vsub.s32 7, %v1606
  %v1608 = vrot.slane %v1255, %v1607
  %v1609 = vlaneseq
  %v1610 = vshrl.u32 %v1609, 7
  %v1611 = vsub.s32 7, %v1610
  %v1612 = vrot.slane %v1256, %v1611
  %v1613 = vlaneseq
  %v1614 = vshrl.u32 %v1613, 7
  %v1615 = vsub.s32 7, %v1614
  %v1616 = vrot.slane %v1257, %v1615
  %v1617 = vlaneseq
  %v1618 = vshrl.u32 %v1617, 7
  %v1619 = vsub.s32 7, %v1618
  %v1620 = vrot.slane %v1258, %v1619
  %v1621 = vlaneseq
  %v1622 = vshrl.u32 %v1621, 7
  %v1623 = vsub.s32 7, %v1622
  %v1624 = vrot.slane %v1259, %v1623
  %v1625 = vlaneseq
  %v1626 = vshrl.u32 %v1625, 7
  %v1627 = vsub.s32 7, %v1626
  %v1628 = vrot.slane %v1260, %v1627
  %v1629 = vmul.f32 %v1600, %v549
  %v1630 = vmul.f32 %v1604, %v549
  %v1631 = vmul.f32 %v1608, %v549
  %v1632 = vmul.f32 %v1612, %v549
  %v1633 = vmul.f32 %v1616, %v549
  %v1634 = vmul.f32 %v1620, %v549
  %v1635 = vmul.f32 %v1624, %v549
  %v1636 = vmul.f32 %v1628, %v549
  %v1637 = vadd.f32 %v1589, %v1629
  %v1638 = vadd.f32 %v1590, %v1630
  %v1639 = vadd.f32 %v1591, %v1631
  %v1640 = vadd.f32 %v1592, %v1632
  %v1641 = vadd.f32 %v1593, %v1633
  %v1642 = vadd.f32 %v1594, %v1634
  %v1643 = vadd.f32 %v1595, %v1635
  %v1644 = vadd.f32 %v1596, %v1636
  %v1645 = vxor.u32 %v352, 2147483648
  %v1646 = vxor.u32 %v355, 2147483648
  %v1647 = vxor.u32 %v360, 2147483648
  %v1648 = vxor.u32 %v363, 2147483648
  %v1649 = vxor.u32 %v368, 2147483648
  %v1650 = vxor.u32 %v371, 2147483648
  %v1651 = vxor.u32 %v376, 2147483648
  %v1652 = vxor.u32 %v379, 2147483648
  %v1653 = vmul.f32 %v1645, 1.442695
  %v1654 = vpow.pop %v1653
  %v1655 = vmul.f32 %v1646, 1.442695
  %v1656 = vpow.pop %v1655
  %v1657 = vmul.f32 %v1647, 1.442695
  %v1658 = vpow.pop %v1657
  %v1659 = vmul.f32 %v1648, 1.442695
  %v1660 = vpow.pop %v1659
  %v1661 = vmul.f32 %v1649, 1.442695
  %v1662 = vpow.pop %v1661
  %v1663 = vmul.f32 %v1650, 1.442695
  %v1664 = vpow.pop %v1663
  %v1665 = vmul.f32 %v1651, 1.442695
  %v1666 = vpow.pop %v1665
  %v1667 = vmul.f32 %v1652, 1.442695
  %v1668 = vpow.pop %v1667
  %v1669 = vadd.f32 %v1654, 1.0
  %v1670 = vadd.f32 %v1656, 1.0
  %v1671 = vadd.f32 %v1658, 1.0
  %v1672 = vadd.f32 %v1660, 1.0
  %v1673 = vadd.f32 %v1662, 1.0
  %v1674 = vadd.f32 %v1664, 1.0
  %v1675 = vadd.f32 %v1666, 1.0
  %v1676 = vadd.f32 %v1668, 1.0
  %v1677 = vrcp.pop %v1669
  %v1678 = vmul.f32 1.0, %v1677
  %v1679 = vrcp.pop %v1670
  %v1680 = vmul.f32 1.0, %v1679
  %v1681 = vrcp.pop %v1671
  %v1682 = vmul.f32 1.0, %v1681
  %v1683 = vrcp.pop %v1672
  %v1684 = vmul.f32 1.0, %v1683
  %v1685 = vrcp.pop %v1673
  %v1686 = vmul.f32 1.0, %v1685
  %v1687 = vrcp.pop %v1674
  %v1688 = vmul.f32 1.0, %v1687
  %v1689 = vrcp.pop %v1675
  %v1690 = vmul.f32 1.0, %v1689
  %v1691 = vrcp.pop %v1676
  %v1692 = vmul.f32 1.0, %v1691
  %v1693 = vmul.f32 %v1637, %v1678
  %v1694 = vmul.f32 %v1638, %v1680
  %v1695 = vmul.f32 %v1639, %v1682
  %v1696 = vmul.f32 %v1640, %v1684
  %v1697 = vmul.f32 %v1641, %v1686
  %v1698 = vmul.f32 %v1642, %v1688
  %v1699 = vmul.f32 %v1643, %v1690
  %v1700 = vmul.f32 %v1644, %v1692
  %v1701 = vmul.f32 %v1693, %v1693
  %v1702 = vmul.f32 %v1694, %v1694
  %v1703 = vmul.f32 %v1695, %v1695
  %v1704 = vmul.f32 %v1696, %v1696
  %v1705 = vmul.f32 %v1697, %v1697
  %v1706 = vmul.f32 %v1698, %v1698
  %v1707 = vmul.f32 %v1699, %v1699
  %v1708 = vmul.f32 %v1700, %v1700
  %v1709 = vadd.f32 %v1701, %v1702
  %v1710 = vadd.f32 %v1709, %v1703
  %v1711 = vadd.f32 %v1710, %v1704
  %v1712 = vadd.f32 %v1711, %v1705
  %v1713 = vadd.f32 %v1712, %v1706
  %v1714 = vadd.f32 %v1713, %v1707
  %v1715 = vadd.f32 %v1714, %v1708
  %v1716 = vrot.slane %v1715, 4
  %v1717 = vadd.f32 %v1715, %v1716
  %v1718 = vrot.slane %v1717, 2
  %v1719 = vadd.f32 %v1717, %v1718
  %v1720 = vrot.slane %v1719, 1
  %v1721 = vadd.f32 %v1719, %v1720
  %v1722 = vmul.f32 %v1721, %v44
  %v1723 = vadd.f32 %v1722, 1e-06
  %v1724 = vrsqrt.pop %v1723
  %v1725 = vmul.f32 %v1693, %v1724
  %v1726 = vmul.f32 %v1694, %v1724
  %v1727 = vmul.f32 %v1695, %v1724
  %v1728 = vmul.f32 %v1696, %v1724
  %v1729 = vmul.f32 %v1697, %v1724
  %v1730 = vmul.f32 %v1698, %v1724
  %v1731 = vmul.f32 %v1699, %v1724
  %v1732 = vmul.f32 %v1700, %v1724
  %1733 = vxpose.xlu0.b32.start [1/16] %v1725, 128
  %1734 = vxpose.xlu0.b32.cont [2/16] %v1726, 128
  %1735 = vxpose.xlu0.b32.cont [3/16] %v1727, 128
  %1736 = vxpose.xlu0.b32.cont [4/16] %v1728, 128
  %1737 = vxpose.xlu0.b32.cont [5/16] %v1729, 128
  %1738 = vxpose.xlu0.b32.cont [6/16] %v1730, 128
  %1739 = vxpose.xlu0.b32.cont [7/16] %v1731, 128
  %1740 = vxpose.xlu0.b32.cont [8/16] %v1732, 128
  %1741 = vxpose.xlu0.b32.cont [9/16] 0.0, 128
  %1742 = vxpose.xlu0.b32.cont [10/16] 0.0, 128
  %1743 = vxpose.xlu0.b32.cont [11/16] 0.0, 128
  %1744 = vxpose.xlu0.b32.cont [12/16] 0.0, 128
  %1745 = vxpose.xlu0.b32.cont [13/16] 0.0, 128
  %1746 = vxpose.xlu0.b32.cont [14/16] 0.0, 128
  %1747 = vxpose.xlu0.b32.cont [15/16] 0.0, 128
  %1748 = vxpose.xlu0.b32.end [16/16] 0.0, 128
  %v1749 = vpop.trf.xlu0
  %v1750 = vpop.trf.xlu0
  %v1751 = vpop.trf.xlu0
  %v1752 = vpop.trf.xlu0
  %v1753 = vpop.trf.xlu0
  %v1754 = vpop.trf.xlu0
  %v1755 = vpop.trf.xlu0
  %v1756 = vpop.trf.xlu0
  %v1757 = vpop.trf.xlu0
  %v1758 = vpop.trf.xlu0
  %v1759 = vpop.trf.xlu0
  %v1760 = vpop.trf.xlu0
  %v1761 = vpop.trf.xlu0
  %v1762 = vpop.trf.xlu0
  %v1763 = vpop.trf.xlu0
  %v1764 = vpop.trf.xlu0
  %v1765 = vld [vmem:[%s2] sm:$0x1]
  %v1767 = vlaneseq
  %v1768 = vshrl.u32 %v1767, 7
  %v1769 = vsub.s32 0, %v1768
  %v1770 = vrot.slane %v1765, %v1769
  %v1772 = vmul.f32 %v1749, %v1770
  %v1773 = vmul.f32 %v1750, %v1770
  %v1774 = vmul.f32 %v1751, %v1770
  %v1775 = vmul.f32 %v1752, %v1770
  %v1776 = vmul.f32 %v1753, %v1770
  %v1777 = vmul.f32 %v1754, %v1770
  %v1778 = vmul.f32 %v1755, %v1770
  %v1779 = vmul.f32 %v1756, %v1770
  %v1780 = vmul.f32 %v1757, %v1770
  %v1781 = vmul.f32 %v1758, %v1770
  %v1782 = vmul.f32 %v1759, %v1770
  %v1783 = vmul.f32 %v1760, %v1770
  %v1784 = vmul.f32 %v1761, %v1770
  %v1785 = vmul.f32 %v1762, %v1770
  %v1786 = vmul.f32 %v1763, %v1770
  %v1787 = vmul.f32 %v1764, %v1770
  %1788 = vst.msk [vmem:[%s3] sm:$0xff] %vm172, %v1772
  %1789 = vst.msk [vmem:[%s3 + $0x8] sm:$0xff] %vm172, %v1773
  %1790 = vst.msk [vmem:[%s3 + $0x10] sm:$0xff] %vm172, %v1774
  %1791 = vst.msk [vmem:[%s3 + $0x18] sm:$0xff] %vm172, %v1775
  %1792 = vst.msk [vmem:[%s3 + $0x20] sm:$0xff] %vm172, %v1776
  %1793 = vst.msk [vmem:[%s3 + $0x28] sm:$0xff] %vm172, %v1777
  %1794 = vst.msk [vmem:[%s3 + $0x30] sm:$0xff] %vm172, %v1778
  %1795 = vst.msk [vmem:[%s3 + $0x38] sm:$0xff] %vm172, %v1779
  %1796 = vst.msk [vmem:[%s3 + $0x40] sm:$0xff] %vm172, %v1780
  %1797 = vst.msk [vmem:[%s3 + $0x48] sm:$0xff] %vm172, %v1781
  %1798 = vst.msk [vmem:[%s3 + $0x50] sm:$0xff] %vm172, %v1782
  %1799 = vst.msk [vmem:[%s3 + $0x58] sm:$0xff] %vm172, %v1783
  %1800 = vst.msk [vmem:[%s3 + $0x60] sm:$0xff] %vm172, %v1784
  %1801 = vst.msk [vmem:[%s3 + $0x68] sm:$0xff] %vm172, %v1785
  %1802 = vst.msk [vmem:[%s3 + $0x70] sm:$0xff] %vm172, %v1786
  %1803 = vst.msk [vmem:[%s3 + $0x78] sm:$0xff] %vm172, %v1787
  // Predicated region
  $region14: #{tpu_custom_call.1} parent=0 // pred_check
    _
  $region15: #{tpu_custom_call.1} parent=0 // pred_check_branch
    %1805 = sbr.rel (0) target = $region17
  $region16: #{tpu_custom_call.1} parent=0 // pred_region
    _
  $region17: #{tpu_custom_call.1} parent=0 // pred_fallthru
    _
  // Predicated region
  $region18: #{tpu_custom_call.1} parent=0 // pred_check
    _
  $region19: #{tpu_custom_call.1} parent=0 // pred_check_branch
    %1807 = sbr.rel (0) target = $region21
  $region20: #{tpu_custom_call.1} parent=0 // pred_region
    _
  $region21: #{tpu_custom_call.1} parent=0 // pred_fallthru
    _

// kernel: tpu_custom_call.1
$region0: #{tpu_custom_call.1}
  #allocation0 [shape = 'u32[]', space=smem, size = 0x4, offset = 0x4, fixed_abs, tag = 'smem constant byte address 0x4 - core index']
  #allocation1 [shape = 'u32[144,128]{1,0:T(1,128)}', space=vmem, size = 0x12000, scoped, tag = 'internal scratch']
  %s0 = inlined_call_operand.vmem [shape: f32[64,128], index: 0, kind: input, shape index: {}]
  %s1 = inlined_call_operand.vmem [shape: bf16[256,64], index: 1, kind: input, shape index: {}]
  %s2 = inlined_call_operand.vmem [shape: f32[1,64], index: 2, kind: input, shape index: {}]
  %s3 = inlined_call_operand.vmem [shape: f32[128,64], index: 3, kind: output, shape index: {}]
  %s4 = sld [smem:[#allocation0]]
  $region22: #{tpu_custom_call.1} parent=0
    _
  %s6 = ssub.s32 1, %s4
  %s7 = scalar_select 0, %s6, %s4
  // Predicated region
  $region2: #{tpu_custom_call.1} parent=0 // pred_check
    _
  $region3: #{tpu_custom_call.1} parent=0 // pred_check_branch
    %9 = sbr.rel (0) target = $region5
  $region4: #{tpu_custom_call.1} parent=0 // pred_region
    _
  $region5: #{tpu_custom_call.1} parent=0 // pred_fallthru
    _
  // Predicated region
  $region6: #{tpu_custom_call.1} parent=0 // pred_check
    _
  $region7: #{tpu_custom_call.1} parent=0 // pred_check_branch
    %11 = sbr.rel (0) target = $region9
  $region8: #{tpu_custom_call.1} parent=0 // pred_region
    _
  $region9: #{tpu_custom_call.1} parent=0 // pred_fallthru
    _
  // Predicated region
  $region10: #{tpu_custom_call.1} parent=0 // pred_check
    _
  $region11: #{tpu_custom_call.1} parent=0 // pred_check_branch
    %13 = sbr.rel (0) target = $region13
  $region12: #{tpu_custom_call.1} parent=0 // pred_region
    _
  $region13: #{tpu_custom_call.1} parent=0 // pred_fallthru
    _
  %v15 = vld [vmem:[%s0] sm:$0xff]
  %v16 = vld [vmem:[%s0 + $0x8] sm:$0xff]
  %v17 = vld [vmem:[%s0 + $0x10] sm:$0xff]
  %v18 = vld [vmem:[%s0 + $0x18] sm:$0xff]
  %v19 = vld [vmem:[%s0 + $0x20] sm:$0xff]
  %v20 = vld [vmem:[%s0 + $0x28] sm:$0xff]
  %v21 = vld [vmem:[%s0 + $0x30] sm:$0xff]
  %v22 = vld [vmem:[%s0 + $0x38] sm:$0xff]
  %v23 = vmul.f32 %v15, %v15
  %v24 = vmul.f32 %v16, %v16
  %v25 = vmul.f32 %v17, %v17
  %v26 = vmul.f32 %v18, %v18
  %v27 = vmul.f32 %v19, %v19
  %v28 = vmul.f32 %v20, %v20
  %v29 = vmul.f32 %v21, %v21
  %v30 = vmul.f32 %v22, %v22
  %v31 = vadd.f32 %v23, %v24
  %v32 = vadd.f32 %v31, %v25
  %v33 = vadd.f32 %v32, %v26
  %v34 = vadd.f32 %v33, %v27
  %v35 = vadd.f32 %v34, %v28
  %v36 = vadd.f32 %v35, %v29
  %v37 = vadd.f32 %v36, %v30
  %v38 = vrot.slane %v37, 4
  %v39 = vadd.f32 %v37, %v38
  %v40 = vrot.slane %v39, 2
  %v41 = vadd.f32 %v39, %v40
  %v42 = vrot.slane %v41, 1
  %v43 = vadd.f32 %v41, %v42
  %v44 = vrcp.pop 64.0
  %v45 = vmul.f32 %v43, %v44
  %v46 = vadd.f32 %v45, 1e-06
  %v47 = vrsqrt.pop %v46
  %v48 = vmul.f32 %v15, %v47
  %v49 = vmul.f32 %v16, %v47
  %v50 = vmul.f32 %v17, %v47
  %v51 = vmul.f32 %v18, %v47
  %v52 = vmul.f32 %v19, %v47
  %v53 = vmul.f32 %v20, %v47
  %v54 = vmul.f32 %v21, %v47
  %v55 = vmul.f32 %v22, %v47
  %v56 = vpack.c.bf16 %v49, %v48
  %v57 = vpack.c.bf16 %v51, %v50
  %v58 = vpack.c.bf16 %v53, %v52
  %v59 = vpack.c.bf16 %v55, %v54
  %v60 = vld [vmem:[%s1] sm:$0xf]
  %v61 = vld [vmem:[%s1 + $0x4] sm:$0xf]
  %v62 = vld [vmem:[%s1 + $0x8] sm:$0xf]
  %v63 = vld [vmem:[%s1 + $0xc] sm:$0xf]
  %v64 = vld [vmem:[%s1 + $0x10] sm:$0xf]
  %v65 = vld [vmem:[%s1 + $0x14] sm:$0xf]
  %v66 = vld [vmem:[%s1 + $0x18] sm:$0xf]
  %v67 = vld [vmem:[%s1 + $0x1c] sm:$0xf]
  %v68 = vld [vmem:[%s1 + $0x20] sm:$0xf]
  %v69 = vld [vmem:[%s1 + $0x24] sm:$0xf]
  %v70 = vld [vmem:[%s1 + $0x28] sm:$0xf]
  %v71 = vld [vmem:[%s1 + $0x2c] sm:$0xf]
  %v72 = vld [vmem:[%s1 + $0x30] sm:$0xf]
  %v73 = vld [vmem:[%s1 + $0x34] sm:$0xf]
  %v74 = vld [vmem:[%s1 + $0x38] sm:$0xf]
  %v75 = vld [vmem:[%s1 + $0x3c] sm:$0xf]
  %v76 = vld [vmem:[%s1 + $0x40] sm:$0xf]
  %v77 = vld [vmem:[%s1 + $0x44] sm:$0xf]
  %v78 = vld [vmem:[%s1 + $0x48] sm:$0xf]
  %v79 = vld [vmem:[%s1 + $0x4c] sm:$0xf]
  %v80 = vld [vmem:[%s1 + $0x50] sm:$0xf]
  %v81 = vld [vmem:[%s1 + $0x54] sm:$0xf]
  %v82 = vld [vmem:[%s1 + $0x58] sm:$0xf]
  %v83 = vld [vmem:[%s1 + $0x5c] sm:$0xf]
  %v84 = vld [vmem:[%s1 + $0x60] sm:$0xf]
  %v85 = vld [vmem:[%s1 + $0x64] sm:$0xf]
  %v86 = vld [vmem:[%s1 + $0x68] sm:$0xf]
  %v87 = vld [vmem:[%s1 + $0x6c] sm:$0xf]
  %v88 = vld [vmem:[%s1 + $0x70] sm:$0xf]
  %v89 = vld [vmem:[%s1 + $0x74] sm:$0xf]
  %v90 = vld [vmem:[%s1 + $0x78] sm:$0xf]
  %v91 = vld [vmem:[%s1 + $0x7c] sm:$0xf]
  %v124 = vunpack.c.l.b16 %v60
  %v125 = vunpack.c.l.b16 %v61
  %v126 = vunpack.c.l.b16 %v62
  %v127 = vunpack.c.l.b16 %v63
  %v128 = vunpack.c.l.b16 %v64
  %v129 = vunpack.c.l.b16 %v65
  %v130 = vunpack.c.l.b16 %v66
  %v131 = vunpack.c.l.b16 %v67
  %v132 = vunpack.c.l.b16 %v68
  %v133 = vunpack.c.l.b16 %v69
  %v134 = vunpack.c.l.b16 %v70
  %v135 = vunpack.c.l.b16 %v71
  %v136 = vunpack.c.l.b16 %v72
  %v137 = vunpack.c.l.b16 %v73
  %v138 = vunpack.c.l.b16 %v74
  %v139 = vunpack.c.l.b16 %v75
  %v140 = vunpack.c.l.b16 %v76
  %v141 = vunpack.c.l.b16 %v77
  %v142 = vunpack.c.l.b16 %v78
  %v143 = vunpack.c.l.b16 %v79
  %v144 = vunpack.c.l.b16 %v80
  %v145 = vunpack.c.l.b16 %v81
  %v146 = vunpack.c.l.b16 %v82
  %v147 = vunpack.c.l.b16 %v83
  %v148 = vunpack.c.l.b16 %v84
  %v149 = vunpack.c.l.b16 %v85
  %v150 = vunpack.c.l.b16 %v86
  %v151 = vunpack.c.l.b16 %v87
  %v152 = vunpack.c.l.b16 %v88
  %v153 = vunpack.c.l.b16 %v89
  %v154 = vunpack.c.l.b16 %v90
  %v155 = vunpack.c.l.b16 %v91
  %v156 = vpack.c.b16 %v125, %v124
  %v157 = vpack.c.b16 %v127, %v126
  %v158 = vpack.c.b16 %v129, %v128
  %v159 = vpack.c.b16 %v131, %v130
  %v160 = vpack.c.b16 %v133, %v132
  %v161 = vpack.c.b16 %v135, %v134
  %v162 = vpack.c.b16 %v137, %v136
  %v163 = vpack.c.b16 %v139, %v138
  %v164 = vpack.c.b16 %v141, %v140
  %v165 = vpack.c.b16 %v143, %v142
  %v166 = vpack.c.b16 %v145, %v144
  %v167 = vpack.c.b16 %v147, %v146
  %v168 = vpack.c.b16 %v149, %v148
  %v169 = vpack.c.b16 %v151, %v150
  %v170 = vpack.c.b16 %v153, %v152
  %v171 = vpack.c.b16 %v155, %v154
  %vm172 = vcmask 523264
  %v174 = vsel %vm172, %v156, 0
  %v177 = vsel %vm172, %v157, 0
  %v180 = vsel %vm172, %v158, 0
  %v183 = vsel %vm172, %v159, 0
  %v186 = vsel %vm172, %v160, 0
  %v189 = vsel %vm172, %v161, 0
  %v192 = vsel %vm172, %v162, 0
  %v195 = vsel %vm172, %v163, 0
  %v198 = vsel %vm172, %v164, 0
  %v201 = vsel %vm172, %v165, 0
  %v204 = vsel %vm172, %v166, 0
  %v207 = vsel %vm172, %v167, 0
  %v210 = vsel %vm172, %v168, 0
  %v213 = vsel %vm172, %v169, 0
  %v216 = vsel %vm172, %v170, 0
  %v219 = vsel %vm172, %v171, 0
  %221 = vmatprep.subr.bf16.mxu0 0
  %222 = vmatpush1.bf16.msra.mxu0 0
  %223 = vmatprep.subr.bf16.mxu0 0
  %224 = vmatpush1.bf16.msra.mxu0 0
  %225 = vmatprep.subr.bf16.mxu0 0
  %226 = vmatpush1.bf16.msra.mxu0 0
  %227 = vmatprep.subr.bf16.mxu0 0
  %228 = vmatpush1.bf16.msra.mxu0 0
  %229 = vmatprep.subr.bf16.mxu0 0
  %230 = vmatpush1.bf16.msra.mxu0 %v59
  %231 = vmatprep.subr.bf16.mxu0 0
  %232 = vmatpush1.bf16.msra.mxu0 %v58
  %233 = vmatprep.subr.bf16.mxu0 0
  %234 = vmatpush1.bf16.msra.mxu0 %v57
  %235 = vmatprep.subr.bf16.mxu0 0
  %236 = vmatpush1.bf16.msra.mxu0 %v56
  %237 = vmatprep.subr.bf16.mxu0 0
  %238 = vmatpush2.bf16.msra.mxu0 0
  %239 = vmatprep.subr.bf16.mxu0 0
  %240 = vmatpush2.bf16.msra.mxu0 0
  %241 = vmatprep.subr.bf16.mxu0 0
  %242 = vmatpush2.bf16.msra.mxu0 0
  %243 = vmatprep.subr.bf16.mxu0 0
  %244 = vmatpush2.bf16.msra.mxu0 0
  %245 = vmatprep.subr.bf16.mxu0 0
  %246 = vmatpush2.bf16.msra.mxu0 0
  %247 = vmatprep.subr.bf16.mxu0 0
  %248 = vmatpush2.bf16.msra.mxu0 0
  %249 = vmatprep.subr.bf16.mxu0 0
  %250 = vmatpush2.bf16.msra.mxu0 0
  %251 = vmatprep.subr.bf16.mxu0 0
  %252 = vmatpush2.bf16.msra.mxu0 0
  %253 = vmatprep.mubr.bf16.mxu0 0
  %254 = vmatmul.mubr.bf16.gmra.mxu0 %v174
  %v255 = vpop.f32.mrf.mxu0
  %v256 = vadd.f32 0.0, %v255
  %v257 = vpop.f32.mrf.mxu0
  %v258 = vpop.f32.mrf.mxu0
  %v259 = vadd.f32 0.0, %v258
  %v260 = vpop.f32.mrf.mxu0
  %261 = vmatprep.mubr.bf16.mxu0 0
  %262 = vmatmul.mubr.bf16.gmra.mxu0 %v177
  %v263 = vpop.f32.mrf.mxu0
  %v264 = vadd.f32 0.0, %v263
  %v265 = vpop.f32.mrf.mxu0
  %v266 = vpop.f32.mrf.mxu0
  %v267 = vadd.f32 0.0, %v266
  %v268 = vpop.f32.mrf.mxu0
  %269 = vmatprep.mubr.bf16.mxu0 0
  %270 = vmatmul.mubr.bf16.gmra.mxu0 %v180
  %v271 = vpop.f32.mrf.mxu0
  %v272 = vadd.f32 0.0, %v271
  %v273 = vpop.f32.mrf.mxu0
  %v274 = vpop.f32.mrf.mxu0
  %v275 = vadd.f32 0.0, %v274
  %v276 = vpop.f32.mrf.mxu0
  %277 = vmatprep.mubr.bf16.mxu0 0
  %278 = vmatmul.mubr.bf16.gmra.mxu0 %v183
  %v279 = vpop.f32.mrf.mxu0
  %v280 = vadd.f32 0.0, %v279
  %v281 = vpop.f32.mrf.mxu0
  %v282 = vpop.f32.mrf.mxu0
  %v283 = vadd.f32 0.0, %v282
  %v284 = vpop.f32.mrf.mxu0
  %285 = vmatprep.mubr.bf16.mxu0 0
  %286 = vmatmul.mubr.bf16.gmra.mxu0 %v186
  %v287 = vpop.f32.mrf.mxu0
  %v288 = vadd.f32 0.0, %v287
  %v289 = vpop.f32.mrf.mxu0
  %v290 = vpop.f32.mrf.mxu0
  %v291 = vadd.f32 0.0, %v290
  %v292 = vpop.f32.mrf.mxu0
  %293 = vmatprep.mubr.bf16.mxu0 0
  %294 = vmatmul.mubr.bf16.gmra.mxu0 %v189
  %v295 = vpop.f32.mrf.mxu0
  %v296 = vadd.f32 0.0, %v295
  %v297 = vpop.f32.mrf.mxu0
  %v298 = vpop.f32.mrf.mxu0
  %v299 = vadd.f32 0.0, %v298
  %v300 = vpop.f32.mrf.mxu0
  %301 = vmatprep.mubr.bf16.mxu0 0
  %302 = vmatmul.mubr.bf16.gmra.mxu0 %v192
  %v303 = vpop.f32.mrf.mxu0
  %v304 = vadd.f32 0.0, %v303
  %v305 = vpop.f32.mrf.mxu0
  %v306 = vpop.f32.mrf.mxu0
  %v307 = vadd.f32 0.0, %v306
  %v308 = vpop.f32.mrf.mxu0
  %309 = vmatprep.mubr.bf16.mxu0 0
  %310 = vmatmul.mubr.bf16.gmra.mxu0 %v195
  %v311 = vpop.f32.mrf.mxu0
  %v312 = vadd.f32 0.0, %v311
  %v313 = vpop.f32.mrf.mxu0
  %v314 = vpop.f32.mrf.mxu0
  %v315 = vadd.f32 0.0, %v314
  %v316 = vpop.f32.mrf.mxu0
  %317 = vmatprep.mubr.bf16.mxu0 0
  %318 = vmatmul.mubr.bf16.gmra.mxu0 %v198
  %v319 = vpop.f32.mrf.mxu0
  %v320 = vadd.f32 0.0, %v319
  %v321 = vpop.f32.mrf.mxu0
  %v322 = vpop.f32.mrf.mxu0
  %v323 = vadd.f32 0.0, %v322
  %v324 = vpop.f32.mrf.mxu0
  %325 = vmatprep.mubr.bf16.mxu0 0
  %326 = vmatmul.mubr.bf16.gmra.mxu0 %v201
  %v327 = vpop.f32.mrf.mxu0
  %v328 = vadd.f32 0.0, %v327
  %v329 = vpop.f32.mrf.mxu0
  %v330 = vpop.f32.mrf.mxu0
  %v331 = vadd.f32 0.0, %v330
  %v332 = vpop.f32.mrf.mxu0
  %333 = vmatprep.mubr.bf16.mxu0 0
  %334 = vmatmul.mubr.bf16.gmra.mxu0 %v204
  %v335 = vpop.f32.mrf.mxu0
  %v336 = vadd.f32 0.0, %v335
  %v337 = vpop.f32.mrf.mxu0
  %v338 = vpop.f32.mrf.mxu0
  %v339 = vadd.f32 0.0, %v338
  %v340 = vpop.f32.mrf.mxu0
  %341 = vmatprep.mubr.bf16.mxu0 0
  %342 = vmatmul.mubr.bf16.gmra.mxu0 %v207
  %v343 = vpop.f32.mrf.mxu0
  %v344 = vadd.f32 0.0, %v343
  %v345 = vpop.f32.mrf.mxu0
  %v346 = vpop.f32.mrf.mxu0
  %v347 = vadd.f32 0.0, %v346
  %v348 = vpop.f32.mrf.mxu0
  %349 = vmatprep.mubr.bf16.mxu0 0
  %350 = vmatmul.mubr.bf16.gmra.mxu0 %v210
  %v351 = vpop.f32.mrf.mxu0
  %v352 = vadd.f32 0.0, %v351
  %v353 = vpop.f32.mrf.mxu0
  %v354 = vpop.f32.mrf.mxu0
  %v355 = vadd.f32 0.0, %v354
  %v356 = vpop.f32.mrf.mxu0
  %357 = vmatprep.mubr.bf16.mxu0 0
  %358 = vmatmul.mubr.bf16.gmra.mxu0 %v213
  %v359 = vpop.f32.mrf.mxu0
  %v360 = vadd.f32 0.0, %v359
  %v361 = vpop.f32.mrf.mxu0
  %v362 = vpop.f32.mrf.mxu0
  %v363 = vadd.f32 0.0, %v362
  %v364 = vpop.f32.mrf.mxu0
  %365 = vmatprep.mubr.bf16.mxu0 0
  %366 = vmatmul.mubr.bf16.gmra.mxu0 %v216
  %v367 = vpop.f32.mrf.mxu0
  %v368 = vadd.f32 0.0, %v367
  %v369 = vpop.f32.mrf.mxu0
  %v370 = vpop.f32.mrf.mxu0
  %v371 = vadd.f32 0.0, %v370
  %v372 = vpop.f32.mrf.mxu0
  %373 = vmatprep.mubr.bf16.mxu0 0
  %374 = vmatmul.mubr.bf16.gmra.mxu0 %v219
  %v375 = vpop.f32.mrf.mxu0
  %v376 = vadd.f32 0.0, %v375
  %v377 = vpop.f32.mrf.mxu0
  %v378 = vpop.f32.mrf.mxu0
  %v379 = vadd.f32 0.0, %v378
  %v380 = vpop.f32.mrf.mxu0
  %381 = vdwg.mxu0
  %v382 = vxor.u32 %v256, 2147483648
  %v383 = vxor.u32 %v259, 2147483648
  %v384 = vxor.u32 %v264, 2147483648
  %v385 = vxor.u32 %v267, 2147483648
  %v386 = vxor.u32 %v272, 2147483648
  %v387 = vxor.u32 %v275, 2147483648
  %v388 = vxor.u32 %v280, 2147483648
  %v389 = vxor.u32 %v283, 2147483648
  %v390 = vmul.f32 %v382, 1.442695
  %v391 = vpow.pop %v390
  %v392 = vmul.f32 %v383, 1.442695
  %v393 = vpow.pop %v392
  %v394 = vmul.f32 %v384, 1.442695
  %v395 = vpow.pop %v394
  %v396 = vmul.f32 %v385, 1.442695
  %v397 = vpow.pop %v396
  %v398 = vmul.f32 %v386, 1.442695
  %v399 = vpow.pop %v398
  %v400 = vmul.f32 %v387, 1.442695
  %v401 = vpow.pop %v400
  %v402 = vmul.f32 %v388, 1.442695
  %v403 = vpow.pop %v402
  %v404 = vmul.f32 %v389, 1.442695
  %v405 = vpow.pop %v404
  %v406 = vadd.f32 %v391, 1.0
  %v407 = vadd.f32 %v393, 1.0
  %v408 = vadd.f32 %v395, 1.0
  %v409 = vadd.f32 %v397, 1.0
  %v410 = vadd.f32 %v399, 1.0
  %v411 = vadd.f32 %v401, 1.0
  %v412 = vadd.f32 %v403, 1.0
  %v413 = vadd.f32 %v405, 1.0
  %v414 = vrcp.pop %v406
  %v415 = vmul.f32 1.0, %v414
  %v416 = vrcp.pop %v407
  %v417 = vmul.f32 1.0, %v416
  %v418 = vrcp.pop %v408
  %v419 = vmul.f32 1.0, %v418
  %v420 = vrcp.pop %v409
  %v421 = vmul.f32 1.0, %v420
  %v422 = vrcp.pop %v410
  %v423 = vmul.f32 1.0, %v422
  %v424 = vrcp.pop %v411
  %v425 = vmul.f32 1.0, %v424
  %v426 = vrcp.pop %v412
  %v427 = vmul.f32 1.0, %v426
  %v428 = vrcp.pop %v413
  %v429 = vmul.f32 1.0, %v428
  %v430 = vmul.f32 %v256, %v415
  %v431 = vmul.f32 %v259, %v417
  %v432 = vmul.f32 %v264, %v419
  %v433 = vmul.f32 %v267, %v421
  %v434 = vmul.f32 %v272, %v423
  %v435 = vmul.f32 %v275, %v425
  %v436 = vmul.f32 %v280, %v427
  %v437 = vmul.f32 %v283, %v429
  %v438 = vxor.u32 %v288, 2147483648
  %v439 = vxor.u32 %v291, 2147483648
  %v440 = vxor.u32 %v296, 2147483648
  %v441 = vxor.u32 %v299, 2147483648
  %v442 = vxor.u32 %v304, 2147483648
  %v443 = vxor.u32 %v307, 2147483648
  %v444 = vxor.u32 %v312, 2147483648
  %v445 = vxor.u32 %v315, 2147483648
  %v446 = vmul.f32 %v438, 1.442695
  %v447 = vpow.pop %v446
  %v448 = vmul.f32 %v439, 1.442695
  %v449 = vpow.pop %v448
  %v450 = vmul.f32 %v440, 1.442695
  %v451 = vpow.pop %v450
  %v452 = vmul.f32 %v441, 1.442695
  %v453 = vpow.pop %v452
  %v454 = vmul.f32 %v442, 1.442695
  %v455 = vpow.pop %v454
  %v456 = vmul.f32 %v443, 1.442695
  %v457 = vpow.pop %v456
  %v458 = vmul.f32 %v444, 1.442695
  %v459 = vpow.pop %v458
  %v460 = vmul.f32 %v445, 1.442695
  %v461 = vpow.pop %v460
  %v462 = vadd.f32 %v447, 1.0
  %v463 = vadd.f32 %v449, 1.0
  %v464 = vadd.f32 %v451, 1.0
  %v465 = vadd.f32 %v453, 1.0
  %v466 = vadd.f32 %v455, 1.0
  %v467 = vadd.f32 %v457, 1.0
  %v468 = vadd.f32 %v459, 1.0
  %v469 = vadd.f32 %v461, 1.0
  %v470 = vrcp.pop %v462
  %v471 = vmul.f32 1.0, %v470
  %v472 = vrcp.pop %v463
  %v473 = vmul.f32 1.0, %v472
  %v474 = vrcp.pop %v464
  %v475 = vmul.f32 1.0, %v474
  %v476 = vrcp.pop %v465
  %v477 = vmul.f32 1.0, %v476
  %v478 = vrcp.pop %v466
  %v479 = vmul.f32 1.0, %v478
  %v480 = vrcp.pop %v467
  %v481 = vmul.f32 1.0, %v480
  %v482 = vrcp.pop %v468
  %v483 = vmul.f32 1.0, %v482
  %v484 = vrcp.pop %v469
  %v485 = vmul.f32 1.0, %v484
  %v486 = vmul.f32 %v288, %v471
  %v487 = vmul.f32 %v291, %v473
  %v488 = vmul.f32 %v296, %v475
  %v489 = vmul.f32 %v299, %v477
  %v490 = vmul.f32 %v304, %v479
  %v491 = vmul.f32 %v307, %v481
  %v492 = vmul.f32 %v312, %v483
  %v493 = vmul.f32 %v315, %v485
  %v494 = vxor.u32 %v320, 2147483648
  %v495 = vxor.u32 %v323, 2147483648
  %v496 = vxor.u32 %v328, 2147483648
  %v497 = vxor.u32 %v331, 2147483648
  %v498 = vxor.u32 %v336, 2147483648
  %v499 = vxor.u32 %v339, 2147483648
  %v500 = vxor.u32 %v344, 2147483648
  %v501 = vxor.u32 %v347, 2147483648
  %v502 = vmul.f32 %v494, 1.442695
  %v503 = vpow.pop %v502
  %v504 = vmul.f32 %v495, 1.442695
  %v505 = vpow.pop %v504
  %v506 = vmul.f32 %v496, 1.442695
  %v507 = vpow.pop %v506
  %v508 = vmul.f32 %v497, 1.442695
  %v509 = vpow.pop %v508
  %v510 = vmul.f32 %v498, 1.442695
  %v511 = vpow.pop %v510
  %v512 = vmul.f32 %v499, 1.442695
  %v513 = vpow.pop %v512
  %v514 = vmul.f32 %v500, 1.442695
  %v515 = vpow.pop %v514
  %v516 = vmul.f32 %v501, 1.442695
  %v517 = vpow.pop %v516
  %v518 = vadd.f32 %v503, 1.0
  %v519 = vadd.f32 %v505, 1.0
  %v520 = vadd.f32 %v507, 1.0
  %v521 = vadd.f32 %v509, 1.0
  %v522 = vadd.f32 %v511, 1.0
  %v523 = vadd.f32 %v513, 1.0
  %v524 = vadd.f32 %v515, 1.0
  %v525 = vadd.f32 %v517, 1.0
  %v526 = vrcp.pop %v518
  %v527 = vmul.f32 1.0, %v526
  %v528 = vrcp.pop %v519
  %v529 = vmul.f32 1.0, %v528
  %v530 = vrcp.pop %v520
  %v531 = vmul.f32 1.0, %v530
  %v532 = vrcp.pop %v521
  %v533 = vmul.f32 1.0, %v532
  %v534 = vrcp.pop %v522
  %v535 = vmul.f32 1.0, %v534
  %v536 = vrcp.pop %v523
  %v537 = vmul.f32 1.0, %v536
  %v538 = vrcp.pop %v524
  %v539 = vmul.f32 1.0, %v538
  %v540 = vrcp.pop %v525
  %v541 = vmul.f32 1.0, %v540
  %v542 = vmul.f32 %v320, %v527
  %v543 = vmul.f32 %v323, %v529
  %v544 = vmul.f32 %v328, %v531
  %v545 = vmul.f32 %v331, %v533
  %v546 = vmul.f32 %v336, %v535
  %v547 = vmul.f32 %v339, %v537
  %v548 = vmul.f32 %v344, %v539
  %v549 = vmul.f32 %v347, %v541
  %v550 = vmul.f32 %v430, %v486
  %v551 = vmul.f32 %v431, %v486
  %v552 = vmul.f32 %v432, %v486
  %v553 = vmul.f32 %v433, %v486
  %v554 = vmul.f32 %v434, %v486
  %v555 = vmul.f32 %v435, %v486
  %v556 = vmul.f32 %v436, %v486
  %v557 = vmul.f32 %v437, %v486
  %v558 = vrot.slane %v550, 4
  %v559 = vadd.f32 %v550, %v558
  %v560 = vrot.slane %v559, 2
  %v561 = vadd.f32 %v559, %v560
  %v562 = vrot.slane %v561, 1
  %v563 = vadd.f32 %v561, %v562
  %v564 = vrot.slane %v551, 4
  %v565 = vadd.f32 %v551, %v564
  %v566 = vrot.slane %v565, 2
  %v567 = vadd.f32 %v565, %v566
  %v568 = vrot.slane %v567, 1
  %v569 = vadd.f32 %v567, %v568
  %v570 = vrot.slane %v552, 4
  %v571 = vadd.f32 %v552, %v570
  %v572 = vrot.slane %v571, 2
  %v573 = vadd.f32 %v571, %v572
  %v574 = vrot.slane %v573, 1
  %v575 = vadd.f32 %v573, %v574
  %v576 = vrot.slane %v553, 4
  %v577 = vadd.f32 %v553, %v576
  %v578 = vrot.slane %v577, 2
  %v579 = vadd.f32 %v577, %v578
  %v580 = vrot.slane %v579, 1
  %v581 = vadd.f32 %v579, %v580
  %v582 = vrot.slane %v554, 4
  %v583 = vadd.f32 %v554, %v582
  %v584 = vrot.slane %v583, 2
  %v585 = vadd.f32 %v583, %v584
  %v586 = vrot.slane %v585, 1
  %v587 = vadd.f32 %v585, %v586
  %v588 = vrot.slane %v555, 4
  %v589 = vadd.f32 %v555, %v588
  %v590 = vrot.slane %v589, 2
  %v591 = vadd.f32 %v589, %v590
  %v592 = vrot.slane %v591, 1
  %v593 = vadd.f32 %v591, %v592
  %v594 = vrot.slane %v556, 4
  %v595 = vadd.f32 %v556, %v594
  %v596 = vrot.slane %v595, 2
  %v597 = vadd.f32 %v595, %v596
  %v598 = vrot.slane %v597, 1
  %v599 = vadd.f32 %v597, %v598
  %v600 = vrot.slane %v557, 4
  %v601 = vadd.f32 %v557, %v600
  %v602 = vrot.slane %v601, 2
  %v603 = vadd.f32 %v601, %v602
  %v604 = vrot.slane %v603, 1
  %v605 = vadd.f32 %v603, %v604
  %v606 = vmul.f32 %v563, 0.35355338
  %v607 = vmul.f32 %v569, 0.35355338
  %v608 = vmul.f32 %v575, 0.35355338
  %v609 = vmul.f32 %v581, 0.35355338
  %v610 = vmul.f32 %v587, 0.35355338
  %v611 = vmul.f32 %v593, 0.35355338
  %v612 = vmul.f32 %v599, 0.35355338
  %v613 = vmul.f32 %v605, 0.35355338
  %v614 = vmul.f32 %v430, %v487
  %v615 = vmul.f32 %v431, %v487
  %v616 = vmul.f32 %v432, %v487
  %v617 = vmul.f32 %v433, %v487
  %v618 = vmul.f32 %v434, %v487
  %v619 = vmul.f32 %v435, %v487
  %v620 = vmul.f32 %v436, %v487
  %v621 = vmul.f32 %v437, %v487
  %v622 = vrot.slane %v614, 4
  %v623 = vadd.f32 %v614, %v622
  %v624 = vrot.slane %v623, 2
  %v625 = vadd.f32 %v623, %v624
  %v626 = vrot.slane %v625, 1
  %v627 = vadd.f32 %v625, %v626
  %v628 = vrot.slane %v615, 4
  %v629 = vadd.f32 %v615, %v628
  %v630 = vrot.slane %v629, 2
  %v631 = vadd.f32 %v629, %v630
  %v632 = vrot.slane %v631, 1
  %v633 = vadd.f32 %v631, %v632
  %v634 = vrot.slane %v616, 4
  %v635 = vadd.f32 %v616, %v634
  %v636 = vrot.slane %v635, 2
  %v637 = vadd.f32 %v635, %v636
  %v638 = vrot.slane %v637, 1
  %v639 = vadd.f32 %v637, %v638
  %v640 = vrot.slane %v617, 4
  %v641 = vadd.f32 %v617, %v640
  %v642 = vrot.slane %v641, 2
  %v643 = vadd.f32 %v641, %v642
  %v644 = vrot.slane %v643, 1
  %v645 = vadd.f32 %v643, %v644
  %v646 = vrot.slane %v618, 4
  %v647 = vadd.f32 %v618, %v646
  %v648 = vrot.slane %v647, 2
  %v649 = vadd.f32 %v647, %v648
  %v650 = vrot.slane %v649, 1
  %v651 = vadd.f32 %v649, %v650
  %v652 = vrot.slane %v619, 4
  %v653 = vadd.f32 %v619, %v652
  %v654 = vrot.slane %v653, 2
  %v655 = vadd.f32 %v653, %v654
  %v656 = vrot.slane %v655, 1
  %v657 = vadd.f32 %v655, %v656
  %v658 = vrot.slane %v620, 4
  %v659 = vadd.f32 %v620, %v658
  %v660 = vrot.slane %v659, 2
  %v661 = vadd.f32 %v659, %v660
  %v662 = vrot.slane %v661, 1
  %v663 = vadd.f32 %v661, %v662
  %v664 = vrot.slane %v621, 4
  %v665 = vadd.f32 %v621, %v664
  %v666 = vrot.slane %v665, 2
  %v667 = vadd.f32 %v665, %v666
  %v668 = vrot.slane %v667, 1
  %v669 = vadd.f32 %v667, %v668
  %v670 = vmul.f32 %v627, 0.35355338
  %v671 = vmul.f32 %v633, 0.35355338
  %v672 = vmul.f32 %v639, 0.35355338
  %v673 = vmul.f32 %v645, 0.35355338
  %v674 = vmul.f32 %v651, 0.35355338
  %v675 = vmul.f32 %v657, 0.35355338
  %v676 = vmul.f32 %v663, 0.35355338
  %v677 = vmul.f32 %v669, 0.35355338
  %v678 = vmul.f32 %v430, %v488
  %v679 = vmul.f32 %v431, %v488
  %v680 = vmul.f32 %v432, %v488
  %v681 = vmul.f32 %v433, %v488
  %v682 = vmul.f32 %v434, %v488
  %v683 = vmul.f32 %v435, %v488
  %v684 = vmul.f32 %v436, %v488
  %v685 = vmul.f32 %v437, %v488
  %v686 = vrot.slane %v678, 4
  %v687 = vadd.f32 %v678, %v686
  %v688 = vrot.slane %v687, 2
  %v689 = vadd.f32 %v687, %v688
  %v690 = vrot.slane %v689, 1
  %v691 = vadd.f32 %v689, %v690
  %v692 = vrot.slane %v679, 4
  %v693 = vadd.f32 %v679, %v692
  %v694 = vrot.slane %v693, 2
  %v695 = vadd.f32 %v693, %v694
  %v696 = vrot.slane %v695, 1
  %v697 = vadd.f32 %v695, %v696
  %v698 = vrot.slane %v680, 4
  %v699 = vadd.f32 %v680, %v698
  %v700 = vrot.slane %v699, 2
  %v701 = vadd.f32 %v699, %v700
  %v702 = vrot.slane %v701, 1
  %v703 = vadd.f32 %v701, %v702
  %v704 = vrot.slane %v681, 4
  %v705 = vadd.f32 %v681, %v704
  %v706 = vrot.slane %v705, 2
  %v707 = vadd.f32 %v705, %v706
  %v708 = vrot.slane %v707, 1
  %v709 = vadd.f32 %v707, %v708
  %v710 = vrot.slane %v682, 4
  %v711 = vadd.f32 %v682, %v710
  %v712 = vrot.slane %v711, 2
  %v713 = vadd.f32 %v711, %v712
  %v714 = vrot.slane %v713, 1
  %v715 = vadd.f32 %v713, %v714
  %v716 = vrot.slane %v683, 4
  %v717 = vadd.f32 %v683, %v716
  %v718 = vrot.slane %v717, 2
  %v719 = vadd.f32 %v717, %v718
  %v720 = vrot.slane %v719, 1
  %v721 = vadd.f32 %v719, %v720
  %v722 = vrot.slane %v684, 4
  %v723 = vadd.f32 %v684, %v722
  %v724 = vrot.slane %v723, 2
  %v725 = vadd.f32 %v723, %v724
  %v726 = vrot.slane %v725, 1
  %v727 = vadd.f32 %v725, %v726
  %v728 = vrot.slane %v685, 4
  %v729 = vadd.f32 %v685, %v728
  %v730 = vrot.slane %v729, 2
  %v731 = vadd.f32 %v729, %v730
  %v732 = vrot.slane %v731, 1
  %v733 = vadd.f32 %v731, %v732
  %v734 = vmul.f32 %v691, 0.35355338
  %v735 = vmul.f32 %v697, 0.35355338
  %v736 = vmul.f32 %v703, 0.35355338
  %v737 = vmul.f32 %v709, 0.35355338
  %v738 = vmul.f32 %v715, 0.35355338
  %v739 = vmul.f32 %v721, 0.35355338
  %v740 = vmul.f32 %v727, 0.35355338
  %v741 = vmul.f32 %v733, 0.35355338
  %v742 = vmul.f32 %v430, %v489
  %v743 = vmul.f32 %v431, %v489
  %v744 = vmul.f32 %v432, %v489
  %v745 = vmul.f32 %v433, %v489
  %v746 = vmul.f32 %v434, %v489
  %v747 = vmul.f32 %v435, %v489
  %v748 = vmul.f32 %v436, %v489
  %v749 = vmul.f32 %v437, %v489
  %v750 = vrot.slane %v742, 4
  %v751 = vadd.f32 %v742, %v750
  %v752 = vrot.slane %v751, 2
  %v753 = vadd.f32 %v751, %v752
  %v754 = vrot.slane %v753, 1
  %v755 = vadd.f32 %v753, %v754
  %v756 = vrot.slane %v743, 4
  %v757 = vadd.f32 %v743, %v756
  %v758 = vrot.slane %v757, 2
  %v759 = vadd.f32 %v757, %v758
  %v760 = vrot.slane %v759, 1
  %v761 = vadd.f32 %v759, %v760
  %v762 = vrot.slane %v744, 4
  %v763 = vadd.f32 %v744, %v762
  %v764 = vrot.slane %v763, 2
  %v765 = vadd.f32 %v763, %v764
  %v766 = vrot.slane %v765, 1
  %v767 = vadd.f32 %v765, %v766
  %v768 = vrot.slane %v745, 4
  %v769 = vadd.f32 %v745, %v768
  %v770 = vrot.slane %v769, 2
  %v771 = vadd.f32 %v769, %v770
  %v772 = vrot.slane %v771, 1
  %v773 = vadd.f32 %v771, %v772
  %v774 = vrot.slane %v746, 4
  %v775 = vadd.f32 %v746, %v774
  %v776 = vrot.slane %v775, 2
  %v777 = vadd.f32 %v775, %v776
  %v778 = vrot.slane %v777, 1
  %v779 = vadd.f32 %v777, %v778
  %v780 = vrot.slane %v747, 4
  %v781 = vadd.f32 %v747, %v780
  %v782 = vrot.slane %v781, 2
  %v783 = vadd.f32 %v781, %v782
  %v784 = vrot.slane %v783, 1
  %v785 = vadd.f32 %v783, %v784
  %v786 = vrot.slane %v748, 4
  %v787 = vadd.f32 %v748, %v786
  %v788 = vrot.slane %v787, 2
  %v789 = vadd.f32 %v787, %v788
  %v790 = vrot.slane %v789, 1
  %v791 = vadd.f32 %v789, %v790
  %v792 = vrot.slane %v749, 4
  %v793 = vadd.f32 %v749, %v792
  %v794 = vrot.slane %v793, 2
  %v795 = vadd.f32 %v793, %v794
  %v796 = vrot.slane %v795, 1
  %v797 = vadd.f32 %v795, %v796
  %v798 = vmul.f32 %v755, 0.35355338
  %v799 = vmul.f32 %v761, 0.35355338
  %v800 = vmul.f32 %v767, 0.35355338
  %v801 = vmul.f32 %v773, 0.35355338
  %v802 = vmul.f32 %v779, 0.35355338
  %v803 = vmul.f32 %v785, 0.35355338
  %v804 = vmul.f32 %v791, 0.35355338
  %v805 = vmul.f32 %v797, 0.35355338
  %v806 = vmul.f32 %v430, %v490
  %v807 = vmul.f32 %v431, %v490
  %v808 = vmul.f32 %v432, %v490
  %v809 = vmul.f32 %v433, %v490
  %v810 = vmul.f32 %v434, %v490
  %v811 = vmul.f32 %v435, %v490
  %v812 = vmul.f32 %v436, %v490
  %v813 = vmul.f32 %v437, %v490
  %v814 = vrot.slane %v806, 4
  %v815 = vadd.f32 %v806, %v814
  %v816 = vrot.slane %v815, 2
  %v817 = vadd.f32 %v815, %v816
  %v818 = vrot.slane %v817, 1
  %v819 = vadd.f32 %v817, %v818
  %v820 = vrot.slane %v807, 4
  %v821 = vadd.f32 %v807, %v820
  %v822 = vrot.slane %v821, 2
  %v823 = vadd.f32 %v821, %v822
  %v824 = vrot.slane %v823, 1
  %v825 = vadd.f32 %v823, %v824
  %v826 = vrot.slane %v808, 4
  %v827 = vadd.f32 %v808, %v826
  %v828 = vrot.slane %v827, 2
  %v829 = vadd.f32 %v827, %v828
  %v830 = vrot.slane %v829, 1
  %v831 = vadd.f32 %v829, %v830
  %v832 = vrot.slane %v809, 4
  %v833 = vadd.f32 %v809, %v832
  %v834 = vrot.slane %v833, 2
  %v835 = vadd.f32 %v833, %v834
  %v836 = vrot.slane %v835, 1
  %v837 = vadd.f32 %v835, %v836
  %v838 = vrot.slane %v810, 4
  %v839 = vadd.f32 %v810, %v838
  %v840 = vrot.slane %v839, 2
  %v841 = vadd.f32 %v839, %v840
  %v842 = vrot.slane %v841, 1
  %v843 = vadd.f32 %v841, %v842
  %v844 = vrot.slane %v811, 4
  %v845 = vadd.f32 %v811, %v844
  %v846 = vrot.slane %v845, 2
  %v847 = vadd.f32 %v845, %v846
  %v848 = vrot.slane %v847, 1
  %v849 = vadd.f32 %v847, %v848
  %v850 = vrot.slane %v812, 4
  %v851 = vadd.f32 %v812, %v850
  %v852 = vrot.slane %v851, 2
  %v853 = vadd.f32 %v851, %v852
  %v854 = vrot.slane %v853, 1
  %v855 = vadd.f32 %v853, %v854
  %v856 = vrot.slane %v813, 4
  %v857 = vadd.f32 %v813, %v856
  %v858 = vrot.slane %v857, 2
  %v859 = vadd.f32 %v857, %v858
  %v860 = vrot.slane %v859, 1
  %v861 = vadd.f32 %v859, %v860
  %v862 = vmul.f32 %v819, 0.35355338
  %v863 = vmul.f32 %v825, 0.35355338
  %v864 = vmul.f32 %v831, 0.35355338
  %v865 = vmul.f32 %v837, 0.35355338
  %v866 = vmul.f32 %v843, 0.35355338
  %v867 = vmul.f32 %v849, 0.35355338
  %v868 = vmul.f32 %v855, 0.35355338
  %v869 = vmul.f32 %v861, 0.35355338
  %v870 = vmul.f32 %v430, %v491
  %v871 = vmul.f32 %v431, %v491
  %v872 = vmul.f32 %v432, %v491
  %v873 = vmul.f32 %v433, %v491
  %v874 = vmul.f32 %v434, %v491
  %v875 = vmul.f32 %v435, %v491
  %v876 = vmul.f32 %v436, %v491
  %v877 = vmul.f32 %v437, %v491
  %v878 = vrot.slane %v870, 4
  %v879 = vadd.f32 %v870, %v878
  %v880 = vrot.slane %v879, 2
  %v881 = vadd.f32 %v879, %v880
  %v882 = vrot.slane %v881, 1
  %v883 = vadd.f32 %v881, %v882
  %v884 = vrot.slane %v871, 4
  %v885 = vadd.f32 %v871, %v884
  %v886 = vrot.slane %v885, 2
  %v887 = vadd.f32 %v885, %v886
  %v888 = vrot.slane %v887, 1
  %v889 = vadd.f32 %v887, %v888
  %v890 = vrot.slane %v872, 4
  %v891 = vadd.f32 %v872, %v890
  %v892 = vrot.slane %v891, 2
  %v893 = vadd.f32 %v891, %v892
  %v894 = vrot.slane %v893, 1
  %v895 = vadd.f32 %v893, %v894
  %v896 = vrot.slane %v873, 4
  %v897 = vadd.f32 %v873, %v896
  %v898 = vrot.slane %v897, 2
  %v899 = vadd.f32 %v897, %v898
  %v900 = vrot.slane %v899, 1
  %v901 = vadd.f32 %v899, %v900
  %v902 = vrot.slane %v874, 4
  %v903 = vadd.f32 %v874, %v902
  %v904 = vrot.slane %v903, 2
  %v905 = vadd.f32 %v903, %v904
  %v906 = vrot.slane %v905, 1
  %v907 = vadd.f32 %v905, %v906
  %v908 = vrot.slane %v875, 4
  %v909 = vadd.f32 %v875, %v908
  %v910 = vrot.slane %v909, 2
  %v911 = vadd.f32 %v909, %v910
  %v912 = vrot.slane %v911, 1
  %v913 = vadd.f32 %v911, %v912
  %v914 = vrot.slane %v876, 4
  %v915 = vadd.f32 %v876, %v914
  %v916 = vrot.slane %v915, 2
  %v917 = vadd.f32 %v915, %v916
  %v918 = vrot.slane %v917, 1
  %v919 = vadd.f32 %v917, %v918
  %v920 = vrot.slane %v877, 4
  %v921 = vadd.f32 %v877, %v920
  %v922 = vrot.slane %v921, 2
  %v923 = vadd.f32 %v921, %v922
  %v924 = vrot.slane %v923, 1
  %v925 = vadd.f32 %v923, %v924
  %v926 = vmul.f32 %v883, 0.35355338
  %v927 = vmul.f32 %v889, 0.35355338
  %v928 = vmul.f32 %v895, 0.35355338
  %v929 = vmul.f32 %v901, 0.35355338
  %v930 = vmul.f32 %v907, 0.35355338
  %v931 = vmul.f32 %v913, 0.35355338
  %v932 = vmul.f32 %v919, 0.35355338
  %v933 = vmul.f32 %v925, 0.35355338
  %v934 = vmul.f32 %v430, %v492
  %v935 = vmul.f32 %v431, %v492
  %v936 = vmul.f32 %v432, %v492
  %v937 = vmul.f32 %v433, %v492
  %v938 = vmul.f32 %v434, %v492
  %v939 = vmul.f32 %v435, %v492
  %v940 = vmul.f32 %v436, %v492
  %v941 = vmul.f32 %v437, %v492
  %v942 = vrot.slane %v934, 4
  %v943 = vadd.f32 %v934, %v942
  %v944 = vrot.slane %v943, 2
  %v945 = vadd.f32 %v943, %v944
  %v946 = vrot.slane %v945, 1
  %v947 = vadd.f32 %v945, %v946
  %v948 = vrot.slane %v935, 4
  %v949 = vadd.f32 %v935, %v948
  %v950 = vrot.slane %v949, 2
  %v951 = vadd.f32 %v949, %v950
  %v952 = vrot.slane %v951, 1
  %v953 = vadd.f32 %v951, %v952
  %v954 = vrot.slane %v936, 4
  %v955 = vadd.f32 %v936, %v954
  %v956 = vrot.slane %v955, 2
  %v957 = vadd.f32 %v955, %v956
  %v958 = vrot.slane %v957, 1
  %v959 = vadd.f32 %v957, %v958
  %v960 = vrot.slane %v937, 4
  %v961 = vadd.f32 %v937, %v960
  %v962 = vrot.slane %v961, 2
  %v963 = vadd.f32 %v961, %v962
  %v964 = vrot.slane %v963, 1
  %v965 = vadd.f32 %v963, %v964
  %v966 = vrot.slane %v938, 4
  %v967 = vadd.f32 %v938, %v966
  %v968 = vrot.slane %v967, 2
  %v969 = vadd.f32 %v967, %v968
  %v970 = vrot.slane %v969, 1
  %v971 = vadd.f32 %v969, %v970
  %v972 = vrot.slane %v939, 4
  %v973 = vadd.f32 %v939, %v972
  %v974 = vrot.slane %v973, 2
  %v975 = vadd.f32 %v973, %v974
  %v976 = vrot.slane %v975, 1
  %v977 = vadd.f32 %v975, %v976
  %v978 = vrot.slane %v940, 4
  %v979 = vadd.f32 %v940, %v978
  %v980 = vrot.slane %v979, 2
  %v981 = vadd.f32 %v979, %v980
  %v982 = vrot.slane %v981, 1
  %v983 = vadd.f32 %v981, %v982
  %v984 = vrot.slane %v941, 4
  %v985 = vadd.f32 %v941, %v984
  %v986 = vrot.slane %v985, 2
  %v987 = vadd.f32 %v985, %v986
  %v988 = vrot.slane %v987, 1
  %v989 = vadd.f32 %v987, %v988
  %v990 = vmul.f32 %v947, 0.35355338
  %v991 = vmul.f32 %v953, 0.35355338
  %v992 = vmul.f32 %v959, 0.35355338
  %v993 = vmul.f32 %v965, 0.35355338
  %v994 = vmul.f32 %v971, 0.35355338
  %v995 = vmul.f32 %v977, 0.35355338
  %v996 = vmul.f32 %v983, 0.35355338
  %v997 = vmul.f32 %v989, 0.35355338
  %v998 = vmul.f32 %v430, %v493
  %v999 = vmul.f32 %v431, %v493
  %v1000 = vmul.f32 %v432, %v493
  %v1001 = vmul.f32 %v433, %v493
  %v1002 = vmul.f32 %v434, %v493
  %v1003 = vmul.f32 %v435, %v493
  %v1004 = vmul.f32 %v436, %v493
  %v1005 = vmul.f32 %v437, %v493
  %v1006 = vrot.slane %v998, 4
  %v1007 = vadd.f32 %v998, %v1006
  %v1008 = vrot.slane %v1007, 2
  %v1009 = vadd.f32 %v1007, %v1008
  %v1010 = vrot.slane %v1009, 1
  %v1011 = vadd.f32 %v1009, %v1010
  %v1012 = vrot.slane %v999, 4
  %v1013 = vadd.f32 %v999, %v1012
  %v1014 = vrot.slane %v1013, 2
  %v1015 = vadd.f32 %v1013, %v1014
  %v1016 = vrot.slane %v1015, 1
  %v1017 = vadd.f32 %v1015, %v1016
  %v1018 = vrot.slane %v1000, 4
  %v1019 = vadd.f32 %v1000, %v1018
  %v1020 = vrot.slane %v1019, 2
  %v1021 = vadd.f32 %v1019, %v1020
  %v1022 = vrot.slane %v1021, 1
  %v1023 = vadd.f32 %v1021, %v1022
  %v1024 = vrot.slane %v1001, 4
  %v1025 = vadd.f32 %v1001, %v1024
  %v1026 = vrot.slane %v1025, 2
  %v1027 = vadd.f32 %v1025, %v1026
  %v1028 = vrot.slane %v1027, 1
  %v1029 = vadd.f32 %v1027, %v1028
  %v1030 = vrot.slane %v1002, 4
  %v1031 = vadd.f32 %v1002, %v1030
  %v1032 = vrot.slane %v1031, 2
  %v1033 = vadd.f32 %v1031, %v1032
  %v1034 = vrot.slane %v1033, 1
  %v1035 = vadd.f32 %v1033, %v1034
  %v1036 = vrot.slane %v1003, 4
  %v1037 = vadd.f32 %v1003, %v1036
  %v1038 = vrot.slane %v1037, 2
  %v1039 = vadd.f32 %v1037, %v1038
  %v1040 = vrot.slane %v1039, 1
  %v1041 = vadd.f32 %v1039, %v1040
  %v1042 = vrot.slane %v1004, 4
  %v1043 = vadd.f32 %v1004, %v1042
  %v1044 = vrot.slane %v1043, 2
  %v1045 = vadd.f32 %v1043, %v1044
  %v1046 = vrot.slane %v1045, 1
  %v1047 = vadd.f32 %v1045, %v1046
  %v1048 = vrot.slane %v1005, 4
  %v1049 = vadd.f32 %v1005, %v1048
  %v1050 = vrot.slane %v1049, 2
  %v1051 = vadd.f32 %v1049, %v1050
  %v1052 = vrot.slane %v1051, 1
  %v1053 = vadd.f32 %v1051, %v1052
  %v1054 = vmul.f32 %v1011, 0.35355338
  %v1055 = vmul.f32 %v1017, 0.35355338
  %v1056 = vmul.f32 %v1023, 0.35355338
  %v1057 = vmul.f32 %v1029, 0.35355338
  %v1058 = vmul.f32 %v1035, 0.35355338
  %v1059 = vmul.f32 %v1041, 0.35355338
  %v1060 = vmul.f32 %v1047, 0.35355338
  %v1061 = vmul.f32 %v1053, 0.35355338
  %vm1062 = vcmask 1040384
  %v1063 = vsel %vm1062, %v606, %v670
  %v1064 = vsel %vm1062, %v607, %v671
  %v1065 = vsel %vm1062, %v608, %v672
  %v1066 = vsel %vm1062, %v609, %v673
  %v1067 = vsel %vm1062, %v610, %v674
  %v1068 = vsel %vm1062, %v611, %v675
  %v1069 = vsel %vm1062, %v612, %v676
  %v1070 = vsel %vm1062, %v613, %v677
  %vm1071 = vcmask 1041408
  %v1072 = vsel %vm1071, %v1063, %v734
  %v1073 = vsel %vm1071, %v1064, %v735
  %v1074 = vsel %vm1071, %v1065, %v736
  %v1075 = vsel %vm1071, %v1066, %v737
  %v1076 = vsel %vm1071, %v1067, %v738
  %v1077 = vsel %vm1071, %v1068, %v739
  %v1078 = vsel %vm1071, %v1069, %v740
  %v1079 = vsel %vm1071, %v1070, %v741
  %vm1080 = vcmask 1042432
  %v1081 = vsel %vm1080, %v1072, %v798
  %v1082 = vsel %vm1080, %v1073, %v799
  %v1083 = vsel %vm1080, %v1074, %v800
  %v1084 = vsel %vm1080, %v1075, %v801
  %v1085 = vsel %vm1080, %v1076, %v802
  %v1086 = vsel %vm1080, %v1077, %v803
  %v1087 = vsel %vm1080, %v1078, %v804
  %v1088 = vsel %vm1080, %v1079, %v805
  %vm1089 = vcmask 1043456
  %v1090 = vsel %vm1089, %v1081, %v862
  %v1091 = vsel %vm1089, %v1082, %v863
  %v1092 = vsel %vm1089, %v1083, %v864
  %v1093 = vsel %vm1089, %v1084, %v865
  %v1094 = vsel %vm1089, %v1085, %v866
  %v1095 = vsel %vm1089, %v1086, %v867
  %v1096 = vsel %vm1089, %v1087, %v868
  %v1097 = vsel %vm1089, %v1088, %v869
  %vm1098 = vcmask 1044480
  %v1099 = vsel %vm1098, %v1090, %v926
  %v1100 = vsel %vm1098, %v1091, %v927
  %v1101 = vsel %vm1098, %v1092, %v928
  %v1102 = vsel %vm1098, %v1093, %v929
  %v1103 = vsel %vm1098, %v1094, %v930
  %v1104 = vsel %vm1098, %v1095, %v931
  %v1105 = vsel %vm1098, %v1096, %v932
  %v1106 = vsel %vm1098, %v1097, %v933
  %vm1107 = vcmask 1045504
  %v1108 = vsel %vm1107, %v1099, %v990
  %v1109 = vsel %vm1107, %v1100, %v991
  %v1110 = vsel %vm1107, %v1101, %v992
  %v1111 = vsel %vm1107, %v1102, %v993
  %v1112 = vsel %vm1107, %v1103, %v994
  %v1113 = vsel %vm1107, %v1104, %v995
  %v1114 = vsel %vm1107, %v1105, %v996
  %v1115 = vsel %vm1107, %v1106, %v997
  %vm1116 = vcmask 1046528
  %v1117 = vsel %vm1116, %v1108, %v1054
  %v1118 = vsel %vm1116, %v1109, %v1055
  %v1119 = vsel %vm1116, %v1110, %v1056
  %v1120 = vsel %vm1116, %v1111, %v1057
  %v1121 = vsel %vm1116, %v1112, %v1058
  %v1122 = vsel %vm1116, %v1113, %v1059
  %v1123 = vsel %vm1116, %v1114, %v1060
  %v1124 = vsel %vm1116, %v1115, %v1061
  %v1125 = vrot.slane %v1117, 4
  %v1126 = vmax.f32 %v1117, %v1125
  %v1127 = vrot.slane %v1126, 2
  %v1128 = vmax.f32 %v1126, %v1127
  %v1129 = vrot.slane %v1128, 1
  %v1130 = vmax.f32 %v1128, %v1129
  %v1131 = vrot.slane %v1118, 4
  %v1132 = vmax.f32 %v1118, %v1131
  %v1133 = vrot.slane %v1132, 2
  %v1134 = vmax.f32 %v1132, %v1133
  %v1135 = vrot.slane %v1134, 1
  %v1136 = vmax.f32 %v1134, %v1135
  %v1137 = vrot.slane %v1119, 4
  %v1138 = vmax.f32 %v1119, %v1137
  %v1139 = vrot.slane %v1138, 2
  %v1140 = vmax.f32 %v1138, %v1139
  %v1141 = vrot.slane %v1140, 1
  %v1142 = vmax.f32 %v1140, %v1141
  %v1143 = vrot.slane %v1120, 4
  %v1144 = vmax.f32 %v1120, %v1143
  %v1145 = vrot.slane %v1144, 2
  %v1146 = vmax.f32 %v1144, %v1145
  %v1147 = vrot.slane %v1146, 1
  %v1148 = vmax.f32 %v1146, %v1147
  %v1149 = vrot.slane %v1121, 4
  %v1150 = vmax.f32 %v1121, %v1149
  %v1151 = vrot.slane %v1150, 2
  %v1152 = vmax.f32 %v1150, %v1151
  %v1153 = vrot.slane %v1152, 1
  %v1154 = vmax.f32 %v1152, %v1153
  %v1155 = vrot.slane %v1122, 4
  %v1156 = vmax.f32 %v1122, %v1155
  %v1157 = vrot.slane %v1156, 2
  %v1158 = vmax.f32 %v1156, %v1157
  %v1159 = vrot.slane %v1158, 1
  %v1160 = vmax.f32 %v1158, %v1159
  %v1161 = vrot.slane %v1123, 4
  %v1162 = vmax.f32 %v1123, %v1161
  %v1163 = vrot.slane %v1162, 2
  %v1164 = vmax.f32 %v1162, %v1163
  %v1165 = vrot.slane %v1164, 1
  %v1166 = vmax.f32 %v1164, %v1165
  %v1167 = vrot.slane %v1124, 4
  %v1168 = vmax.f32 %v1124, %v1167
  %v1169 = vrot.slane %v1168, 2
  %v1170 = vmax.f32 %v1168, %v1169
  %v1171 = vrot.slane %v1170, 1
  %v1172 = vmax.f32 %v1170, %v1171
  %v1173 = vsub.f32 %v1117, %v1130
  %v1174 = vsub.f32 %v1118, %v1136
  %v1175 = vsub.f32 %v1119, %v1142
  %v1176 = vsub.f32 %v1120, %v1148
  %v1177 = vsub.f32 %v1121, %v1154
  %v1178 = vsub.f32 %v1122, %v1160
  %v1179 = vsub.f32 %v1123, %v1166
  %v1180 = vsub.f32 %v1124, %v1172
  %v1181 = vmul.f32 %v1173, 1.442695
  %v1182 = vpow.pop %v1181
  %v1183 = vmul.f32 %v1174, 1.442695
  %v1184 = vpow.pop %v1183
  %v1185 = vmul.f32 %v1175, 1.442695
  %v1186 = vpow.pop %v1185
  %v1187 = vmul.f32 %v1176, 1.442695
  %v1188 = vpow.pop %v1187
  %v1189 = vmul.f32 %v1177, 1.442695
  %v1190 = vpow.pop %v1189
  %v1191 = vmul.f32 %v1178, 1.442695
  %v1192 = vpow.pop %v1191
  %v1193 = vmul.f32 %v1179, 1.442695
  %v1194 = vpow.pop %v1193
  %v1195 = vmul.f32 %v1180, 1.442695
  %v1196 = vpow.pop %v1195
  %v1197 = vrot.slane %v1182, 4
  %v1198 = vadd.f32 %v1182, %v1197
  %v1199 = vrot.slane %v1198, 2
  %v1200 = vadd.f32 %v1198, %v1199
  %v1201 = vrot.slane %v1200, 1
  %v1202 = vadd.f32 %v1200, %v1201
  %v1203 = vrot.slane %v1184, 4
  %v1204 = vadd.f32 %v1184, %v1203
  %v1205 = vrot.slane %v1204, 2
  %v1206 = vadd.f32 %v1204, %v1205
  %v1207 = vrot.slane %v1206, 1
  %v1208 = vadd.f32 %v1206, %v1207
  %v1209 = vrot.slane %v1186, 4
  %v1210 = vadd.f32 %v1186, %v1209
  %v1211 = vrot.slane %v1210, 2
  %v1212 = vadd.f32 %v1210, %v1211
  %v1213 = vrot.slane %v1212, 1
  %v1214 = vadd.f32 %v1212, %v1213
  %v1215 = vrot.slane %v1188, 4
  %v1216 = vadd.f32 %v1188, %v1215
  %v1217 = vrot.slane %v1216, 2
  %v1218 = vadd.f32 %v1216, %v1217
  %v1219 = vrot.slane %v1218, 1
  %v1220 = vadd.f32 %v1218, %v1219
  %v1221 = vrot.slane %v1190, 4
  %v1222 = vadd.f32 %v1190, %v1221
  %v1223 = vrot.slane %v1222, 2
  %v1224 = vadd.f32 %v1222, %v1223
  %v1225 = vrot.slane %v1224, 1
  %v1226 = vadd.f32 %v1224, %v1225
  %v1227 = vrot.slane %v1192, 4
  %v1228 = vadd.f32 %v1192, %v1227
  %v1229 = vrot.slane %v1228, 2
  %v1230 = vadd.f32 %v1228, %v1229
  %v1231 = vrot.slane %v1230, 1
  %v1232 = vadd.f32 %v1230, %v1231
  %v1233 = vrot.slane %v1194, 4
  %v1234 = vadd.f32 %v1194, %v1233
  %v1235 = vrot.slane %v1234, 2
  %v1236 = vadd.f32 %v1234, %v1235
  %v1237 = vrot.slane %v1236, 1
  %v1238 = vadd.f32 %v1236, %v1237
  %v1239 = vrot.slane %v1196, 4
  %v1240 = vadd.f32 %v1196, %v1239
  %v1241 = vrot.slane %v1240, 2
  %v1242 = vadd.f32 %v1240, %v1241
  %v1243 = vrot.slane %v1242, 1
  %v1244 = vadd.f32 %v1242, %v1243
  %v1245 = vrcp.pop %v1202
  %v1246 = vrcp.pop %v1208
  %v1247 = vrcp.pop %v1214
  %v1248 = vrcp.pop %v1220
  %v1249 = vrcp.pop %v1226
  %v1250 = vrcp.pop %v1232
  %v1251 = vrcp.pop %v1238
  %v1252 = vrcp.pop %v1244
  %v1253 = vmul.f32 %v1182, %v1245
  %v1254 = vmul.f32 %v1184, %v1246
  %v1255 = vmul.f32 %v1186, %v1247
  %v1256 = vmul.f32 %v1188, %v1248
  %v1257 = vmul.f32 %v1190, %v1249
  %v1258 = vmul.f32 %v1192, %v1250
  %v1259 = vmul.f32 %v1194, %v1251
  %v1260 = vmul.f32 %v1196, %v1252
  %v1261 = vlaneseq
  %v1262 = vshrl.u32 %v1261, 7
  %v1263 = vsub.s32 0, %v1262
  %v1264 = vrot.slane %v1253, %v1263
  %v1265 = vlaneseq
  %v1266 = vshrl.u32 %v1265, 7
  %v1267 = vsub.s32 0, %v1266
  %v1268 = vrot.slane %v1254, %v1267
  %v1269 = vlaneseq
  %v1270 = vshrl.u32 %v1269, 7
  %v1271 = vsub.s32 0, %v1270
  %v1272 = vrot.slane %v1255, %v1271
  %v1273 = vlaneseq
  %v1274 = vshrl.u32 %v1273, 7
  %v1275 = vsub.s32 0, %v1274
  %v1276 = vrot.slane %v1256, %v1275
  %v1277 = vlaneseq
  %v1278 = vshrl.u32 %v1277, 7
  %v1279 = vsub.s32 0, %v1278
  %v1280 = vrot.slane %v1257, %v1279
  %v1281 = vlaneseq
  %v1282 = vshrl.u32 %v1281, 7
  %v1283 = vsub.s32 0, %v1282
  %v1284 = vrot.slane %v1258, %v1283
  %v1285 = vlaneseq
  %v1286 = vshrl.u32 %v1285, 7
  %v1287 = vsub.s32 0, %v1286
  %v1288 = vrot.slane %v1259, %v1287
  %v1289 = vlaneseq
  %v1290 = vshrl.u32 %v1289, 7
  %v1291 = vsub.s32 0, %v1290
  %v1292 = vrot.slane %v1260, %v1291
  %v1293 = vmul.f32 %v1264, %v542
  %v1294 = vmul.f32 %v1268, %v542
  %v1295 = vmul.f32 %v1272, %v542
  %v1296 = vmul.f32 %v1276, %v542
  %v1297 = vmul.f32 %v1280, %v542
  %v1298 = vmul.f32 %v1284, %v542
  %v1299 = vmul.f32 %v1288, %v542
  %v1300 = vmul.f32 %v1292, %v542
  %v1301 = vadd.f32 %v1293, 0.0
  %v1302 = vadd.f32 %v1294, 0.0
  %v1303 = vadd.f32 %v1295, 0.0
  %v1304 = vadd.f32 %v1296, 0.0
  %v1305 = vadd.f32 %v1297, 0.0
  %v1306 = vadd.f32 %v1298, 0.0
  %v1307 = vadd.f32 %v1299, 0.0
  %v1308 = vadd.f32 %v1300, 0.0
  %v1309 = vlaneseq
  %v1310 = vshrl.u32 %v1309, 7
  %v1311 = vsub.s32 1, %v1310
  %v1312 = vrot.slane %v1253, %v1311
  %v1313 = vlaneseq
  %v1314 = vshrl.u32 %v1313, 7
  %v1315 = vsub.s32 1, %v1314
  %v1316 = vrot.slane %v1254, %v1315
  %v1317 = vlaneseq
  %v1318 = vshrl.u32 %v1317, 7
  %v1319 = vsub.s32 1, %v1318
  %v1320 = vrot.slane %v1255, %v1319
  %v1321 = vlaneseq
  %v1322 = vshrl.u32 %v1321, 7
  %v1323 = vsub.s32 1, %v1322
  %v1324 = vrot.slane %v1256, %v1323
  %v1325 = vlaneseq
  %v1326 = vshrl.u32 %v1325, 7
  %v1327 = vsub.s32 1, %v1326
  %v1328 = vrot.slane %v1257, %v1327
  %v1329 = vlaneseq
  %v1330 = vshrl.u32 %v1329, 7
  %v1331 = vsub.s32 1, %v1330
  %v1332 = vrot.slane %v1258, %v1331
  %v1333 = vlaneseq
  %v1334 = vshrl.u32 %v1333, 7
  %v1335 = vsub.s32 1, %v1334
  %v1336 = vrot.slane %v1259, %v1335
  %v1337 = vlaneseq
  %v1338 = vshrl.u32 %v1337, 7
  %v1339 = vsub.s32 1, %v1338
  %v1340 = vrot.slane %v1260, %v1339
  %v1341 = vmul.f32 %v1312, %v543
  %v1342 = vmul.f32 %v1316, %v543
  %v1343 = vmul.f32 %v1320, %v543
  %v1344 = vmul.f32 %v1324, %v543
  %v1345 = vmul.f32 %v1328, %v543
  %v1346 = vmul.f32 %v1332, %v543
  %v1347 = vmul.f32 %v1336, %v543
  %v1348 = vmul.f32 %v1340, %v543
  %v1349 = vadd.f32 %v1301, %v1341
  %v1350 = vadd.f32 %v1302, %v1342
  %v1351 = vadd.f32 %v1303, %v1343
  %v1352 = vadd.f32 %v1304, %v1344
  %v1353 = vadd.f32 %v1305, %v1345
  %v1354 = vadd.f32 %v1306, %v1346
  %v1355 = vadd.f32 %v1307, %v1347
  %v1356 = vadd.f32 %v1308, %v1348
  %v1357 = vlaneseq
  %v1358 = vshrl.u32 %v1357, 7
  %v1359 = vsub.s32 2, %v1358
  %v1360 = vrot.slane %v1253, %v1359
  %v1361 = vlaneseq
  %v1362 = vshrl.u32 %v1361, 7
  %v1363 = vsub.s32 2, %v1362
  %v1364 = vrot.slane %v1254, %v1363
  %v1365 = vlaneseq
  %v1366 = vshrl.u32 %v1365, 7
  %v1367 = vsub.s32 2, %v1366
  %v1368 = vrot.slane %v1255, %v1367
  %v1369 = vlaneseq
  %v1370 = vshrl.u32 %v1369, 7
  %v1371 = vsub.s32 2, %v1370
  %v1372 = vrot.slane %v1256, %v1371
  %v1373 = vlaneseq
  %v1374 = vshrl.u32 %v1373, 7
  %v1375 = vsub.s32 2, %v1374
  %v1376 = vrot.slane %v1257, %v1375
  %v1377 = vlaneseq
  %v1378 = vshrl.u32 %v1377, 7
  %v1379 = vsub.s32 2, %v1378
  %v1380 = vrot.slane %v1258, %v1379
  %v1381 = vlaneseq
  %v1382 = vshrl.u32 %v1381, 7
  %v1383 = vsub.s32 2, %v1382
  %v1384 = vrot.slane %v1259, %v1383
  %v1385 = vlaneseq
  %v1386 = vshrl.u32 %v1385, 7
  %v1387 = vsub.s32 2, %v1386
  %v1388 = vrot.slane %v1260, %v1387
  %v1389 = vmul.f32 %v1360, %v544
  %v1390 = vmul.f32 %v1364, %v544
  %v1391 = vmul.f32 %v1368, %v544
  %v1392 = vmul.f32 %v1372, %v544
  %v1393 = vmul.f32 %v1376, %v544
  %v1394 = vmul.f32 %v1380, %v544
  %v1395 = vmul.f32 %v1384, %v544
  %v1396 = vmul.f32 %v1388, %v544
  %v1397 = vadd.f32 %v1349, %v1389
  %v1398 = vadd.f32 %v1350, %v1390
  %v1399 = vadd.f32 %v1351, %v1391
  %v1400 = vadd.f32 %v1352, %v1392
  %v1401 = vadd.f32 %v1353, %v1393
  %v1402 = vadd.f32 %v1354, %v1394
  %v1403 = vadd.f32 %v1355, %v1395
  %v1404 = vadd.f32 %v1356, %v1396
  %v1405 = vlaneseq
  %v1406 = vshrl.u32 %v1405, 7
  %v1407 = vsub.s32 3, %v1406
  %v1408 = vrot.slane %v1253, %v1407
  %v1409 = vlaneseq
  %v1410 = vshrl.u32 %v1409, 7
  %v1411 = vsub.s32 3, %v1410
  %v1412 = vrot.slane %v1254, %v1411
  %v1413 = vlaneseq
  %v1414 = vshrl.u32 %v1413, 7
  %v1415 = vsub.s32 3, %v1414
  %v1416 = vrot.slane %v1255, %v1415
  %v1417 = vlaneseq
  %v1418 = vshrl.u32 %v1417, 7
  %v1419 = vsub.s32 3, %v1418
  %v1420 = vrot.slane %v1256, %v1419
  %v1421 = vlaneseq
  %v1422 = vshrl.u32 %v1421, 7
  %v1423 = vsub.s32 3, %v1422
  %v1424 = vrot.slane %v1257, %v1423
  %v1425 = vlaneseq
  %v1426 = vshrl.u32 %v1425, 7
  %v1427 = vsub.s32 3, %v1426
  %v1428 = vrot.slane %v1258, %v1427
  %v1429 = vlaneseq
  %v1430 = vshrl.u32 %v1429, 7
  %v1431 = vsub.s32 3, %v1430
  %v1432 = vrot.slane %v1259, %v1431
  %v1433 = vlaneseq
  %v1434 = vshrl.u32 %v1433, 7
  %v1435 = vsub.s32 3, %v1434
  %v1436 = vrot.slane %v1260, %v1435
  %v1437 = vmul.f32 %v1408, %v545
  %v1438 = vmul.f32 %v1412, %v545
  %v1439 = vmul.f32 %v1416, %v545
  %v1440 = vmul.f32 %v1420, %v545
  %v1441 = vmul.f32 %v1424, %v545
  %v1442 = vmul.f32 %v1428, %v545
  %v1443 = vmul.f32 %v1432, %v545
  %v1444 = vmul.f32 %v1436, %v545
  %v1445 = vadd.f32 %v1397, %v1437
  %v1446 = vadd.f32 %v1398, %v1438
  %v1447 = vadd.f32 %v1399, %v1439
  %v1448 = vadd.f32 %v1400, %v1440
  %v1449 = vadd.f32 %v1401, %v1441
  %v1450 = vadd.f32 %v1402, %v1442
  %v1451 = vadd.f32 %v1403, %v1443
  %v1452 = vadd.f32 %v1404, %v1444
  %v1453 = vlaneseq
  %v1454 = vshrl.u32 %v1453, 7
  %v1455 = vsub.s32 4, %v1454
  %v1456 = vrot.slane %v1253, %v1455
  %v1457 = vlaneseq
  %v1458 = vshrl.u32 %v1457, 7
  %v1459 = vsub.s32 4, %v1458
  %v1460 = vrot.slane %v1254, %v1459
  %v1461 = vlaneseq
  %v1462 = vshrl.u32 %v1461, 7
  %v1463 = vsub.s32 4, %v1462
  %v1464 = vrot.slane %v1255, %v1463
  %v1465 = vlaneseq
  %v1466 = vshrl.u32 %v1465, 7
  %v1467 = vsub.s32 4, %v1466
  %v1468 = vrot.slane %v1256, %v1467
  %v1469 = vlaneseq
  %v1470 = vshrl.u32 %v1469, 7
  %v1471 = vsub.s32 4, %v1470
  %v1472 = vrot.slane %v1257, %v1471
  %v1473 = vlaneseq
  %v1474 = vshrl.u32 %v1473, 7
  %v1475 = vsub.s32 4, %v1474
  %v1476 = vrot.slane %v1258, %v1475
  %v1477 = vlaneseq
  %v1478 = vshrl.u32 %v1477, 7
  %v1479 = vsub.s32 4, %v1478
  %v1480 = vrot.slane %v1259, %v1479
  %v1481 = vlaneseq
  %v1482 = vshrl.u32 %v1481, 7
  %v1483 = vsub.s32 4, %v1482
  %v1484 = vrot.slane %v1260, %v1483
  %v1485 = vmul.f32 %v1456, %v546
  %v1486 = vmul.f32 %v1460, %v546
  %v1487 = vmul.f32 %v1464, %v546
  %v1488 = vmul.f32 %v1468, %v546
  %v1489 = vmul.f32 %v1472, %v546
  %v1490 = vmul.f32 %v1476, %v546
  %v1491 = vmul.f32 %v1480, %v546
  %v1492 = vmul.f32 %v1484, %v546
  %v1493 = vadd.f32 %v1445, %v1485
  %v1494 = vadd.f32 %v1446, %v1486
  %v1495 = vadd.f32 %v1447, %v1487
  %v1496 = vadd.f32 %v1448, %v1488
  %v1497 = vadd.f32 %v1449, %v1489
  %v1498 = vadd.f32 %v1450, %v1490
  %v1499 = vadd.f32 %v1451, %v1491
  %v1500 = vadd.f32 %v1452, %v1492
  %v1501 = vlaneseq
  %v1502 = vshrl.u32 %v1501, 7
  %v1503 = vsub.s32 5, %v1502
  %v1504 = vrot.slane %v1253, %v1503
  %v1505 = vlaneseq
  %v1506 = vshrl.u32 %v1505, 7
  %v1507 = vsub.s32 5, %v1506
  %v1508 = vrot.slane %v1254, %v1507
  %v1509 = vlaneseq
  %v1510 = vshrl.u32 %v1509, 7
  %v1511 = vsub.s32 5, %v1510
  %v1512 = vrot.slane %v1255, %v1511
  %v1513 = vlaneseq
  %v1514 = vshrl.u32 %v1513, 7
  %v1515 = vsub.s32 5, %v1514
  %v1516 = vrot.slane %v1256, %v1515
  %v1517 = vlaneseq
  %v1518 = vshrl.u32 %v1517, 7
  %v1519 = vsub.s32 5, %v1518
  %v1520 = vrot.slane %v1257, %v1519
  %v1521 = vlaneseq
  %v1522 = vshrl.u32 %v1521, 7
  %v1523 = vsub.s32 5, %v1522
  %v1524 = vrot.slane %v1258, %v1523
  %v1525 = vlaneseq
  %v1526 = vshrl.u32 %v1525, 7
  %v1527 = vsub.s32 5, %v1526
  %v1528 = vrot.slane %v1259, %v1527
  %v1529 = vlaneseq
  %v1530 = vshrl.u32 %v1529, 7
  %v1531 = vsub.s32 5, %v1530
  %v1532 = vrot.slane %v1260, %v1531
  %v1533 = vmul.f32 %v1504, %v547
  %v1534 = vmul.f32 %v1508, %v547
  %v1535 = vmul.f32 %v1512, %v547
  %v1536 = vmul.f32 %v1516, %v547
  %v1537 = vmul.f32 %v1520, %v547
  %v1538 = vmul.f32 %v1524, %v547
  %v1539 = vmul.f32 %v1528, %v547
  %v1540 = vmul.f32 %v1532, %v547
  %v1541 = vadd.f32 %v1493, %v1533
  %v1542 = vadd.f32 %v1494, %v1534
  %v1543 = vadd.f32 %v1495, %v1535
  %v1544 = vadd.f32 %v1496, %v1536
  %v1545 = vadd.f32 %v1497, %v1537
  %v1546 = vadd.f32 %v1498, %v1538
  %v1547 = vadd.f32 %v1499, %v1539
  %v1548 = vadd.f32 %v1500, %v1540
  %v1549 = vlaneseq
  %v1550 = vshrl.u32 %v1549, 7
  %v1551 = vsub.s32 6, %v1550
  %v1552 = vrot.slane %v1253, %v1551
  %v1553 = vlaneseq
  %v1554 = vshrl.u32 %v1553, 7
  %v1555 = vsub.s32 6, %v1554
  %v1556 = vrot.slane %v1254, %v1555
  %v1557 = vlaneseq
  %v1558 = vshrl.u32 %v1557, 7
  %v1559 = vsub.s32 6, %v1558
  %v1560 = vrot.slane %v1255, %v1559
  %v1561 = vlaneseq
  %v1562 = vshrl.u32 %v1561, 7
  %v1563 = vsub.s32 6, %v1562
  %v1564 = vrot.slane %v1256, %v1563
  %v1565 = vlaneseq
  %v1566 = vshrl.u32 %v1565, 7
  %v1567 = vsub.s32 6, %v1566
  %v1568 = vrot.slane %v1257, %v1567
  %v1569 = vlaneseq
  %v1570 = vshrl.u32 %v1569, 7
  %v1571 = vsub.s32 6, %v1570
  %v1572 = vrot.slane %v1258, %v1571
  %v1573 = vlaneseq
  %v1574 = vshrl.u32 %v1573, 7
  %v1575 = vsub.s32 6, %v1574
  %v1576 = vrot.slane %v1259, %v1575
  %v1577 = vlaneseq
  %v1578 = vshrl.u32 %v1577, 7
  %v1579 = vsub.s32 6, %v1578
  %v1580 = vrot.slane %v1260, %v1579
  %v1581 = vmul.f32 %v1552, %v548
  %v1582 = vmul.f32 %v1556, %v548
  %v1583 = vmul.f32 %v1560, %v548
  %v1584 = vmul.f32 %v1564, %v548
  %v1585 = vmul.f32 %v1568, %v548
  %v1586 = vmul.f32 %v1572, %v548
  %v1587 = vmul.f32 %v1576, %v548
  %v1588 = vmul.f32 %v1580, %v548
  %v1589 = vadd.f32 %v1541, %v1581
  %v1590 = vadd.f32 %v1542, %v1582
  %v1591 = vadd.f32 %v1543, %v1583
  %v1592 = vadd.f32 %v1544, %v1584
  %v1593 = vadd.f32 %v1545, %v1585
  %v1594 = vadd.f32 %v1546, %v1586
  %v1595 = vadd.f32 %v1547, %v1587
  %v1596 = vadd.f32 %v1548, %v1588
  %v1597 = vlaneseq
  %v1598 = vshrl.u32 %v1597, 7
  %v1599 = vsub.s32 7, %v1598
  %v1600 = vrot.slane %v1253, %v1599
  %v1601 = vlaneseq
  %v1602 = vshrl.u32 %v1601, 7
  %v1603 = vsub.s32 7, %v1602
  %v1604 = vrot.slane %v1254, %v1603
  %v1605 = vlaneseq
  %v1606 = vshrl.u32 %v1605, 7
  %v1607 = vsub.s32 7, %v1606
  %v1608 = vrot.slane %v1255, %v1607
  %v1609 = vlaneseq
  %v1610 = vshrl.u32 %v1609, 7
  %v1611 = vsub.s32 7, %v1610
  %v1612 = vrot.slane %v1256, %v1611
  %v1613 = vlaneseq
  %v1614 = vshrl.u32 %v1613, 7
  %v1615 = vsub.s32 7, %v1614
  %v1616 = vrot.slane %v1257, %v1615
  %v1617 = vlaneseq
  %v1618 = vshrl.u32 %v1617, 7
  %v1619 = vsub.s32 7, %v1618
  %v1620 = vrot.slane %v1258, %v1619
  %v1621 = vlaneseq
  %v1622 = vshrl.u32 %v1621, 7
  %v1623 = vsub.s32 7, %v1622
  %v1624 = vrot.slane %v1259, %v1623
  %v1625 = vlaneseq
  %v1626 = vshrl.u32 %v1625, 7
  %v1627 = vsub.s32 7, %v1626
  %v1628 = vrot.slane %v1260, %v1627
  %v1629 = vmul.f32 %v1600, %v549
  %v1630 = vmul.f32 %v1604, %v549
  %v1631 = vmul.f32 %v1608, %v549
  %v1632 = vmul.f32 %v1612, %v549
  %v1633 = vmul.f32 %v1616, %v549
  %v1634 = vmul.f32 %v1620, %v549
  %v1635 = vmul.f32 %v1624, %v549
  %v1636 = vmul.f32 %v1628, %v549
  %v1637 = vadd.f32 %v1589, %v1629
  %v1638 = vadd.f32 %v1590, %v1630
  %v1639 = vadd.f32 %v1591, %v1631
  %v1640 = vadd.f32 %v1592, %v1632
  %v1641 = vadd.f32 %v1593, %v1633
  %v1642 = vadd.f32 %v1594, %v1634
  %v1643 = vadd.f32 %v1595, %v1635
  %v1644 = vadd.f32 %v1596, %v1636
  %v1645 = vxor.u32 %v352, 2147483648
  %v1646 = vxor.u32 %v355, 2147483648
  %v1647 = vxor.u32 %v360, 2147483648
  %v1648 = vxor.u32 %v363, 2147483648
  %v1649 = vxor.u32 %v368, 2147483648
  %v1650 = vxor.u32 %v371, 2147483648
  %v1651 = vxor.u32 %v376, 2147483648
  %v1652 = vxor.u32 %v379, 2147483648
  %v1653 = vmul.f32 %v1645, 1.442695
  %v1654 = vpow.pop %v1653
  %v1655 = vmul.f32 %v1646, 1.442695
  %v1656 = vpow.pop %v1655
  %v1657 = vmul.f32 %v1647, 1.442695
  %v1658 = vpow.pop %v1657
  %v1659 = vmul.f32 %v1648, 1.442695
  %v1660 = vpow.pop %v1659
  %v1661 = vmul.f32 %v1649, 1.442695
  %v1662 = vpow.pop %v1661
  %v1663 = vmul.f32 %v1650, 1.442695
  %v1664 = vpow.pop %v1663
  %v1665 = vmul.f32 %v1651, 1.442695
  %v1666 = vpow.pop %v1665
  %v1667 = vmul.f32 %v1652, 1.442695
  %v1668 = vpow.pop %v1667
  %v1669 = vadd.f32 %v1654, 1.0
  %v1670 = vadd.f32 %v1656, 1.0
  %v1671 = vadd.f32 %v1658, 1.0
  %v1672 = vadd.f32 %v1660, 1.0
  %v1673 = vadd.f32 %v1662, 1.0
  %v1674 = vadd.f32 %v1664, 1.0
  %v1675 = vadd.f32 %v1666, 1.0
  %v1676 = vadd.f32 %v1668, 1.0
  %v1677 = vrcp.pop %v1669
  %v1678 = vmul.f32 1.0, %v1677
  %v1679 = vrcp.pop %v1670
  %v1680 = vmul.f32 1.0, %v1679
  %v1681 = vrcp.pop %v1671
  %v1682 = vmul.f32 1.0, %v1681
  %v1683 = vrcp.pop %v1672
  %v1684 = vmul.f32 1.0, %v1683
  %v1685 = vrcp.pop %v1673
  %v1686 = vmul.f32 1.0, %v1685
  %v1687 = vrcp.pop %v1674
  %v1688 = vmul.f32 1.0, %v1687
  %v1689 = vrcp.pop %v1675
  %v1690 = vmul.f32 1.0, %v1689
  %v1691 = vrcp.pop %v1676
  %v1692 = vmul.f32 1.0, %v1691
  %v1693 = vmul.f32 %v1637, %v1678
  %v1694 = vmul.f32 %v1638, %v1680
  %v1695 = vmul.f32 %v1639, %v1682
  %v1696 = vmul.f32 %v1640, %v1684
  %v1697 = vmul.f32 %v1641, %v1686
  %v1698 = vmul.f32 %v1642, %v1688
  %v1699 = vmul.f32 %v1643, %v1690
  %v1700 = vmul.f32 %v1644, %v1692
  %v1701 = vmul.f32 %v1693, %v1693
  %v1702 = vmul.f32 %v1694, %v1694
  %v1703 = vmul.f32 %v1695, %v1695
  %v1704 = vmul.f32 %v1696, %v1696
  %v1705 = vmul.f32 %v1697, %v1697
  %v1706 = vmul.f32 %v1698, %v1698
  %v1707 = vmul.f32 %v1699, %v1699
  %v1708 = vmul.f32 %v1700, %v1700
  %v1709 = vadd.f32 %v1701, %v1702
  %v1710 = vadd.f32 %v1709, %v1703
  %v1711 = vadd.f32 %v1710, %v1704
  %v1712 = vadd.f32 %v1711, %v1705
  %v1713 = vadd.f32 %v1712, %v1706
  %v1714 = vadd.f32 %v1713, %v1707
  %v1715 = vadd.f32 %v1714, %v1708
  %v1716 = vrot.slane %v1715, 4
  %v1717 = vadd.f32 %v1715, %v1716
  %v1718 = vrot.slane %v1717, 2
  %v1719 = vadd.f32 %v1717, %v1718
  %v1720 = vrot.slane %v1719, 1
  %v1721 = vadd.f32 %v1719, %v1720
  %v1722 = vmul.f32 %v1721, %v44
  %v1723 = vadd.f32 %v1722, 1e-06
  %v1724 = vrsqrt.pop %v1723
  %v1725 = vmul.f32 %v1693, %v1724
  %v1726 = vmul.f32 %v1694, %v1724
  %v1727 = vmul.f32 %v1695, %v1724
  %v1728 = vmul.f32 %v1696, %v1724
  %v1729 = vmul.f32 %v1697, %v1724
  %v1730 = vmul.f32 %v1698, %v1724
  %v1731 = vmul.f32 %v1699, %v1724
  %v1732 = vmul.f32 %v1700, %v1724
  %1733 = vxpose.xlu0.b32.start [1/16] %v1725, 128
  %1734 = vxpose.xlu0.b32.cont [2/16] %v1726, 128
  %1735 = vxpose.xlu0.b32.cont [3/16] %v1727, 128
  %1736 = vxpose.xlu0.b32.cont [4/16] %v1728, 128
  %1737 = vxpose.xlu0.b32.cont [5/16] %v1729, 128
  %1738 = vxpose.xlu0.b32.cont [6/16] %v1730, 128
  %1739 = vxpose.xlu0.b32.cont [7/16] %v1731, 128
  %1740 = vxpose.xlu0.b32.cont [8/16] %v1732, 128
  %1741 = vxpose.xlu0.b32.cont [9/16] 0.0, 128
  %1742 = vxpose.xlu0.b32.cont [10/16] 0.0, 128
  %1743 = vxpose.xlu0.b32.cont [11/16] 0.0, 128
  %1744 = vxpose.xlu0.b32.cont [12/16] 0.0, 128
  %1745 = vxpose.xlu0.b32.cont [13/16] 0.0, 128
  %1746 = vxpose.xlu0.b32.cont [14/16] 0.0, 128
  %1747 = vxpose.xlu0.b32.cont [15/16] 0.0, 128
  %1748 = vxpose.xlu0.b32.end [16/16] 0.0, 128
  %v1749 = vpop.trf.xlu0
  %v1750 = vpop.trf.xlu0
  %v1751 = vpop.trf.xlu0
  %v1752 = vpop.trf.xlu0
  %v1753 = vpop.trf.xlu0
  %v1754 = vpop.trf.xlu0
  %v1755 = vpop.trf.xlu0
  %v1756 = vpop.trf.xlu0
  %v1757 = vpop.trf.xlu0
  %v1758 = vpop.trf.xlu0
  %v1759 = vpop.trf.xlu0
  %v1760 = vpop.trf.xlu0
  %v1761 = vpop.trf.xlu0
  %v1762 = vpop.trf.xlu0
  %v1763 = vpop.trf.xlu0
  %v1764 = vpop.trf.xlu0
  %v1765 = vld [vmem:[%s2] sm:$0x1]
  %v1767 = vlaneseq
  %v1768 = vshrl.u32 %v1767, 7
  %v1769 = vsub.s32 0, %v1768
  %v1770 = vrot.slane %v1765, %v1769
  %v1772 = vmul.f32 %v1749, %v1770
  %v1773 = vmul.f32 %v1750, %v1770
  %v1774 = vmul.f32 %v1751, %v1770
  %v1775 = vmul.f32 %v1752, %v1770
  %v1776 = vmul.f32 %v1753, %v1770
  %v1777 = vmul.f32 %v1754, %v1770
  %v1778 = vmul.f32 %v1755, %v1770
  %v1779 = vmul.f32 %v1756, %v1770
  %v1780 = vmul.f32 %v1757, %v1770
  %v1781 = vmul.f32 %v1758, %v1770
  %v1782 = vmul.f32 %v1759, %v1770
  %v1783 = vmul.f32 %v1760, %v1770
  %v1784 = vmul.f32 %v1761, %v1770
  %v1785 = vmul.f32 %v1762, %v1770
  %v1786 = vmul.f32 %v1763, %v1770
  %v1787 = vmul.f32 %v1764, %v1770
  %1788 = vst.msk [vmem:[%s3] sm:$0xff] %vm172, %v1772
  %1789 = vst.msk [vmem:[%s3 + $0x8] sm:$0xff] %vm172, %v1773
  %1790 = vst.msk [vmem:[%s3 + $0x10] sm:$0xff] %vm172, %v1774
  %1791 = vst.msk [vmem:[%s3 + $0x18] sm:$0xff] %vm172, %v1775
  %1792 = vst.msk [vmem:[%s3 + $0x20] sm:$0xff] %vm172, %v1776
  %1793 = vst.msk [vmem:[%s3 + $0x28] sm:$0xff] %vm172, %v1777
  %1794 = vst.msk [vmem:[%s3 + $0x30] sm:$0xff] %vm172, %v1778
  %1795 = vst.msk [vmem:[%s3 + $0x38] sm:$0xff] %vm172, %v1779
  %1796 = vst.msk [vmem:[%s3 + $0x40] sm:$0xff] %vm172, %v1780
  %1797 = vst.msk [vmem:[%s3 + $0x48] sm:$0xff] %vm172, %v1781
  %1798 = vst.msk [vmem:[%s3 + $0x50] sm:$0xff] %vm172, %v1782
  %1799 = vst.msk [vmem:[%s3 + $0x58] sm:$0xff] %vm172, %v1783
  %1800 = vst.msk [vmem:[%s3 + $0x60] sm:$0xff] %vm172, %v1784
  %1801 = vst.msk [vmem:[%s3 + $0x68] sm:$0xff] %vm172, %v1785
  %1802 = vst.msk [vmem:[%s3 + $0x70] sm:$0xff] %vm172, %v1786
  %1803 = vst.msk [vmem:[%s3 + $0x78] sm:$0xff] %vm172, %v1787
  // Predicated region
  $region14: #{tpu_custom_call.1} parent=0 // pred_check
    _
  $region15: #{tpu_custom_call.1} parent=0 // pred_check_branch
    %1805 = sbr.rel (0) target = $region17
  $region16: #{tpu_custom_call.1} parent=0 // pred_region
    _
  $region17: #{tpu_custom_call.1} parent=0 // pred_fallthru
    _
  // Predicated region
  $region18: #{tpu_custom_call.1} parent=0 // pred_check
    _
  $region19: #{tpu_custom_call.1} parent=0 // pred_check_branch
    %1807 = sbr.rel (0) target = $region21
  $region20: #{tpu_custom_call.1} parent=0 // pred_region
    _
  $region21: #{tpu_custom_call.1} parent=0 // pred_fallthru
    _

</llo_original>
